<compile_context>
chip_gen: v6e
topology: v6e:2x2x1
jax: 0.10.0
libtpu: 0.0.40
codegen_flags: <defaults>
</compile_context>

<pallas_src>
import functools

import jax
import jax.numpy as jnp
from jax import lax
from jax.experimental import pallas as pl
from jax.experimental.pallas import tpu as pltpu

EPS = 1e-5


# ----------------------------- Pallas kernel ---------------------------------
def _conv_relu_stats_kernel(p_ref, w_ref, b_ref, y_ref, s_ref, ss_ref, *, r_valid, tr):
    # p_ref:  (TR, KC)   im2col patch rows for this R-tile (KC lane-padded to 128k)
    # w_ref:  (KC, C)    conv weight (previous layer's BN already folded in)
    # b_ref:  (1, C)     conv bias (BN-fold adjusted)
    # y_ref:  (TR, C)    relu(conv) output tile
    # s_ref:  (1, 1, C)  per-tile channel sum over valid rows   (for BN batch stats)
    # ss_ref: (1, 1, C)  per-tile channel sum-of-squares over valid rows
    y = jnp.dot(p_ref[...], w_ref[...], preferred_element_type=jnp.float32)
    y = jnp.maximum(y + b_ref[...], 0.0)          # bias + ReLU, once
    y_ref[...] = y

    # Mask out the rows that only exist because R was padded up to the tile size.
    row = pl.program_id(0) * tr + lax.broadcasted_iota(jnp.int32, (tr, 1), 0)
    ym = jnp.where(row < r_valid, y, 0.0)
    s_ref[...] = jnp.sum(ym, axis=0, keepdims=True)[None]
    ss_ref[...] = jnp.sum(ym * ym, axis=0, keepdims=True)[None]


def _round_up(v, m):
    return (v + m - 1) // m * m


def conv_relu_block(p, w2d, b, *, r_valid, tr_max=256):
    """One fused conv(matmul)+bias+ReLU over im2col patches, gridded over R rows."""
    r_in, kc = p.shape                       # r_in == r_valid
    c = w2d.shape[1]
    r8 = _round_up(r_valid, 8)               # 8-aligned sublane extent
    tr = min(tr_max, r8)                     # tile rows (multiple of 8)
    rp = _round_up(r8, tr)
    if rp > r_in:
        p = jnp.pad(p, ((0, rp - r_in), (0, 0)))
    grid_r = rp // tr

    kern = functools.partial(_conv_relu_stats_kernel, r_valid=r_valid, tr=tr)
    y, s, ss = pl.pallas_call(
        kern,
        out_shape=(
            jax.ShapeDtypeStruct((rp, c), jnp.float32),
            jax.ShapeDtypeStruct((grid_r, 1, c), jnp.float32),
            jax.ShapeDtypeStruct((grid_r, 1, c), jnp.float32),
        ),
        grid_spec=pltpu.PrefetchScalarGridSpec(
            num_scalar_prefetch=0,
            grid=(grid_r,),
            in_specs=[
                pl.BlockSpec((tr, kc), lambda r: (r, 0)),
                pl.BlockSpec((kc, c), lambda r: (0, 0)),   # weight resident
                pl.BlockSpec((1, c), lambda r: (0, 0)),    # bias resident
            ],
            out_specs=(
                pl.BlockSpec((tr, c), lambda r: (r, 0)),
                pl.BlockSpec((1, 1, c), lambda r: (r, 0, 0)),
                pl.BlockSpec((1, 1, c), lambda r: (r, 0, 0)),
            ),
        ),
        compiler_params=pltpu.CompilerParams(
            dimension_semantics=("parallel",)),            # both TCs on v7x
    )(p, w2d, b[None, :])
    return y[:r_valid], jnp.sum(s, axis=(0, 1)), jnp.sum(ss, axis=(0, 1))


# ------------------------------- JAX glue -------------------------------------
def im2col(x, kernel, stride):
    """x: (N, T, C) channels-last -> (N*t_out, kernel*C) patches (k-major, c-minor).

    Built from `kernel` static strided slices (no fancy-index gather); XLA fuses them.
    """
    N, T, C = x.shape
    t_out = (T - kernel) // stride + 1
    hi = (t_out - 1) * stride + 1
    cols = [x[:, k:k + hi:stride, :] for k in range(kernel)]   # each (N, t_out, C)
    p = jnp.stack(cols, axis=2)                                # (N, t_out, K, C)
    return p.reshape(N * t_out, kernel * C), t_out


def prep_weight(w, b, c_act, a=None, bb=None):
    """PyTorch conv1d weight (Cout, Cin, K) -> MXU-friendly (KC_pad, C_pad), bias.

    - zero-pads Cin up to c_act (the padded channel count carried by activations)
    - optionally folds the previous BatchNorm (y -> y*a + bb) into weight and bias:
        conv(y*a + bb, W) = patches(y) @ (W * a) + (b + sum_{k,cin} W * bb)
    - zero-pads KC and Cout up to multiples of 128 (lane-dense loads / matmul dims)
    """
    cout, cin, k = w.shape
    w = jnp.pad(w, ((0, 0), (0, c_act - cin), (0, 0)))
    if a is not None:
        b = b + jnp.sum(w * bb[None, :, None], axis=(1, 2))
        w = w * a[None, :, None]
    kc = k * c_act
    w2 = jnp.transpose(w, (2, 1, 0)).reshape(kc, cout)         # (K*Cin, Cout), k-major
    kc_pad = _round_up(kc, 128)
    c_pad = _round_up(cout, 128)
    w2 = jnp.pad(w2, ((0, kc_pad - kc), (0, c_pad - cout)))
    bp = jnp.pad(b, (0, c_pad - cout))
    return w2, bp, c_pad


def bn_fold(s, ss, r, gamma, beta):
    """Training-mode BatchNorm1d reduced to a per-channel affine y -> y*a + bb."""
    mean = s / r
    var = ss / r - mean * mean              # single-pass, biased variance (as torch)
    a = gamma * lax.rsqrt(var + EPS)
    return a, beta - mean * a


def _pad_c(v, c):
    return jnp.pad(v, (0, c - v.shape[0]))


def conv_relu_layer(x_nlc, w2d, b, kernel, stride):
    """Fused conv1d (one big matmul) + bias + ReLU + per-channel stat sums."""
    N, T, c_act = x_nlc.shape
    p, t_out = im2col(x_nlc, kernel, stride)
    r_valid, kc = p.shape
    kc_pad, c = w2d.shape
    if kc_pad > kc:                          # e.g. layer 1: KC 64 -> 128
        p = jnp.pad(p, ((0, 0), (0, kc_pad - kc)))
    y, s, ss = conv_relu_block(p, w2d, b, r_valid=r_valid)
    return y.reshape(N, t_out, c), s, ss


def net_forward(x_ncl, params):
    (w1, b1, g2, be2, w2, b2, g3, be3, w3, b3, g4, be4, w4, b4) = params
    N = x_ncl.shape[0]
    x = jnp.transpose(x_ncl, (0, 2, 1)).astype(jnp.float32)      # (N, L, 1)

    # conv_1 + relu ; bn_2 is folded into conv_2's weights below
    W, B, c1 = prep_weight(w1, b1, 1)
    x, s, ss = conv_relu_layer(x, W, B, 64, 8)
    a, bb = bn_fold(s, ss, N * x.shape[1], _pad_c(g2, c1), _pad_c(be2, c1))

    # conv_2 + relu (bn_2 folded in) ; bn_3 folded into conv_3
    W, B, c2 = prep_weight(w2, b2, c1, a, bb)
    x, s, ss = conv_relu_layer(x, W, B, 7, 5)
    a, bb = bn_fold(s, ss, N * x.shape[1], _pad_c(g3, c2), _pad_c(be3, c2))

    # conv_3 + relu (bn_3 folded in) ; bn_4 folded into conv_4
    W, B, c3 = prep_weight(w3, b3, c2, a, bb)
    x, s, ss = conv_relu_layer(x, W, B, 5, 3)
    a, bb = bn_fold(s, ss, N * x.shape[1], _pad_c(g4, c3), _pad_c(be4, c3))

    # conv_4 + relu (bn_4 folded in) ; bn_4 (reused) folded into the 2nd conv_4
    W, B, c4 = prep_weight(w4, b4, c3, a, bb)
    x, s, ss = conv_relu_layer(x, W, B, 3, 2)
    a, bb = bn_fold(s, ss, N * x.shape[1], _pad_c(g4, c4), _pad_c(be4, c4))

    # conv_4 + relu (bn_4 folded in) -- final output, no BN afterwards
    W, B, _ = prep_weight(w4, b4, c4, a, bb)
    x, _, _ = conv_relu_layer(x, W, B, 3, 2)

    return jnp.transpose(x, (0, 2, 1))                           # (N, 128, T_out) NCL


# --------------------------- pure-JAX reference -------------------------------
def ref_forward(x_ncl, params):
    (w1, b1, g2, be2, w2, b2, g3, be3, w3, b3, g4, be4, w4, b4) = params

    def conv1d(x, w, b, stride):
        y = lax.conv_general_dilated(x, w, (stride,), "VALID",
                                     dimension_numbers=("NCH", "OIH", "NCH"),
                                     precision=lax.Precision.HIGHEST)
        return y + b[None, :, None]

    def bn(x, g, be):
        mean = x.mean(axis=(0, 2), keepdims=True)
        var = ((x - mean) ** 2).mean(axis=(0, 2), keepdims=True)
        return (x - mean) / jnp.sqrt(var + EPS) * g[None, :, None] + be[None, :, None]

    x = bn(jax.nn.relu(conv1d(x_ncl, w1, b1, 8)), g2, be2)
    x = bn(jax.nn.relu(conv1d(x, w2, b2, 5)), g3, be3)
    x = bn(jax.nn.relu(conv1d(x, w3, b3, 3)), g4, be4)
    x = bn(jax.nn.relu(conv1d(x, w4, b4, 2)), g4, be4)
    return jax.nn.relu(conv1d(x, w4, b4, 2))


# ----------------------------------- main --------------------------------------
if __name__ == "__main__":
    key = jax.random.PRNGKey(0)
    ks = jax.random.split(key, 16)

    def nrm(k, shape, s=0.05):
        return jax.random.normal(k, shape, jnp.float32) * s

    # Deterministic synthetic parameters (shapes from AE_encode_conv.__init__;
    # conv_5 / bn_5 are never used in forward so they are not instantiated).
    w1, b1 = nrm(ks[0], (64, 1, 64)), nrm(ks[1], (64,))
    g2, be2 = 1.0 + nrm(ks[2], (64,), 0.1), nrm(ks[3], (64,), 0.1)
    w2, b2 = nrm(ks[4], (128, 64, 7)), nrm(ks[5], (128,))
    g3, be3 = 1.0 + nrm(ks[6], (128,), 0.1), nrm(ks[7], (128,), 0.1)
    w3, b3 = nrm(ks[8], (128, 128, 5)), nrm(ks[9], (128,))
    g4, be4 = 1.0 + nrm(ks[10], (128,), 0.1), nrm(ks[11], (128,), 0.1)
    w4, b4 = nrm(ks[12], (128, 128, 3)), nrm(ks[13], (128,))
    params = (w1, b1, g2, be2, w2, b2, g3, be3, w3, b3, g4, be4, w4, b4)

    # Input (N, Cin=1, L): L=2048 -> conv chain T: 249 -> 49 -> 15 -> 7 -> 3
    x = jax.random.normal(ks[14], (4, 1, 2048), jnp.float32)

    out = jax.block_until_ready(jax.jit(net_forward)(x, params))
    ref = jax.block_until_ready(jax.jit(ref_forward)(x, params))

    assert out.shape == (4, 128, 3), out.shape
    err = float(jnp.max(jnp.abs(out - ref)))
    assert jnp.allclose(out, ref, atol=2e-3, rtol=2e-3), err
    print("KERNEL_OK")
</pallas_src>

<mosaic_0001>
module attributes {stable_mosaic.version = 11 : i64} {
  func.func @_conv_relu_stats_kernel(%arg0: i32, %arg1: memref<256x128xf32, #tpu.memory_space<vmem>>, %arg2: memref<128x128xf32, #tpu.memory_space<vmem>>, %arg3: memref<1x128xf32, #tpu.memory_space<vmem>>, %arg4: memref<256x128xf32, #tpu.memory_space<vmem>>, %arg5: memref<1x1x128xf32, #tpu.memory_space<vmem>>, %arg6: memref<1x1x128xf32, #tpu.memory_space<vmem>>) attributes {dimension_semantics = [#tpu.dimension_semantics<parallel>], iteration_bounds = array<i64: 4>, scalar_prefetch = 0 : i64, scratch_operands = 0 : i64, tpu.core_type = #tpu.core_type<tc>, window_params = [{transform_indices = @transform_0, window_bounds = array<i64: 256, 128>}, {pipeline_mode = #tpu.pipeline_mode<synchronous>, transform_indices = @transform_1, window_bounds = array<i64: 128, 128>}, {pipeline_mode = #tpu.pipeline_mode<synchronous>, transform_indices = @transform_2, window_bounds = array<i64: 1, 128>}, {transform_indices = @transform_3, window_bounds = array<i64: 256, 128>}, {transform_indices = @transform_4, window_bounds = array<i64: 1, 1, 128>}, {transform_indices = @transform_5, window_bounds = array<i64: 1, 1, 128>}]} {
    %c0 = arith.constant 0 : index
    %c0_0 = arith.constant 0 : index
    %0 = vector.load %arg1[%c0, %c0_0] : memref<256x128xf32, #tpu.memory_space<vmem>>, vector<256x128xf32>
    %c0_1 = arith.constant 0 : index
    %c0_2 = arith.constant 0 : index
    %1 = vector.load %arg2[%c0_1, %c0_2] : memref<128x128xf32, #tpu.memory_space<vmem>>, vector<128x128xf32>
    %cst = arith.constant dense<0.000000e+00> : vector<256x128xf32>
    %2 = tpu.matmul %0, %1, %cst {dimension_numbers = #tpu.dot_dimension_numbers<[1], [0], [0], [1], [0, 0, 1, 1], [], []>} : vector<256x128xf32>, vector<128x128xf32>, vector<256x128xf32> -> vector<256x128xf32>
    %c0_3 = arith.constant 0 : index
    %c0_4 = arith.constant 0 : index
    %3 = vector.load %arg3[%c0_3, %c0_4] : memref<1x128xf32, #tpu.memory_space<vmem>>, vector<1x128xf32>
    %4 = vector.broadcast %3 : vector<1x128xf32> to vector<256x128xf32>
    %5 = arith.addf %2, %4 : vector<256x128xf32>
    %cst_5 = arith.constant 0.000000e+00 : f32
    %6 = vector.broadcast %cst_5 : f32 to vector<256x128xf32>
    %7 = arith.maximumf %5, %6 : vector<256x128xf32>
    %c0_6 = arith.constant 0 : index
    %c0_7 = arith.constant 0 : index
    %8 = vector.load %arg4[%c0_6, %c0_7] : memref<256x128xf32, #tpu.memory_space<vmem>>, vector<256x128xf32>
    tpu.vector_store %arg4[%c0_6, %c0_7], %7 {strides = array<i32>} : memref<256x128xf32, #tpu.memory_space<vmem>>, vector<256x128xf32>,
    %c256_i32 = arith.constant 256 : i32
    %9 = arith.muli %arg0, %c256_i32 : i32
    %10 = tpu.iota {dimensions = array<i32: 0>} : vector<256x1xi32>
    %11 = vector.broadcast %9 : i32 to vector<256x1xi32>
    %12 = arith.addi %11, %10 : vector<256x1xi32>
    %c996_i32 = arith.constant 996 : i32
    %13 = vector.broadcast %c996_i32 : i32 to vector<256x1xi32>
    %14 = arith.cmpi slt, %12, %13 : vector<256x1xi32>
    %cst_8 = arith.constant 0.000000e+00 : f32
    %15 = vector.shape_cast %14 : vector<256x1xi1> to vector<256x1xi1>
    %16 = vector.broadcast %15 : vector<256x1xi1> to vector<256x128xi1>
    %17 = vector.broadcast %cst_8 : f32 to vector<256x128xf32>
    %18 = arith.select %16, %7, %17 : vector<256x128xi1>, vector<256x128xf32>
    %cst_9 = arith.constant dense<0.000000e+00> : vector<128xf32>
    %19 = vector.multi_reduction <add>, %18, %cst_9 [0] : vector<256x128xf32> to vector<128xf32>
    %20 = vector.shape_cast %19 : vector<128xf32> to vector<1x128xf32>
    %21 = vector.shape_cast %20 : vector<1x128xf32> to vector<1x1x128xf32>
    %c0_10 = arith.constant 0 : index
    %c0_11 = arith.constant 0 : index
    %c0_12 = arith.constant 0 : index
    %22 = vector.load %arg5[%c0_10, %c0_11, %c0_12] : memref<1x1x128xf32, #tpu.memory_space<vmem>>, vector<1x1x128xf32>
    tpu.vector_store %arg5[%c0_10, %c0_11, %c0_12], %21 {strides = array<i32>} : memref<1x1x128xf32, #tpu.memory_space<vmem>>, vector<1x1x128xf32>,
    %23 = arith.mulf %18, %18 : vector<256x128xf32>
    %cst_13 = arith.constant dense<0.000000e+00> : vector<128xf32>
    %24 = vector.multi_reduction <add>, %23, %cst_13 [0] : vector<256x128xf32> to vector<128xf32>
    %25 = vector.shape_cast %24 : vector<128xf32> to vector<1x128xf32>
    %26 = vector.shape_cast %25 : vector<1x128xf32> to vector<1x1x128xf32>
    %c0_14 = arith.constant 0 : index
    %c0_15 = arith.constant 0 : index
    %c0_16 = arith.constant 0 : index
    %27 = vector.load %arg6[%c0_14, %c0_15, %c0_16] : memref<1x1x128xf32, #tpu.memory_space<vmem>>, vector<1x1x128xf32>
    tpu.vector_store %arg6[%c0_14, %c0_15, %c0_16], %26 {strides = array<i32>} : memref<1x1x128xf32, #tpu.memory_space<vmem>>, vector<1x1x128xf32>,
    return
  }
  func.func @transform_0(%arg0: i32) -> (i32, i32) {
    %c0_i32 = arith.constant 0 : i32
    %c0_i32_0 = arith.constant 0 : i32
    return %arg0, %c0_i32 : i32, i32
  }
  func.func @transform_1(%arg0: i32) -> (i32, i32) {
    %c0_i32 = arith.constant 0 : i32
    %c0_i32_0 = arith.constant 0 : i32
    %c0_i32_1 = arith.constant 0 : i32
    return %c0_i32, %c0_i32_0 : i32, i32
  }
  func.func @transform_2(%arg0: i32) -> (i32, i32) {
    %c0_i32 = arith.constant 0 : i32
    %c0_i32_0 = arith.constant 0 : i32
    %c0_i32_1 = arith.constant 0 : i32
    return %c0_i32, %c0_i32_0 : i32, i32
  }
  func.func @transform_3(%arg0: i32) -> (i32, i32) {
    %c0_i32 = arith.constant 0 : i32
    %c0_i32_0 = arith.constant 0 : i32
    return %arg0, %c0_i32 : i32, i32
  }
  func.func @transform_4(%arg0: i32) -> (i32, i32, i32) {
    %c0_i32 = arith.constant 0 : i32
    %c0_i32_0 = arith.constant 0 : i32
    %c0_i32_1 = arith.constant 0 : i32
    return %arg0, %c0_i32, %c0_i32_0 : i32, i32, i32
  }
  func.func @transform_5(%arg0: i32) -> (i32, i32, i32) {
    %c0_i32 = arith.constant 0 : i32
    %c0_i32_0 = arith.constant 0 : i32
    %c0_i32_1 = arith.constant 0 : i32
    return %arg0, %c0_i32, %c0_i32_0 : i32, i32, i32
  }
}

module attributes {stable_mosaic.version = 11 : i64} {
  func.func @_conv_relu_stats_kernel(%arg0: i32, %arg1: memref<200x896xf32, #tpu.memory_space<vmem>>, %arg2: memref<896x128xf32, #tpu.memory_space<vmem>>, %arg3: memref<1x128xf32, #tpu.memory_space<vmem>>, %arg4: memref<200x128xf32, #tpu.memory_space<vmem>>, %arg5: memref<1x1x128xf32, #tpu.memory_space<vmem>>, %arg6: memref<1x1x128xf32, #tpu.memory_space<vmem>>) attributes {dimension_semantics = [#tpu.dimension_semantics<parallel>], iteration_bounds = array<i64: 1>, scalar_prefetch = 0 : i64, scratch_operands = 0 : i64, tpu.core_type = #tpu.core_type<tc>, window_params = [{transform_indices = @transform_0, window_bounds = array<i64: 200, 896>}, {pipeline_mode = #tpu.pipeline_mode<synchronous>, transform_indices = @transform_1, window_bounds = array<i64: 896, 128>}, {pipeline_mode = #tpu.pipeline_mode<synchronous>, transform_indices = @transform_2, window_bounds = array<i64: 1, 128>}, {transform_indices = @transform_3, window_bounds = array<i64: 200, 128>}, {transform_indices = @transform_4, window_bounds = array<i64: 1, 1, 128>}, {transform_indices = @transform_5, window_bounds = array<i64: 1, 1, 128>}]} {
    %c0 = arith.constant 0 : index
    %c0_0 = arith.constant 0 : index
    %0 = vector.load %arg1[%c0, %c0_0] : memref<200x896xf32, #tpu.memory_space<vmem>>, vector<200x896xf32>
    %c0_1 = arith.constant 0 : index
    %c0_2 = arith.constant 0 : index
    %1 = vector.load %arg2[%c0_1, %c0_2] : memref<896x128xf32, #tpu.memory_space<vmem>>, vector<896x128xf32>
    %cst = arith.constant dense<0.000000e+00> : vector<200x128xf32>
    %2 = tpu.matmul %0, %1, %cst {dimension_numbers = #tpu.dot_dimension_numbers<[1], [0], [0], [1], [0, 0, 1, 1], [], []>} : vector<200x896xf32>, vector<896x128xf32>, vector<200x128xf32> -> vector<200x128xf32>
    %c0_3 = arith.constant 0 : index
    %c0_4 = arith.constant 0 : index
    %3 = vector.load %arg3[%c0_3, %c0_4] : memref<1x128xf32, #tpu.memory_space<vmem>>, vector<1x128xf32>
    %4 = vector.broadcast %3 : vector<1x128xf32> to vector<200x128xf32>
    %5 = arith.addf %2, %4 : vector<200x128xf32>
    %cst_5 = arith.constant 0.000000e+00 : f32
    %6 = vector.broadcast %cst_5 : f32 to vector<200x128xf32>
    %7 = arith.maximumf %5, %6 : vector<200x128xf32>
    %c0_6 = arith.constant 0 : index
    %c0_7 = arith.constant 0 : index
    %8 = vector.load %arg4[%c0_6, %c0_7] : memref<200x128xf32, #tpu.memory_space<vmem>>, vector<200x128xf32>
    tpu.vector_store %arg4[%c0_6, %c0_7], %7 {strides = array<i32>} : memref<200x128xf32, #tpu.memory_space<vmem>>, vector<200x128xf32>,
    %c200_i32 = arith.constant 200 : i32
    %9 = arith.muli %arg0, %c200_i32 : i32
    %10 = tpu.iota {dimensions = array<i32: 0>} : vector<200x1xi32>
    %11 = vector.broadcast %9 : i32 to vector<200x1xi32>
    %12 = arith.addi %11, %10 : vector<200x1xi32>
    %c196_i32 = arith.constant 196 : i32
    %13 = vector.broadcast %c196_i32 : i32 to vector<200x1xi32>
    %14 = arith.cmpi slt, %12, %13 : vector<200x1xi32>
    %cst_8 = arith.constant 0.000000e+00 : f32
    %15 = vector.shape_cast %14 : vector<200x1xi1> to vector<200x1xi1>
    %16 = vector.broadcast %15 : vector<200x1xi1> to vector<200x128xi1>
    %17 = vector.broadcast %cst_8 : f32 to vector<200x128xf32>
    %18 = arith.select %16, %7, %17 : vector<200x128xi1>, vector<200x128xf32>
    %cst_9 = arith.constant dense<0.000000e+00> : vector<128xf32>
    %19 = vector.multi_reduction <add>, %18, %cst_9 [0] : vector<200x128xf32> to vector<128xf32>
    %20 = vector.shape_cast %19 : vector<128xf32> to vector<1x128xf32>
    %21 = vector.shape_cast %20 : vector<1x128xf32> to vector<1x1x128xf32>
    %c0_10 = arith.constant 0 : index
    %c0_11 = arith.constant 0 : index
    %c0_12 = arith.constant 0 : index
    %22 = vector.load %arg5[%c0_10, %c0_11, %c0_12] : memref<1x1x128xf32, #tpu.memory_space<vmem>>, vector<1x1x128xf32>
    tpu.vector_store %arg5[%c0_10, %c0_11, %c0_12], %21 {strides = array<i32>} : memref<1x1x128xf32, #tpu.memory_space<vmem>>, vector<1x1x128xf32>,
    %23 = arith.mulf %18, %18 : vector<200x128xf32>
    %cst_13 = arith.constant dense<0.000000e+00> : vector<128xf32>
    %24 = vector.multi_reduction <add>, %23, %cst_13 [0] : vector<200x128xf32> to vector<128xf32>
    %25 = vector.shape_cast %24 : vector<128xf32> to vector<1x128xf32>
    %26 = vector.shape_cast %25 : vector<1x128xf32> to vector<1x1x128xf32>
    %c0_14 = arith.constant 0 : index
    %c0_15 = arith.constant 0 : index
    %c0_16 = arith.constant 0 : index
    %27 = vector.load %arg6[%c0_14, %c0_15, %c0_16] : memref<1x1x128xf32, #tpu.memory_space<vmem>>, vector<1x1x128xf32>
    tpu.vector_store %arg6[%c0_14, %c0_15, %c0_16], %26 {strides = array<i32>} : memref<1x1x128xf32, #tpu.memory_space<vmem>>, vector<1x1x128xf32>,
    return
  }
  func.func @transform_0(%arg0: i32) -> (i32, i32) {
    %c0_i32 = arith.constant 0 : i32
    %c0_i32_0 = arith.constant 0 : i32
    return %arg0, %c0_i32 : i32, i32
  }
  func.func @transform_1(%arg0: i32) -> (i32, i32) {
    %c0_i32 = arith.constant 0 : i32
    %c0_i32_0 = arith.constant 0 : i32
    %c0_i32_1 = arith.constant 0 : i32
    return %c0_i32, %c0_i32_0 : i32, i32
  }
  func.func @transform_2(%arg0: i32) -> (i32, i32) {
    %c0_i32 = arith.constant 0 : i32
    %c0_i32_0 = arith.constant 0 : i32
    %c0_i32_1 = arith.constant 0 : i32
    return %c0_i32, %c0_i32_0 : i32, i32
  }
  func.func @transform_3(%arg0: i32) -> (i32, i32) {
    %c0_i32 = arith.constant 0 : i32
    %c0_i32_0 = arith.constant 0 : i32
    return %arg0, %c0_i32 : i32, i32
  }
  func.func @transform_4(%arg0: i32) -> (i32, i32, i32) {
    %c0_i32 = arith.constant 0 : i32
    %c0_i32_0 = arith.constant 0 : i32
    %c0_i32_1 = arith.constant 0 : i32
    return %arg0, %c0_i32, %c0_i32_0 : i32, i32, i32
  }
  func.func @transform_5(%arg0: i32) -> (i32, i32, i32) {
    %c0_i32 = arith.constant 0 : i32
    %c0_i32_0 = arith.constant 0 : i32
    %c0_i32_1 = arith.constant 0 : i32
    return %arg0, %c0_i32, %c0_i32_0 : i32, i32, i32
  }
}

module attributes {stable_mosaic.version = 11 : i64} {
  func.func @_conv_relu_stats_kernel(%arg0: i32, %arg1: memref<64x640xf32, #tpu.memory_space<vmem>>, %arg2: memref<640x128xf32, #tpu.memory_space<vmem>>, %arg3: memref<1x128xf32, #tpu.memory_space<vmem>>, %arg4: memref<64x128xf32, #tpu.memory_space<vmem>>, %arg5: memref<1x1x128xf32, #tpu.memory_space<vmem>>, %arg6: memref<1x1x128xf32, #tpu.memory_space<vmem>>) attributes {dimension_semantics = [#tpu.dimension_semantics<parallel>], iteration_bounds = array<i64: 1>, scalar_prefetch = 0 : i64, scratch_operands = 0 : i64, tpu.core_type = #tpu.core_type<tc>, window_params = [{transform_indices = @transform_0, window_bounds = array<i64: 64, 640>}, {pipeline_mode = #tpu.pipeline_mode<synchronous>, transform_indices = @transform_1, window_bounds = array<i64: 640, 128>}, {pipeline_mode = #tpu.pipeline_mode<synchronous>, transform_indices = @transform_2, window_bounds = array<i64: 1, 128>}, {transform_indices = @transform_3, window_bounds = array<i64: 64, 128>}, {transform_indices = @transform_4, window_bounds = array<i64: 1, 1, 128>}, {transform_indices = @transform_5, window_bounds = array<i64: 1, 1, 128>}]} {
    %c0 = arith.constant 0 : index
    %c0_0 = arith.constant 0 : index
    %0 = vector.load %arg1[%c0, %c0_0] : memref<64x640xf32, #tpu.memory_space<vmem>>, vector<64x640xf32>
    %c0_1 = arith.constant 0 : index
    %c0_2 = arith.constant 0 : index
    %1 = vector.load %arg2[%c0_1, %c0_2] : memref<640x128xf32, #tpu.memory_space<vmem>>, vector<640x128xf32>
    %cst = arith.constant dense<0.000000e+00> : vector<64x128xf32>
    %2 = tpu.matmul %0, %1, %cst {dimension_numbers = #tpu.dot_dimension_numbers<[1], [0], [0], [1], [0, 0, 1, 1], [], []>} : vector<64x640xf32>, vector<640x128xf32>, vector<64x128xf32> -> vector<64x128xf32>
    %c0_3 = arith.constant 0 : index
    %c0_4 = arith.constant 0 : index
    %3 = vector.load %arg3[%c0_3, %c0_4] : memref<1x128xf32, #tpu.memory_space<vmem>>, vector<1x128xf32>
    %4 = vector.broadcast %3 : vector<1x128xf32> to vector<64x128xf32>
    %5 = arith.addf %2, %4 : vector<64x128xf32>
    %cst_5 = arith.constant 0.000000e+00 : f32
    %6 = vector.broadcast %cst_5 : f32 to vector<64x128xf32>
    %7 = arith.maximumf %5, %6 : vector<64x128xf32>
    %c0_6 = arith.constant 0 : index
    %c0_7 = arith.constant 0 : index
    %8 = vector.load %arg4[%c0_6, %c0_7] : memref<64x128xf32, #tpu.memory_space<vmem>>, vector<64x128xf32>
    tpu.vector_store %arg4[%c0_6, %c0_7], %7 {strides = array<i32>} : memref<64x128xf32, #tpu.memory_space<vmem>>, vector<64x128xf32>,
    %c64_i32 = arith.constant 64 : i32
    %9 = arith.muli %arg0, %c64_i32 : i32
    %10 = tpu.iota {dimensions = array<i32: 0>} : vector<64x1xi32>
    %11 = vector.broadcast %9 : i32 to vector<64x1xi32>
    %12 = arith.addi %11, %10 : vector<64x1xi32>
    %c60_i32 = arith.constant 60 : i32
    %13 = vector.broadcast %c60_i32 : i32 to vector<64x1xi32>
    %14 = arith.cmpi slt, %12, %13 : vector<64x1xi32>
    %cst_8 = arith.constant 0.000000e+00 : f32
    %15 = vector.shape_cast %14 : vector<64x1xi1> to vector<64x1xi1>
    %16 = vector.broadcast %15 : vector<64x1xi1> to vector<64x128xi1>
    %17 = vector.broadcast %cst_8 : f32 to vector<64x128xf32>
    %18 = arith.select %16, %7, %17 : vector<64x128xi1>, vector<64x128xf32>
    %cst_9 = arith.constant dense<0.000000e+00> : vector<128xf32>
    %19 = vector.multi_reduction <add>, %18, %cst_9 [0] : vector<64x128xf32> to vector<128xf32>
    %20 = vector.shape_cast %19 : vector<128xf32> to vector<1x128xf32>
    %21 = vector.shape_cast %20 : vector<1x128xf32> to vector<1x1x128xf32>
    %c0_10 = arith.constant 0 : index
    %c0_11 = arith.constant 0 : index
    %c0_12 = arith.constant 0 : index
    %22 = vector.load %arg5[%c0_10, %c0_11, %c0_12] : memref<1x1x128xf32, #tpu.memory_space<vmem>>, vector<1x1x128xf32>
    tpu.vector_store %arg5[%c0_10, %c0_11, %c0_12], %21 {strides = array<i32>} : memref<1x1x128xf32, #tpu.memory_space<vmem>>, vector<1x1x128xf32>,
    %23 = arith.mulf %18, %18 : vector<64x128xf32>
    %cst_13 = arith.constant dense<0.000000e+00> : vector<128xf32>
    %24 = vector.multi_reduction <add>, %23, %cst_13 [0] : vector<64x128xf32> to vector<128xf32>
    %25 = vector.shape_cast %24 : vector<128xf32> to vector<1x128xf32>
    %26 = vector.shape_cast %25 : vector<1x128xf32> to vector<1x1x128xf32>
    %c0_14 = arith.constant 0 : index
    %c0_15 = arith.constant 0 : index
    %c0_16 = arith.constant 0 : index
    %27 = vector.load %arg6[%c0_14, %c0_15, %c0_16] : memref<1x1x128xf32, #tpu.memory_space<vmem>>, vector<1x1x128xf32>
    tpu.vector_store %arg6[%c0_14, %c0_15, %c0_16], %26 {strides = array<i32>} : memref<1x1x128xf32, #tpu.memory_space<vmem>>, vector<1x1x128xf32>,
    return
  }
  func.func @transform_0(%arg0: i32) -> (i32, i32) {
    %c0_i32 = arith.constant 0 : i32
    %c0_i32_0 = arith.constant 0 : i32
    return %arg0, %c0_i32 : i32, i32
  }
  func.func @transform_1(%arg0: i32) -> (i32, i32) {
    %c0_i32 = arith.constant 0 : i32
    %c0_i32_0 = arith.constant 0 : i32
    %c0_i32_1 = arith.constant 0 : i32
    return %c0_i32, %c0_i32_0 : i32, i32
  }
  func.func @transform_2(%arg0: i32) -> (i32, i32) {
    %c0_i32 = arith.constant 0 : i32
    %c0_i32_0 = arith.constant 0 : i32
    %c0_i32_1 = arith.constant 0 : i32
    return %c0_i32, %c0_i32_0 : i32, i32
  }
  func.func @transform_3(%arg0: i32) -> (i32, i32) {
    %c0_i32 = arith.constant 0 : i32
    %c0_i32_0 = arith.constant 0 : i32
    return %arg0, %c0_i32 : i32, i32
  }
  func.func @transform_4(%arg0: i32) -> (i32, i32, i32) {
    %c0_i32 = arith.constant 0 : i32
    %c0_i32_0 = arith.constant 0 : i32
    %c0_i32_1 = arith.constant 0 : i32
    return %arg0, %c0_i32, %c0_i32_0 : i32, i32, i32
  }
  func.func @transform_5(%arg0: i32) -> (i32, i32, i32) {
    %c0_i32 = arith.constant 0 : i32
    %c0_i32_0 = arith.constant 0 : i32
    %c0_i32_1 = arith.constant 0 : i32
    return %arg0, %c0_i32, %c0_i32_0 : i32, i32, i32
  }
}

module attributes {stable_mosaic.version = 11 : i64} {
  func.func @_conv_relu_stats_kernel(%arg0: i32, %arg1: memref<32x384xf32, #tpu.memory_space<vmem>>, %arg2: memref<384x128xf32, #tpu.memory_space<vmem>>, %arg3: memref<1x128xf32, #tpu.memory_space<vmem>>, %arg4: memref<32x128xf32, #tpu.memory_space<vmem>>, %arg5: memref<1x1x128xf32, #tpu.memory_space<vmem>>, %arg6: memref<1x1x128xf32, #tpu.memory_space<vmem>>) attributes {dimension_semantics = [#tpu.dimension_semantics<parallel>], iteration_bounds = array<i64: 1>, scalar_prefetch = 0 : i64, scratch_operands = 0 : i64, tpu.core_type = #tpu.core_type<tc>, window_params = [{transform_indices = @transform_0, window_bounds = array<i64: 32, 384>}, {pipeline_mode = #tpu.pipeline_mode<synchronous>, transform_indices = @transform_1, window_bounds = array<i64: 384, 128>}, {pipeline_mode = #tpu.pipeline_mode<synchronous>, transform_indices = @transform_2, window_bounds = array<i64: 1, 128>}, {transform_indices = @transform_3, window_bounds = array<i64: 32, 128>}, {transform_indices = @transform_4, window_bounds = array<i64: 1, 1, 128>}, {transform_indices = @transform_5, window_bounds = array<i64: 1, 1, 128>}]} {
    %c0 = arith.constant 0 : index
    %c0_0 = arith.constant 0 : index
    %0 = vector.load %arg1[%c0, %c0_0] : memref<32x384xf32, #tpu.memory_space<vmem>>, vector<32x384xf32>
    %c0_1 = arith.constant 0 : index
    %c0_2 = arith.constant 0 : index
    %1 = vector.load %arg2[%c0_1, %c0_2] : memref<384x128xf32, #tpu.memory_space<vmem>>, vector<384x128xf32>
    %cst = arith.constant dense<0.000000e+00> : vector<32x128xf32>
    %2 = tpu.matmul %0, %1, %cst {dimension_numbers = #tpu.dot_dimension_numbers<[1], [0], [0], [1], [0, 0, 1, 1], [], []>} : vector<32x384xf32>, vector<384x128xf32>, vector<32x128xf32> -> vector<32x128xf32>
    %c0_3 = arith.constant 0 : index
    %c0_4 = arith.constant 0 : index
    %3 = vector.load %arg3[%c0_3, %c0_4] : memref<1x128xf32, #tpu.memory_space<vmem>>, vector<1x128xf32>
    %4 = vector.broadcast %3 : vector<1x128xf32> to vector<32x128xf32>
    %5 = arith.addf %2, %4 : vector<32x128xf32>
    %cst_5 = arith.constant 0.000000e+00 : f32
    %6 = vector.broadcast %cst_5 : f32 to vector<32x128xf32>
    %7 = arith.maximumf %5, %6 : vector<32x128xf32>
    %c0_6 = arith.constant 0 : index
    %c0_7 = arith.constant 0 : index
    %8 = vector.load %arg4[%c0_6, %c0_7] : memref<32x128xf32, #tpu.memory_space<vmem>>, vector<32x128xf32>
    tpu.vector_store %arg4[%c0_6, %c0_7], %7 {strides = array<i32>} : memref<32x128xf32, #tpu.memory_space<vmem>>, vector<32x128xf32>,
    %c32_i32 = arith.constant 32 : i32
    %9 = arith.muli %arg0, %c32_i32 : i32
    %10 = tpu.iota {dimensions = array<i32: 0>} : vector<32x1xi32>
    %11 = vector.broadcast %9 : i32 to vector<32x1xi32>
    %12 = arith.addi %11, %10 : vector<32x1xi32>
    %c28_i32 = arith.constant 28 : i32
    %13 = vector.broadcast %c28_i32 : i32 to vector<32x1xi32>
    %14 = arith.cmpi slt, %12, %13 : vector<32x1xi32>
    %cst_8 = arith.constant 0.000000e+00 : f32
    %15 = vector.shape_cast %14 : vector<32x1xi1> to vector<32x1xi1>
    %16 = vector.broadcast %15 : vector<32x1xi1> to vector<32x128xi1>
    %17 = vector.broadcast %cst_8 : f32 to vector<32x128xf32>
    %18 = arith.select %16, %7, %17 : vector<32x128xi1>, vector<32x128xf32>
    %cst_9 = arith.constant dense<0.000000e+00> : vector<128xf32>
    %19 = vector.multi_reduction <add>, %18, %cst_9 [0] : vector<32x128xf32> to vector<128xf32>
    %20 = vector.shape_cast %19 : vector<128xf32> to vector<1x128xf32>
    %21 = vector.shape_cast %20 : vector<1x128xf32> to vector<1x1x128xf32>
    %c0_10 = arith.constant 0 : index
    %c0_11 = arith.constant 0 : index
    %c0_12 = arith.constant 0 : index
    %22 = vector.load %arg5[%c0_10, %c0_11, %c0_12] : memref<1x1x128xf32, #tpu.memory_space<vmem>>, vector<1x1x128xf32>
    tpu.vector_store %arg5[%c0_10, %c0_11, %c0_12], %21 {strides = array<i32>} : memref<1x1x128xf32, #tpu.memory_space<vmem>>, vector<1x1x128xf32>,
    %23 = arith.mulf %18, %18 : vector<32x128xf32>
    %cst_13 = arith.constant dense<0.000000e+00> : vector<128xf32>
    %24 = vector.multi_reduction <add>, %23, %cst_13 [0] : vector<32x128xf32> to vector<128xf32>
    %25 = vector.shape_cast %24 : vector<128xf32> to vector<1x128xf32>
    %26 = vector.shape_cast %25 : vector<1x128xf32> to vector<1x1x128xf32>
    %c0_14 = arith.constant 0 : index
    %c0_15 = arith.constant 0 : index
    %c0_16 = arith.constant 0 : index
    %27 = vector.load %arg6[%c0_14, %c0_15, %c0_16] : memref<1x1x128xf32, #tpu.memory_space<vmem>>, vector<1x1x128xf32>
    tpu.vector_store %arg6[%c0_14, %c0_15, %c0_16], %26 {strides = array<i32>} : memref<1x1x128xf32, #tpu.memory_space<vmem>>, vector<1x1x128xf32>,
    return
  }
  func.func @transform_0(%arg0: i32) -> (i32, i32) {
    %c0_i32 = arith.constant 0 : i32
    %c0_i32_0 = arith.constant 0 : i32
    return %arg0, %c0_i32 : i32, i32
  }
  func.func @transform_1(%arg0: i32) -> (i32, i32) {
    %c0_i32 = arith.constant 0 : i32
    %c0_i32_0 = arith.constant 0 : i32
    %c0_i32_1 = arith.constant 0 : i32
    return %c0_i32, %c0_i32_0 : i32, i32
  }
  func.func @transform_2(%arg0: i32) -> (i32, i32) {
    %c0_i32 = arith.constant 0 : i32
    %c0_i32_0 = arith.constant 0 : i32
    %c0_i32_1 = arith.constant 0 : i32
    return %c0_i32, %c0_i32_0 : i32, i32
  }
  func.func @transform_3(%arg0: i32) -> (i32, i32) {
    %c0_i32 = arith.constant 0 : i32
    %c0_i32_0 = arith.constant 0 : i32
    return %arg0, %c0_i32 : i32, i32
  }
  func.func @transform_4(%arg0: i32) -> (i32, i32, i32) {
    %c0_i32 = arith.constant 0 : i32
    %c0_i32_0 = arith.constant 0 : i32
    %c0_i32_1 = arith.constant 0 : i32
    return %arg0, %c0_i32, %c0_i32_0 : i32, i32, i32
  }
  func.func @transform_5(%arg0: i32) -> (i32, i32, i32) {
    %c0_i32 = arith.constant 0 : i32
    %c0_i32_0 = arith.constant 0 : i32
    %c0_i32_1 = arith.constant 0 : i32
    return %arg0, %c0_i32, %c0_i32_0 : i32, i32, i32
  }
}

module attributes {stable_mosaic.version = 11 : i64} {
  func.func @_conv_relu_stats_kernel(%arg0: i32, %arg1: memref<16x384xf32, #tpu.memory_space<vmem>>, %arg2: memref<384x128xf32, #tpu.memory_space<vmem>>, %arg3: memref<1x128xf32, #tpu.memory_space<vmem>>, %arg4: memref<16x128xf32, #tpu.memory_space<vmem>>, %arg5: memref<1x1x128xf32, #tpu.memory_space<vmem>>, %arg6: memref<1x1x128xf32, #tpu.memory_space<vmem>>) attributes {dimension_semantics = [#tpu.dimension_semantics<parallel>], iteration_bounds = array<i64: 1>, scalar_prefetch = 0 : i64, scratch_operands = 0 : i64, tpu.core_type = #tpu.core_type<tc>, window_params = [{transform_indices = @transform_0, window_bounds = array<i64: 16, 384>}, {pipeline_mode = #tpu.pipeline_mode<synchronous>, transform_indices = @transform_1, window_bounds = array<i64: 384, 128>}, {pipeline_mode = #tpu.pipeline_mode<synchronous>, transform_indices = @transform_2, window_bounds = array<i64: 1, 128>}, {transform_indices = @transform_3, window_bounds = array<i64: 16, 128>}, {transform_indices = @transform_4, window_bounds = array<i64: 1, 1, 128>}, {transform_indices = @transform_5, window_bounds = array<i64: 1, 1, 128>}]} {
    %c0 = arith.constant 0 : index
    %c0_0 = arith.constant 0 : index
    %0 = vector.load %arg1[%c0, %c0_0] : memref<16x384xf32, #tpu.memory_space<vmem>>, vector<16x384xf32>
    %c0_1 = arith.constant 0 : index
    %c0_2 = arith.constant 0 : index
    %1 = vector.load %arg2[%c0_1, %c0_2] : memref<384x128xf32, #tpu.memory_space<vmem>>, vector<384x128xf32>
    %cst = arith.constant dense<0.000000e+00> : vector<16x128xf32>
    %2 = tpu.matmul %0, %1, %cst {dimension_numbers = #tpu.dot_dimension_numbers<[1], [0], [0], [1], [0, 0, 1, 1], [], []>} : vector<16x384xf32>, vector<384x128xf32>, vector<16x128xf32> -> vector<16x128xf32>
    %c0_3 = arith.constant 0 : index
    %c0_4 = arith.constant 0 : index
    %3 = vector.load %arg3[%c0_3, %c0_4] : memref<1x128xf32, #tpu.memory_space<vmem>>, vector<1x128xf32>
    %4 = vector.broadcast %3 : vector<1x128xf32> to vector<16x128xf32>
    %5 = arith.addf %2, %4 : vector<16x128xf32>
    %cst_5 = arith.constant 0.000000e+00 : f32
    %6 = vector.broadcast %cst_5 : f32 to vector<16x128xf32>
    %7 = arith.maximumf %5, %6 : vector<16x128xf32>
    %c0_6 = arith.constant 0 : index
    %c0_7 = arith.constant 0 : index
    %8 = vector.load %arg4[%c0_6, %c0_7] : memref<16x128xf32, #tpu.memory_space<vmem>>, vector<16x128xf32>
    tpu.vector_store %arg4[%c0_6, %c0_7], %7 {strides = array<i32>} : memref<16x128xf32, #tpu.memory_space<vmem>>, vector<16x128xf32>,
    %c16_i32 = arith.constant 16 : i32
    %9 = arith.muli %arg0, %c16_i32 : i32
    %10 = tpu.iota {dimensions = array<i32: 0>} : vector<16x1xi32>
    %11 = vector.broadcast %9 : i32 to vector<16x1xi32>
    %12 = arith.addi %11, %10 : vector<16x1xi32>
    %c12_i32 = arith.constant 12 : i32
    %13 = vector.broadcast %c12_i32 : i32 to vector<16x1xi32>
    %14 = arith.cmpi slt, %12, %13 : vector<16x1xi32>
    %cst_8 = arith.constant 0.000000e+00 : f32
    %15 = vector.shape_cast %14 : vector<16x1xi1> to vector<16x1xi1>
    %16 = vector.broadcast %15 : vector<16x1xi1> to vector<16x128xi1>
    %17 = vector.broadcast %cst_8 : f32 to vector<16x128xf32>
    %18 = arith.select %16, %7, %17 : vector<16x128xi1>, vector<16x128xf32>
    %cst_9 = arith.constant dense<0.000000e+00> : vector<128xf32>
    %19 = vector.multi_reduction <add>, %18, %cst_9 [0] : vector<16x128xf32> to vector<128xf32>
    %20 = vector.shape_cast %19 : vector<128xf32> to vector<1x128xf32>
    %21 = vector.shape_cast %20 : vector<1x128xf32> to vector<1x1x128xf32>
    %c0_10 = arith.constant 0 : index
    %c0_11 = arith.constant 0 : index
    %c0_12 = arith.constant 0 : index
    %22 = vector.load %arg5[%c0_10, %c0_11, %c0_12] : memref<1x1x128xf32, #tpu.memory_space<vmem>>, vector<1x1x128xf32>
    tpu.vector_store %arg5[%c0_10, %c0_11, %c0_12], %21 {strides = array<i32>} : memref<1x1x128xf32, #tpu.memory_space<vmem>>, vector<1x1x128xf32>,
    %23 = arith.mulf %18, %18 : vector<16x128xf32>
    %cst_13 = arith.constant dense<0.000000e+00> : vector<128xf32>
    %24 = vector.multi_reduction <add>, %23, %cst_13 [0] : vector<16x128xf32> to vector<128xf32>
    %25 = vector.shape_cast %24 : vector<128xf32> to vector<1x128xf32>
    %26 = vector.shape_cast %25 : vector<1x128xf32> to vector<1x1x128xf32>
    %c0_14 = arith.constant 0 : index
    %c0_15 = arith.constant 0 : index
    %c0_16 = arith.constant 0 : index
    %27 = vector.load %arg6[%c0_14, %c0_15, %c0_16] : memref<1x1x128xf32, #tpu.memory_space<vmem>>, vector<1x1x128xf32>
    tpu.vector_store %arg6[%c0_14, %c0_15, %c0_16], %26 {strides = array<i32>} : memref<1x1x128xf32, #tpu.memory_space<vmem>>, vector<1x1x128xf32>,
    return
  }
  func.func @transform_0(%arg0: i32) -> (i32, i32) {
    %c0_i32 = arith.constant 0 : i32
    %c0_i32_0 = arith.constant 0 : i32
    return %arg0, %c0_i32 : i32, i32
  }
  func.func @transform_1(%arg0: i32) -> (i32, i32) {
    %c0_i32 = arith.constant 0 : i32
    %c0_i32_0 = arith.constant 0 : i32
    %c0_i32_1 = arith.constant 0 : i32
    return %c0_i32, %c0_i32_0 : i32, i32
  }
  func.func @transform_2(%arg0: i32) -> (i32, i32) {
    %c0_i32 = arith.constant 0 : i32
    %c0_i32_0 = arith.constant 0 : i32
    %c0_i32_1 = arith.constant 0 : i32
    return %c0_i32, %c0_i32_0 : i32, i32
  }
  func.func @transform_3(%arg0: i32) -> (i32, i32) {
    %c0_i32 = arith.constant 0 : i32
    %c0_i32_0 = arith.constant 0 : i32
    return %arg0, %c0_i32 : i32, i32
  }
  func.func @transform_4(%arg0: i32) -> (i32, i32, i32) {
    %c0_i32 = arith.constant 0 : i32
    %c0_i32_0 = arith.constant 0 : i32
    %c0_i32_1 = arith.constant 0 : i32
    return %arg0, %c0_i32, %c0_i32_0 : i32, i32, i32
  }
  func.func @transform_5(%arg0: i32) -> (i32, i32, i32) {
    %c0_i32 = arith.constant 0 : i32
    %c0_i32_0 = arith.constant 0 : i32
    %c0_i32_1 = arith.constant 0 : i32
    return %arg0, %c0_i32, %c0_i32_0 : i32, i32, i32
  }
}

</mosaic_0001>

<llo_original>
// kernel: net_forward.5
$region0: #{net_forward.5}
  #allocation0 [shape = 'u32[]', space=smem, size = 0x4, offset = 0x4, fixed_abs, tag = 'smem constant byte address 0x4 - core index']
  #allocation1 [shape = 'u32[144,128]{1,0:T(1,128)}', space=vmem, size = 0x12000, scoped, tag = 'internal scratch']
  %s0 = inlined_call_operand.vmem [shape: f32[1024,128], index: 0, kind: input, shape index: {}]
  %s1 = inlined_call_operand.vmem [shape: f32[128,128], index: 1, kind: input, shape index: {}]
  %s2 = inlined_call_operand.vmem [shape: f32[1,128], index: 2, kind: input, shape index: {}]
  %s3 = inlined_call_operand.vmem [shape: f32[1024,128], index: 3, kind: output, shape index: {0}]
  %s4 = inlined_call_operand.vmem [shape: f32[4,1,128], index: 4, kind: output, shape index: {1}]
  %s5 = inlined_call_operand.vmem [shape: f32[4,1,128], index: 5, kind: output, shape index: {2}]
  %6 = xla_tuple %s3, %s4, %s5
  %s7 = sld [smem:[#allocation0]]
  $region61: #{net_forward.5} parent=0
    _
  %s9 = ssub.s32 1, %s7
  %s10 = scalar_select 0, %s9, %s7
  loop: start=0, step=1, limit=6
  $region2: #{net_forward.5} parent=0 // loop_pre_header
    _
  $region3: #{net_forward.5} parent=0 // loop_header
    %s12 = sphi 0, %s16
    %p13 = scmp.ge.s32.totalorder %s12, 6
    %s22 = sphi 0, %s24
    %s25 = sphi 0, %s22
    %s26 = sphi 0, %s25
    %s42 = sphi 0, %s26
    %s46 = sphi 0, %s46
    %s48 = sphi 0, %s46
    %s49 = sphi 0, %s48
    %s63 = sphi 0, %s49
    %s67 = sphi 0, %s67
    %s69 = sphi 0, %s67
    %s70 = sphi 0, %s69
    %s84 = sphi 0, %s70
    %s90 = sphi 0, %s92
    %s93 = sphi 0, %s90
    %s94 = sphi 0, %s93
    %s110 = sphi 0, %s94
    %s116 = sphi 0, %s118
    %s119 = sphi 0, %s116
    %s120 = sphi 0, %s119
    %s136 = sphi 0, %s120
    %s142 = sphi 0, %s144
    %s145 = sphi 0, %s142
    %s146 = sphi 0, %s145
    %s162 = sphi 0, %s146
  $region4: #{net_forward.5} parent=0 // loop_header_branch
    %15 = sbr.rel (%p13) target = $region8
  $region5: #{net_forward.5} parent=0 // loop_body
    %s17 = ssub.s32 %s12, 1
    %s18 = ssub.s32 %s12, 2
    %s19 = sadd.s32 %s12, 1
    %s20 = ssub.s32 %s12, %s19
    %p21 = scmp.eq.s32.totalorder %s20, 0
    %s23 = sadd.s32 %s22, 1
    %s24 = scalar_select %p21, %s22, %s23
    %p27 = pneg %p21
    %p28 = scmp.eq.s32.totalorder %s12, 3
    %p29 = por %p27, %p28
    %p30 = scmp.ne.s32.totalorder %s22, %s25
    %p31 = scmp.eq.s32.totalorder %s12, 0
    %p32 = por %p30, %p31
    %p33 = scmp.ne.s32.totalorder %s22, %s25
    %p34 = scmp.eq.s32.totalorder %s17, 3
    %p35 = por %p33, %p34
    %p36 = scmp.ne.s32.totalorder %s25, %s26
    %p37 = scmp.eq.s32.totalorder %s17, 0
    %p38 = por %p36, %p37
    %p39 = scmp.ne.s32.totalorder %s25, %s26
    %p40 = scmp.eq.s32.totalorder %s18, 3
    %p41 = por %p39, %p40
    %p43 = scmp.ne.s32.totalorder %s26, %s42
    %p44 = scmp.eq.s32.totalorder %s18, 0
    %p45 = por %p43, %p44
    %s47 = sadd.s32 %s46, 1
    %p50 = scmp.eq.s32.totalorder %s12, 3
    %p51 = scmp.ne.s32.totalorder %s46, %s48
    %p52 = scmp.eq.s32.totalorder %s12, 0
    %p53 = por %p51, %p52
    %p54 = scmp.ne.s32.totalorder %s46, %s48
    %p55 = scmp.eq.s32.totalorder %s17, 3
    %p56 = por %p54, %p55
    %p57 = scmp.ne.s32.totalorder %s48, %s49
    %p58 = scmp.eq.s32.totalorder %s17, 0
    %p59 = por %p57, %p58
    %p60 = scmp.ne.s32.totalorder %s48, %s49
    %p61 = scmp.eq.s32.totalorder %s18, 3
    %p62 = por %p60, %p61
    %p64 = scmp.ne.s32.totalorder %s49, %s63
    %p65 = scmp.eq.s32.totalorder %s18, 0
    %p66 = por %p64, %p65
    %s68 = sadd.s32 %s67, 1
    %p71 = scmp.eq.s32.totalorder %s12, 3
    %p72 = scmp.ne.s32.totalorder %s67, %s69
    %p73 = scmp.eq.s32.totalorder %s12, 0
    %p74 = por %p72, %p73
    %p75 = scmp.ne.s32.totalorder %s67, %s69
    %p76 = scmp.eq.s32.totalorder %s17, 3
    %p77 = por %p75, %p76
    %p78 = scmp.ne.s32.totalorder %s69, %s70
    %p79 = scmp.eq.s32.totalorder %s17, 0
    %p80 = por %p78, %p79
    %p81 = scmp.ne.s32.totalorder %s69, %s70
    %p82 = scmp.eq.s32.totalorder %s18, 3
    %p83 = por %p81, %p82
    %p85 = scmp.ne.s32.totalorder %s70, %s84
    %p86 = scmp.eq.s32.totalorder %s18, 0
    %p87 = por %p85, %p86
    %s88 = ssub.s32 %s12, %s19
    %p89 = scmp.eq.s32.totalorder %s88, 0
    %s91 = sadd.s32 %s90, 1
    %s92 = scalar_select %p89, %s90, %s91
    %p95 = pneg %p89
    %p96 = scmp.eq.s32.totalorder %s12, 3
    %p97 = por %p95, %p96
    %p98 = scmp.ne.s32.totalorder %s90, %s93
    %p99 = scmp.eq.s32.totalorder %s12, 0
    %p100 = por %p98, %p99
    %p101 = scmp.ne.s32.totalorder %s90, %s93
    %p102 = scmp.eq.s32.totalorder %s17, 3
    %p103 = por %p101, %p102
    %p104 = scmp.ne.s32.totalorder %s93, %s94
    %p105 = scmp.eq.s32.totalorder %s17, 0
    %p106 = por %p104, %p105
    %p107 = scmp.ne.s32.totalorder %s93, %s94
    %p108 = scmp.eq.s32.totalorder %s18, 3
    %p109 = por %p107, %p108
    %p111 = scmp.ne.s32.totalorder %s94, %s110
    %p112 = scmp.eq.s32.totalorder %s18, 0
    %p113 = por %p111, %p112
    %s114 = ssub.s32 %s12, %s19
    %p115 = scmp.eq.s32.totalorder %s114, 0
    %s117 = sadd.s32 %s116, 1
    %s118 = scalar_select %p115, %s116, %s117
    %p121 = pneg %p115
    %p122 = scmp.eq.s32.totalorder %s12, 3
    %p123 = por %p121, %p122
    %p124 = scmp.ne.s32.totalorder %s116, %s119
    %p125 = scmp.eq.s32.totalorder %s12, 0
    %p126 = por %p124, %p125
    %p127 = scmp.ne.s32.totalorder %s116, %s119
    %p128 = scmp.eq.s32.totalorder %s17, 3
    %p129 = por %p127, %p128
    %p130 = scmp.ne.s32.totalorder %s119, %s120
    %p131 = scmp.eq.s32.totalorder %s17, 0
    %p132 = por %p130, %p131
    %p133 = scmp.ne.s32.totalorder %s119, %s120
    %p134 = scmp.eq.s32.totalorder %s18, 3
    %p135 = por %p133, %p134
    %p137 = scmp.ne.s32.totalorder %s120, %s136
    %p138 = scmp.eq.s32.totalorder %s18, 0
    %p139 = por %p137, %p138
    %s140 = ssub.s32 %s12, %s19
    %p141 = scmp.eq.s32.totalorder %s140, 0
    %s143 = sadd.s32 %s142, 1
    %s144 = scalar_select %p141, %s142, %s143
    %p147 = pneg %p141
    %p148 = scmp.eq.s32.totalorder %s12, 3
    %p149 = por %p147, %p148
    %p150 = scmp.ne.s32.totalorder %s142, %s145
    %p151 = scmp.eq.s32.totalorder %s12, 0
    %p152 = por %p150, %p151
    %p153 = scmp.ne.s32.totalorder %s142, %s145
    %p154 = scmp.eq.s32.totalorder %s17, 3
    %p155 = por %p153, %p154
    %p156 = scmp.ne.s32.totalorder %s145, %s146
    %p157 = scmp.eq.s32.totalorder %s17, 0
    %p158 = por %p156, %p157
    %p159 = scmp.ne.s32.totalorder %s145, %s146
    %p160 = scmp.eq.s32.totalorder %s18, 3
    %p161 = por %p159, %p160
    %p163 = scmp.ne.s32.totalorder %s146, %s162
    %p164 = scmp.eq.s32.totalorder %s18, 0
    %p165 = por %p163, %p164
    %p166 = scmp.le.s32.totalorder 1, %s12
    %p167 = scmp.lt.s32.totalorder %s12, 5
    %p168 = pnand %p166, %p167
    %p169 = pneg %p168
    // Predicated region
    $region9: #{net_forward.5} parent=5 // pred_check
      _
    $region10: #{net_forward.5} parent=5 // pred_check_branch
      %171 = sbr.rel (%p168) target = $region12
    $region11: #{net_forward.5} parent=5 // pred_region
      %s172 = ssub.s32 %s12, 1
      // Predicated region
      $region13: #{net_forward.5} parent=11 // pred_check
        %p173 = pneg %p59
      $region14: #{net_forward.5} parent=11 // pred_check_branch
        %175 = sbr.rel (%p173) target = $region16
      $region15: #{net_forward.5} parent=11 // pred_region
        _
      $region16: #{net_forward.5} parent=11 // pred_fallthru
        _
      // Predicated region
      $region17: #{net_forward.5} parent=11 // pred_check
        %p176 = pneg %p80
      $region18: #{net_forward.5} parent=11 // pred_check_branch
        %178 = sbr.rel (%p176) target = $region20
      $region19: #{net_forward.5} parent=11 // pred_region
        _
      $region20: #{net_forward.5} parent=11 // pred_fallthru
        _
    $region12: #{net_forward.5} parent=5 // pred_fallthru
      _
    %p179 = scmp.lt.s32.totalorder %s12, 4
    // Predicated region
    $region21: #{net_forward.5} parent=5 // pred_check
      %p180 = pneg %p179
    $region22: #{net_forward.5} parent=5 // pred_check_branch
      %182 = sbr.rel (%p180) target = $region24
    $region23: #{net_forward.5} parent=5 // pred_region
      // Predicated region
      $region25: #{net_forward.5} parent=23 // pred_check
        %p183 = pneg %p32
      $region26: #{net_forward.5} parent=23 // pred_check_branch
        %185 = sbr.rel (%p183) target = $region28
      $region27: #{net_forward.5} parent=23 // pred_region
        %s186 = smul.u32 32, %s12
        %p187 = scmp.lt.s32.totalorder %s186, 127
        %s188 = scalar_select %p187, %s186, 127
        %s189 = smul.addr %s188, 8
        %s190 = scalar_lea.vmem %s0, %s189
        %s191 = smul.u32 32, %s12
      $region28: #{net_forward.5} parent=23 // pred_fallthru
        _
    $region24: #{net_forward.5} parent=5 // pred_fallthru
      _
    %p192 = scmp.le.s32.totalorder 1, %s12
    %p193 = scmp.lt.s32.totalorder %s12, 5
    %p194 = pnand %p192, %p193
    %p195 = pneg %p194
    // Predicated region
    $region29: #{net_forward.5} parent=5 // pred_check
      _
    $region30: #{net_forward.5} parent=5 // pred_check_branch
      %197 = sbr.rel (%p194) target = $region32
    $region31: #{net_forward.5} parent=5 // pred_region
      %s198 = ssub.s32 %s12, 1
      %s199 = smul.u32 32, %s17
      %p200 = scmp.lt.s32.totalorder %s199, 127
      %s201 = scalar_select %p200, %s199, 127
      %s202 = smul.addr %s201, 8
      %s203 = scalar_lea.vmem %s0, %s202
      %p204 = pneg %p38
      %p205 = pneg %p35
      %p206 = pneg %p59
      %p207 = pneg %p56
      %p208 = pneg %p80
      %p209 = pneg %p77
      %p210 = pneg %p106
      %p211 = pneg %p103
      %s212 = smul.u32 32, %s17
      %p213 = scmp.lt.s32.totalorder %s212, 127
      %s214 = scalar_select %p213, %s212, 127
      %s215 = smul.addr %s214, 8
      %s216 = scalar_lea.vmem %s3, %s215
      %p217 = pneg %p132
      %p218 = pneg %p129
      %p219 = scmp.lt.s32.totalorder %s17, 3
      %s220 = scalar_select %p219, %s17, 3
      %s221 = scalar_lea.vmem %s4, %s220
      %p222 = pneg %p158
      %p223 = pneg %p155
      %p224 = scmp.lt.s32.totalorder %s17, 3
      %s225 = scalar_select %p224, %s17, 3
      %s226 = scalar_lea.vmem %s5, %s225
      %s227 = smul.u32 32, %s17
      %p228 = scmp.lt.s32.totalorder %s227, 127
      %s229 = scalar_select %p228, %s227, 127
      %s230 = smul.addr %s229, 8
      %s231 = scalar_lea.vmem %s0, %s230
      %s232 = smul.u32 32, %s17
      %s233 = smul.u32 32, %s17
      %p234 = scmp.lt.s32.totalorder %s233, 127
      %s235 = scalar_select %p234, %s233, 127
      %s236 = smul.addr %s235, 8
      %s237 = scalar_lea.vmem %s3, %s236
      %s238 = smul.u32 32, %s17
      %p239 = scmp.lt.s32.totalorder %s17, 3
      %s240 = scalar_select %p239, %s17, 3
      %s241 = scalar_lea.vmem %s4, %s240
      %p242 = scmp.lt.s32.totalorder %s17, 3
      %s243 = scalar_select %p242, %s17, 3
      %s244 = scalar_lea.vmem %s5, %s243
      %v245 = vld [vmem:[%s231] sm:$0xff]
      %v246 = vld [vmem:[%s231 + $0x8] sm:$0xff]
      %v247 = vld [vmem:[%s231 + $0x10] sm:$0xff]
      %v248 = vld [vmem:[%s231 + $0x18] sm:$0xff]
      %v249 = vld [vmem:[%s231 + $0x20] sm:$0xff]
      %v250 = vld [vmem:[%s231 + $0x28] sm:$0xff]
      %v251 = vld [vmem:[%s231 + $0x30] sm:$0xff]
      %v252 = vld [vmem:[%s231 + $0x38] sm:$0xff]
      %v253 = vld [vmem:[%s231 + $0x40] sm:$0xff]
      %v254 = vld [vmem:[%s231 + $0x48] sm:$0xff]
      %v255 = vld [vmem:[%s231 + $0x50] sm:$0xff]
      %v256 = vld [vmem:[%s231 + $0x58] sm:$0xff]
      %v257 = vld [vmem:[%s231 + $0x60] sm:$0xff]
      %v258 = vld [vmem:[%s231 + $0x68] sm:$0xff]
      %v259 = vld [vmem:[%s231 + $0x70] sm:$0xff]
      %v260 = vld [vmem:[%s231 + $0x78] sm:$0xff]
      %v261 = vld [vmem:[%s231 + $0x80] sm:$0xff]
      %v262 = vld [vmem:[%s231 + $0x88] sm:$0xff]
      %v263 = vld [vmem:[%s231 + $0x90] sm:$0xff]
      %v264 = vld [vmem:[%s231 + $0x98] sm:$0xff]
      %v265 = vld [vmem:[%s231 + $0xa0] sm:$0xff]
      %v266 = vld [vmem:[%s231 + $0xa8] sm:$0xff]
      %v267 = vld [vmem:[%s231 + $0xb0] sm:$0xff]
      %v268 = vld [vmem:[%s231 + $0xb8] sm:$0xff]
      %v269 = vld [vmem:[%s231 + $0xc0] sm:$0xff]
      %v270 = vld [vmem:[%s231 + $0xc8] sm:$0xff]
      %v271 = vld [vmem:[%s231 + $0xd0] sm:$0xff]
      %v272 = vld [vmem:[%s231 + $0xd8] sm:$0xff]
      %v273 = vld [vmem:[%s231 + $0xe0] sm:$0xff]
      %v274 = vld [vmem:[%s231 + $0xe8] sm:$0xff]
      %v275 = vld [vmem:[%s231 + $0xf0] sm:$0xff]
      %v276 = vld [vmem:[%s231 + $0xf8] sm:$0xff]
      %v277 = vld [vmem:[%s1] sm:$0xff]
      %v278 = vld [vmem:[%s1 + $0x8] sm:$0xff]
      %v279 = vld [vmem:[%s1 + $0x10] sm:$0xff]
      %v280 = vld [vmem:[%s1 + $0x18] sm:$0xff]
      %v281 = vld [vmem:[%s1 + $0x20] sm:$0xff]
      %v282 = vld [vmem:[%s1 + $0x28] sm:$0xff]
      %v283 = vld [vmem:[%s1 + $0x30] sm:$0xff]
      %v284 = vld [vmem:[%s1 + $0x38] sm:$0xff]
      %v285 = vld [vmem:[%s1 + $0x40] sm:$0xff]
      %v286 = vld [vmem:[%s1 + $0x48] sm:$0xff]
      %v287 = vld [vmem:[%s1 + $0x50] sm:$0xff]
      %v288 = vld [vmem:[%s1 + $0x58] sm:$0xff]
      %v289 = vld [vmem:[%s1 + $0x60] sm:$0xff]
      %v290 = vld [vmem:[%s1 + $0x68] sm:$0xff]
      %v291 = vld [vmem:[%s1 + $0x70] sm:$0xff]
      %v292 = vld [vmem:[%s1 + $0x78] sm:$0xff]
      %v293 = vld [vmem:[%s2] sm:$0x1]
      %v295 = vlaneseq
      %v296 = vshrl.u32 %v295, 7
      %v297 = vsub.s32 0, %v296
      %v298 = vrot.slane %v293, %v297
      %300 = vmatprep.subr.mxu0 0.0
      %301 = vmatpush1.msra.mxu0 %v292
      %302 = vmatprep.subr.mxu0 0.0
      %303 = vmatpush1.msra.mxu0 %v291
      %304 = vmatprep.subr.mxu0 0.0
      %305 = vmatpush1.msra.mxu0 %v290
      %306 = vmatprep.subr.mxu0 0.0
      %307 = vmatpush1.msra.mxu0 %v289
      %308 = vmatprep.subr.mxu0 0.0
      %309 = vmatpush1.msra.mxu0 %v288
      %310 = vmatprep.subr.mxu0 0.0
      %311 = vmatpush1.msra.mxu0 %v287
      %312 = vmatprep.subr.mxu0 0.0
      %313 = vmatpush1.msra.mxu0 %v286
      %314 = vmatprep.subr.mxu0 0.0
      %315 = vmatpush1.msra.mxu0 %v285
      %316 = vmatprep.subr.mxu0 0.0
      %317 = vmatpush1.msra.mxu0 %v284
      %318 = vmatprep.subr.mxu0 0.0
      %319 = vmatpush1.msra.mxu0 %v283
      %320 = vmatprep.subr.mxu0 0.0
      %321 = vmatpush1.msra.mxu0 %v282
      %322 = vmatprep.subr.mxu0 0.0
      %323 = vmatpush1.msra.mxu0 %v281
      %324 = vmatprep.subr.mxu0 0.0
      %325 = vmatpush1.msra.mxu0 %v280
      %326 = vmatprep.subr.mxu0 0.0
      %327 = vmatpush1.msra.mxu0 %v279
      %328 = vmatprep.subr.mxu0 0.0
      %329 = vmatpush1.msra.mxu0 %v278
      %330 = vmatprep.subr.mxu0 0.0
      %331 = vmatpush1.msra.mxu0 %v277
      %332 = vmatprep.subr.mxu0 0.0
      %333 = vmatpush2.msra.mxu0 0.0
      %334 = vmatprep.subr.mxu0 0.0
      %335 = vmatpush2.msra.mxu0 0.0
      %336 = vmatprep.subr.mxu0 0.0
      %337 = vmatpush2.msra.mxu0 0.0
      %338 = vmatprep.subr.mxu0 0.0
      %339 = vmatpush2.msra.mxu0 0.0
      %340 = vmatprep.subr.mxu0 0.0
      %341 = vmatpush2.msra.mxu0 0.0
      %342 = vmatprep.subr.mxu0 0.0
      %343 = vmatpush2.msra.mxu0 0.0
      %344 = vmatprep.subr.mxu0 0.0
      %345 = vmatpush2.msra.mxu0 0.0
      %346 = vmatprep.subr.mxu0 0.0
      %347 = vmatpush2.msra.mxu0 0.0
      %348 = vmatprep.subr.mxu0 0.0
      %349 = vmatpush2.msra.mxu0 0.0
      %350 = vmatprep.subr.mxu0 0.0
      %351 = vmatpush2.msra.mxu0 0.0
      %352 = vmatprep.subr.mxu0 0.0
      %353 = vmatpush2.msra.mxu0 0.0
      %354 = vmatprep.subr.mxu0 0.0
      %355 = vmatpush2.msra.mxu0 0.0
      %356 = vmatprep.subr.mxu0 0.0
      %357 = vmatpush2.msra.mxu0 0.0
      %358 = vmatprep.subr.mxu0 0.0
      %359 = vmatpush2.msra.mxu0 0.0
      %360 = vmatprep.subr.mxu0 0.0
      %361 = vmatpush2.msra.mxu0 0.0
      %362 = vmatprep.subr.mxu0 0.0
      %363 = vmatpush2.msra.mxu0 0.0
      %364 = vmatprep.mubr.f32.mxu0 0.0
      %365 = vmatmul.mubr.f32.gmra.mxu0 %v245
      %v366 = vpop.f32.mrf.mxu0
      %v367 = vadd.f32 %v298, %v366
      %v368 = vpop.f32.mrf.mxu0
      %369 = vmatprep.mubr.f32.mxu0 0.0
      %370 = vmatmul.mubr.f32.gmra.mxu0 %v246
      %v371 = vpop.f32.mrf.mxu0
      %v372 = vadd.f32 %v298, %v371
      %v373 = vpop.f32.mrf.mxu0
      %374 = vmatprep.mubr.f32.mxu0 0.0
      %375 = vmatmul.mubr.f32.gmra.mxu0 %v247
      %v376 = vpop.f32.mrf.mxu0
      %v377 = vadd.f32 %v298, %v376
      %v378 = vpop.f32.mrf.mxu0
      %379 = vmatprep.mubr.f32.mxu0 0.0
      %380 = vmatmul.mubr.f32.gmra.mxu0 %v248
      %v381 = vpop.f32.mrf.mxu0
      %v382 = vadd.f32 %v298, %v381
      %v383 = vpop.f32.mrf.mxu0
      %384 = vmatprep.mubr.f32.mxu0 0.0
      %385 = vmatmul.mubr.f32.gmra.mxu0 %v249
      %v386 = vpop.f32.mrf.mxu0
      %v387 = vadd.f32 %v298, %v386
      %v388 = vpop.f32.mrf.mxu0
      %389 = vmatprep.mubr.f32.mxu0 0.0
      %390 = vmatmul.mubr.f32.gmra.mxu0 %v250
      %v391 = vpop.f32.mrf.mxu0
      %v392 = vadd.f32 %v298, %v391
      %v393 = vpop.f32.mrf.mxu0
      %394 = vmatprep.mubr.f32.mxu0 0.0
      %395 = vmatmul.mubr.f32.gmra.mxu0 %v251
      %v396 = vpop.f32.mrf.mxu0
      %v397 = vadd.f32 %v298, %v396
      %v398 = vpop.f32.mrf.mxu0
      %399 = vmatprep.mubr.f32.mxu0 0.0
      %400 = vmatmul.mubr.f32.gmra.mxu0 %v252
      %v401 = vpop.f32.mrf.mxu0
      %v402 = vadd.f32 %v298, %v401
      %v403 = vpop.f32.mrf.mxu0
      %404 = vmatprep.mubr.f32.mxu0 0.0
      %405 = vmatmul.mubr.f32.gmra.mxu0 %v253
      %v406 = vpop.f32.mrf.mxu0
      %v407 = vadd.f32 %v298, %v406
      %v408 = vpop.f32.mrf.mxu0
      %409 = vmatprep.mubr.f32.mxu0 0.0
      %410 = vmatmul.mubr.f32.gmra.mxu0 %v254
      %v411 = vpop.f32.mrf.mxu0
      %v412 = vadd.f32 %v298, %v411
      %v413 = vpop.f32.mrf.mxu0
      %414 = vmatprep.mubr.f32.mxu0 0.0
      %415 = vmatmul.mubr.f32.gmra.mxu0 %v255
      %v416 = vpop.f32.mrf.mxu0
      %v417 = vadd.f32 %v298, %v416
      %v418 = vpop.f32.mrf.mxu0
      %419 = vmatprep.mubr.f32.mxu0 0.0
      %420 = vmatmul.mubr.f32.gmra.mxu0 %v256
      %v421 = vpop.f32.mrf.mxu0
      %v422 = vadd.f32 %v298, %v421
      %v423 = vpop.f32.mrf.mxu0
      %424 = vmatprep.mubr.f32.mxu0 0.0
      %425 = vmatmul.mubr.f32.gmra.mxu0 %v257
      %v426 = vpop.f32.mrf.mxu0
      %v427 = vadd.f32 %v298, %v426
      %v428 = vpop.f32.mrf.mxu0
      %429 = vmatprep.mubr.f32.mxu0 0.0
      %430 = vmatmul.mubr.f32.gmra.mxu0 %v258
      %v431 = vpop.f32.mrf.mxu0
      %v432 = vadd.f32 %v298, %v431
      %v433 = vpop.f32.mrf.mxu0
      %434 = vmatprep.mubr.f32.mxu0 0.0
      %435 = vmatmul.mubr.f32.gmra.mxu0 %v259
      %v436 = vpop.f32.mrf.mxu0
      %v437 = vadd.f32 %v298, %v436
      %v438 = vpop.f32.mrf.mxu0
      %439 = vmatprep.mubr.f32.mxu0 0.0
      %440 = vmatmul.mubr.f32.gmra.mxu0 %v260
      %v441 = vpop.f32.mrf.mxu0
      %v442 = vadd.f32 %v298, %v441
      %v443 = vpop.f32.mrf.mxu0
      %444 = vmatprep.mubr.f32.mxu0 0.0
      %445 = vmatmul.mubr.f32.gmra.mxu0 %v261
      %v446 = vpop.f32.mrf.mxu0
      %v447 = vadd.f32 %v298, %v446
      %v448 = vpop.f32.mrf.mxu0
      %449 = vmatprep.mubr.f32.mxu0 0.0
      %450 = vmatmul.mubr.f32.gmra.mxu0 %v262
      %v451 = vpop.f32.mrf.mxu0
      %v452 = vadd.f32 %v298, %v451
      %v453 = vpop.f32.mrf.mxu0
      %454 = vmatprep.mubr.f32.mxu0 0.0
      %455 = vmatmul.mubr.f32.gmra.mxu0 %v263
      %v456 = vpop.f32.mrf.mxu0
      %v457 = vadd.f32 %v298, %v456
      %v458 = vpop.f32.mrf.mxu0
      %459 = vmatprep.mubr.f32.mxu0 0.0
      %460 = vmatmul.mubr.f32.gmra.mxu0 %v264
      %v461 = vpop.f32.mrf.mxu0
      %v462 = vadd.f32 %v298, %v461
      %v463 = vpop.f32.mrf.mxu0
      %464 = vmatprep.mubr.f32.mxu0 0.0
      %465 = vmatmul.mubr.f32.gmra.mxu0 %v265
      %v466 = vpop.f32.mrf.mxu0
      %v467 = vadd.f32 %v298, %v466
      %v468 = vpop.f32.mrf.mxu0
      %469 = vmatprep.mubr.f32.mxu0 0.0
      %470 = vmatmul.mubr.f32.gmra.mxu0 %v266
      %v471 = vpop.f32.mrf.mxu0
      %v472 = vadd.f32 %v298, %v471
      %v473 = vpop.f32.mrf.mxu0
      %474 = vmatprep.mubr.f32.mxu0 0.0
      %475 = vmatmul.mubr.f32.gmra.mxu0 %v267
      %v476 = vpop.f32.mrf.mxu0
      %v477 = vadd.f32 %v298, %v476
      %v478 = vpop.f32.mrf.mxu0
      %479 = vmatprep.mubr.f32.mxu0 0.0
      %480 = vmatmul.mubr.f32.gmra.mxu0 %v268
      %v481 = vpop.f32.mrf.mxu0
      %v482 = vadd.f32 %v298, %v481
      %v483 = vpop.f32.mrf.mxu0
      %484 = vmatprep.mubr.f32.mxu0 0.0
      %485 = vmatmul.mubr.f32.gmra.mxu0 %v269
      %v486 = vpop.f32.mrf.mxu0
      %v487 = vadd.f32 %v298, %v486
      %v488 = vpop.f32.mrf.mxu0
      %489 = vmatprep.mubr.f32.mxu0 0.0
      %490 = vmatmul.mubr.f32.gmra.mxu0 %v270
      %v491 = vpop.f32.mrf.mxu0
      %v492 = vadd.f32 %v298, %v491
      %v493 = vpop.f32.mrf.mxu0
      %494 = vmatprep.mubr.f32.mxu0 0.0
      %495 = vmatmul.mubr.f32.gmra.mxu0 %v271
      %v496 = vpop.f32.mrf.mxu0
      %v497 = vadd.f32 %v298, %v496
      %v498 = vpop.f32.mrf.mxu0
      %499 = vmatprep.mubr.f32.mxu0 0.0
      %500 = vmatmul.mubr.f32.gmra.mxu0 %v272
      %v501 = vpop.f32.mrf.mxu0
      %v502 = vadd.f32 %v298, %v501
      %v503 = vpop.f32.mrf.mxu0
      %504 = vmatprep.mubr.f32.mxu0 0.0
      %505 = vmatmul.mubr.f32.gmra.mxu0 %v273
      %v506 = vpop.f32.mrf.mxu0
      %v507 = vadd.f32 %v298, %v506
      %v508 = vpop.f32.mrf.mxu0
      %509 = vmatprep.mubr.f32.mxu0 0.0
      %510 = vmatmul.mubr.f32.gmra.mxu0 %v274
      %v511 = vpop.f32.mrf.mxu0
      %v512 = vadd.f32 %v298, %v511
      %v513 = vpop.f32.mrf.mxu0
      %514 = vmatprep.mubr.f32.mxu0 0.0
      %515 = vmatmul.mubr.f32.gmra.mxu0 %v275
      %v516 = vpop.f32.mrf.mxu0
      %v517 = vadd.f32 %v298, %v516
      %v518 = vpop.f32.mrf.mxu0
      %519 = vmatprep.mubr.f32.mxu0 0.0
      %520 = vmatmul.mubr.f32.gmra.mxu0 %v276
      %v521 = vpop.f32.mrf.mxu0
      %v522 = vadd.f32 %v298, %v521
      %v523 = vpop.f32.mrf.mxu0
      %524 = vdwg.mxu0
      %v525 = vmax.f32 %v367, 0.0
      %v526 = vmax.f32 %v372, 0.0
      %v527 = vmax.f32 %v377, 0.0
      %v528 = vmax.f32 %v382, 0.0
      %v529 = vmax.f32 %v387, 0.0
      %v530 = vmax.f32 %v392, 0.0
      %v531 = vmax.f32 %v397, 0.0
      %v532 = vmax.f32 %v402, 0.0
      %v533 = vmax.f32 %v407, 0.0
      %v534 = vmax.f32 %v412, 0.0
      %v535 = vmax.f32 %v417, 0.0
      %v536 = vmax.f32 %v422, 0.0
      %v537 = vmax.f32 %v427, 0.0
      %v538 = vmax.f32 %v432, 0.0
      %v539 = vmax.f32 %v437, 0.0
      %v540 = vmax.f32 %v442, 0.0
      %v541 = vmax.f32 %v447, 0.0
      %v542 = vmax.f32 %v452, 0.0
      %v543 = vmax.f32 %v457, 0.0
      %v544 = vmax.f32 %v462, 0.0
      %v545 = vmax.f32 %v467, 0.0
      %v546 = vmax.f32 %v472, 0.0
      %v547 = vmax.f32 %v477, 0.0
      %v548 = vmax.f32 %v482, 0.0
      %v549 = vmax.f32 %v487, 0.0
      %v550 = vmax.f32 %v492, 0.0
      %v551 = vmax.f32 %v497, 0.0
      %v552 = vmax.f32 %v502, 0.0
      %v553 = vmax.f32 %v507, 0.0
      %v554 = vmax.f32 %v512, 0.0
      %v555 = vmax.f32 %v517, 0.0
      %v556 = vmax.f32 %v522, 0.0
      %557 = vst [vmem:[%s237] sm:$0xff] %v525
      %558 = vst [vmem:[%s237 + $0x8] sm:$0xff] %v526
      %559 = vst [vmem:[%s237 + $0x10] sm:$0xff] %v527
      %560 = vst [vmem:[%s237 + $0x18] sm:$0xff] %v528
      %561 = vst [vmem:[%s237 + $0x20] sm:$0xff] %v529
      %562 = vst [vmem:[%s237 + $0x28] sm:$0xff] %v530
      %563 = vst [vmem:[%s237 + $0x30] sm:$0xff] %v531
      %564 = vst [vmem:[%s237 + $0x38] sm:$0xff] %v532
      %565 = vst [vmem:[%s237 + $0x40] sm:$0xff] %v533
      %566 = vst [vmem:[%s237 + $0x48] sm:$0xff] %v534
      %567 = vst [vmem:[%s237 + $0x50] sm:$0xff] %v535
      %568 = vst [vmem:[%s237 + $0x58] sm:$0xff] %v536
      %569 = vst [vmem:[%s237 + $0x60] sm:$0xff] %v537
      %570 = vst [vmem:[%s237 + $0x68] sm:$0xff] %v538
      %571 = vst [vmem:[%s237 + $0x70] sm:$0xff] %v539
      %572 = vst [vmem:[%s237 + $0x78] sm:$0xff] %v540
      %573 = vst [vmem:[%s237 + $0x80] sm:$0xff] %v541
      %574 = vst [vmem:[%s237 + $0x88] sm:$0xff] %v542
      %575 = vst [vmem:[%s237 + $0x90] sm:$0xff] %v543
      %576 = vst [vmem:[%s237 + $0x98] sm:$0xff] %v544
      %577 = vst [vmem:[%s237 + $0xa0] sm:$0xff] %v545
      %578 = vst [vmem:[%s237 + $0xa8] sm:$0xff] %v546
      %579 = vst [vmem:[%s237 + $0xb0] sm:$0xff] %v547
      %580 = vst [vmem:[%s237 + $0xb8] sm:$0xff] %v548
      %581 = vst [vmem:[%s237 + $0xc0] sm:$0xff] %v549
      %582 = vst [vmem:[%s237 + $0xc8] sm:$0xff] %v550
      %583 = vst [vmem:[%s237 + $0xd0] sm:$0xff] %v551
      %584 = vst [vmem:[%s237 + $0xd8] sm:$0xff] %v552
      %585 = vst [vmem:[%s237 + $0xe0] sm:$0xff] %v553
      %586 = vst [vmem:[%s237 + $0xe8] sm:$0xff] %v554
      %587 = vst [vmem:[%s237 + $0xf0] sm:$0xff] %v555
      %588 = vst [vmem:[%s237 + $0xf8] sm:$0xff] %v556
      %s589 = smul.u32 %s17, 256
      %v590 = vlaneseq
      %v591 = vshrl.u32 %v590, 7
      %v592 = vadd.s32 %v591, 8
      %v593 = vadd.s32 %v591, 16
      %v594 = vadd.s32 %v591, 24
      %v595 = vadd.s32 %v591, 32
      %v596 = vadd.s32 %v591, 40
      %v597 = vadd.s32 %v591, 48
      %v598 = vadd.s32 %v591, 56
      %v599 = vadd.s32 %v591, 64
      %v600 = vadd.s32 %v591, 72
      %v601 = vadd.s32 %v591, 80
      %v602 = vadd.s32 %v591, 88
      %v603 = vadd.s32 %v591, 96
      %v604 = vadd.s32 %v591, 104
      %v605 = vadd.s32 %v591, 112
      %v606 = vadd.s32 %v591, 120
      %v607 = vadd.s32 %v591, 128
      %v608 = vadd.s32 %v591, 136
      %v609 = vadd.s32 %v591, 144
      %v610 = vadd.s32 %v591, 152
      %v611 = vadd.s32 %v591, 160
      %v612 = vadd.s32 %v591, 168
      %v613 = vadd.s32 %v591, 176
      %v614 = vadd.s32 %v591, 184
      %v615 = vadd.s32 %v591, 192
      %v616 = vadd.s32 %v591, 200
      %v617 = vadd.s32 %v591, 208
      %v618 = vadd.s32 %v591, 216
      %v619 = vadd.s32 %v591, 224
      %v620 = vadd.s32 %v591, 232
      %v621 = vadd.s32 %v591, 240
      %v622 = vadd.s32 %v591, 248
      %v623 = vstv %s589
      %v624 = vadd.s32 %v623, %v591
      %v625 = vadd.s32 %v623, %v592
      %v626 = vadd.s32 %v623, %v593
      %v627 = vadd.s32 %v623, %v594
      %v628 = vadd.s32 %v623, %v595
      %v629 = vadd.s32 %v623, %v596
      %v630 = vadd.s32 %v623, %v597
      %v631 = vadd.s32 %v623, %v598
      %v632 = vadd.s32 %v623, %v599
      %v633 = vadd.s32 %v623, %v600
      %v634 = vadd.s32 %v623, %v601
      %v635 = vadd.s32 %v623, %v602
      %v636 = vadd.s32 %v623, %v603
      %v637 = vadd.s32 %v623, %v604
      %v638 = vadd.s32 %v623, %v605
      %v639 = vadd.s32 %v623, %v606
      %v640 = vadd.s32 %v623, %v607
      %v641 = vadd.s32 %v623, %v608
      %v642 = vadd.s32 %v623, %v609
      %v643 = vadd.s32 %v623, %v610
      %v644 = vadd.s32 %v623, %v611
      %v645 = vadd.s32 %v623, %v612
      %v646 = vadd.s32 %v623, %v613
      %v647 = vadd.s32 %v623, %v614
      %v648 = vadd.s32 %v623, %v615
      %v649 = vadd.s32 %v623, %v616
      %v650 = vadd.s32 %v623, %v617
      %v651 = vadd.s32 %v623, %v618
      %v652 = vadd.s32 %v623, %v619
      %v653 = vadd.s32 %v623, %v620
      %v654 = vadd.s32 %v623, %v621
      %v655 = vadd.s32 %v623, %v622
      %vm656 = vcmp.lt.s32.totalorder %v624, 996
      %vm657 = vcmp.lt.s32.totalorder %v625, 996
      %vm658 = vcmp.lt.s32.totalorder %v626, 996
      %vm659 = vcmp.lt.s32.totalorder %v627, 996
      %vm660 = vcmp.lt.s32.totalorder %v628, 996
      %vm661 = vcmp.lt.s32.totalorder %v629, 996
      %vm662 = vcmp.lt.s32.totalorder %v630, 996
      %vm663 = vcmp.lt.s32.totalorder %v631, 996
      %vm664 = vcmp.lt.s32.totalorder %v632, 996
      %vm665 = vcmp.lt.s32.totalorder %v633, 996
      %vm666 = vcmp.lt.s32.totalorder %v634, 996
      %vm667 = vcmp.lt.s32.totalorder %v635, 996
      %vm668 = vcmp.lt.s32.totalorder %v636, 996
      %vm669 = vcmp.lt.s32.totalorder %v637, 996
      %vm670 = vcmp.lt.s32.totalorder %v638, 996
      %vm671 = vcmp.lt.s32.totalorder %v639, 996
      %vm672 = vcmp.lt.s32.totalorder %v640, 996
      %vm673 = vcmp.lt.s32.totalorder %v641, 996
      %vm674 = vcmp.lt.s32.totalorder %v642, 996
      %vm675 = vcmp.lt.s32.totalorder %v643, 996
      %vm676 = vcmp.lt.s32.totalorder %v644, 996
      %vm677 = vcmp.lt.s32.totalorder %v645, 996
      %vm678 = vcmp.lt.s32.totalorder %v646, 996
      %vm679 = vcmp.lt.s32.totalorder %v647, 996
      %vm680 = vcmp.lt.s32.totalorder %v648, 996
      %vm681 = vcmp.lt.s32.totalorder %v649, 996
      %vm682 = vcmp.lt.s32.totalorder %v650, 996
      %vm683 = vcmp.lt.s32.totalorder %v651, 996
      %vm684 = vcmp.lt.s32.totalorder %v652, 996
      %vm685 = vcmp.lt.s32.totalorder %v653, 996
      %vm686 = vcmp.lt.s32.totalorder %v654, 996
      %vm687 = vcmp.lt.s32.totalorder %v655, 996
      %v688 = vsel %vm656, 1, 0
      %v689 = vsel %vm657, 1, 0
      %v690 = vsel %vm658, 1, 0
      %v691 = vsel %vm659, 1, 0
      %v692 = vsel %vm660, 1, 0
      %v693 = vsel %vm661, 1, 0
      %v694 = vsel %vm662, 1, 0
      %v695 = vsel %vm663, 1, 0
      %v696 = vsel %vm664, 1, 0
      %v697 = vsel %vm665, 1, 0
      %v698 = vsel %vm666, 1, 0
      %v699 = vsel %vm667, 1, 0
      %v700 = vsel %vm668, 1, 0
      %v701 = vsel %vm669, 1, 0
      %v702 = vsel %vm670, 1, 0
      %v703 = vsel %vm671, 1, 0
      %v704 = vsel %vm672, 1, 0
      %v705 = vsel %vm673, 1, 0
      %v706 = vsel %vm674, 1, 0
      %v707 = vsel %vm675, 1, 0
      %v708 = vsel %vm676, 1, 0
      %v709 = vsel %vm677, 1, 0
      %v710 = vsel %vm678, 1, 0
      %v711 = vsel %vm679, 1, 0
      %v712 = vsel %vm680, 1, 0
      %v713 = vsel %vm681, 1, 0
      %v714 = vsel %vm682, 1, 0
      %v715 = vsel %vm683, 1, 0
      %v716 = vsel %vm684, 1, 0
      %v717 = vsel %vm685, 1, 0
      %v718 = vsel %vm686, 1, 0
      %v719 = vsel %vm687, 1, 0
      %vm720 = vcmp.eq.s32.totalorder %v688, 1
      %vm721 = vcmp.eq.s32.totalorder %v689, 1
      %vm722 = vcmp.eq.s32.totalorder %v690, 1
      %vm723 = vcmp.eq.s32.totalorder %v691, 1
      %vm724 = vcmp.eq.s32.totalorder %v692, 1
      %vm725 = vcmp.eq.s32.totalorder %v693, 1
      %vm726 = vcmp.eq.s32.totalorder %v694, 1
      %vm727 = vcmp.eq.s32.totalorder %v695, 1
      %vm728 = vcmp.eq.s32.totalorder %v696, 1
      %vm729 = vcmp.eq.s32.totalorder %v697, 1
      %vm730 = vcmp.eq.s32.totalorder %v698, 1
      %vm731 = vcmp.eq.s32.totalorder %v699, 1
      %vm732 = vcmp.eq.s32.totalorder %v700, 1
      %vm733 = vcmp.eq.s32.totalorder %v701, 1
      %vm734 = vcmp.eq.s32.totalorder %v702, 1
      %vm735 = vcmp.eq.s32.totalorder %v703, 1
      %vm736 = vcmp.eq.s32.totalorder %v704, 1
      %vm737 = vcmp.eq.s32.totalorder %v705, 1
      %vm738 = vcmp.eq.s32.totalorder %v706, 1
      %vm739 = vcmp.eq.s32.totalorder %v707, 1
      %vm740 = vcmp.eq.s32.totalorder %v708, 1
      %vm741 = vcmp.eq.s32.totalorder %v709, 1
      %vm742 = vcmp.eq.s32.totalorder %v710, 1
      %vm743 = vcmp.eq.s32.totalorder %v711, 1
      %vm744 = vcmp.eq.s32.totalorder %v712, 1
      %vm745 = vcmp.eq.s32.totalorder %v713, 1
      %vm746 = vcmp.eq.s32.totalorder %v714, 1
      %vm747 = vcmp.eq.s32.totalorder %v715, 1
      %vm748 = vcmp.eq.s32.totalorder %v716, 1
      %vm749 = vcmp.eq.s32.totalorder %v717, 1
      %vm750 = vcmp.eq.s32.totalorder %v718, 1
      %vm751 = vcmp.eq.s32.totalorder %v719, 1
      %v752 = vsel %vm720, %v525, 0.0
      %v753 = vsel %vm721, %v526, 0.0
      %v754 = vsel %vm722, %v527, 0.0
      %v755 = vsel %vm723, %v528, 0.0
      %v756 = vsel %vm724, %v529, 0.0
      %v757 = vsel %vm725, %v530, 0.0
      %v758 = vsel %vm726, %v531, 0.0
      %v759 = vsel %vm727, %v532, 0.0
      %v760 = vsel %vm728, %v533, 0.0
      %v761 = vsel %vm729, %v534, 0.0
      %v762 = vsel %vm730, %v535, 0.0
      %v763 = vsel %vm731, %v536, 0.0
      %v764 = vsel %vm732, %v537, 0.0
      %v765 = vsel %vm733, %v538, 0.0
      %v766 = vsel %vm734, %v539, 0.0
      %v767 = vsel %vm735, %v540, 0.0
      %v768 = vsel %vm736, %v541, 0.0
      %v769 = vsel %vm737, %v542, 0.0
      %v770 = vsel %vm738, %v543, 0.0
      %v771 = vsel %vm739, %v544, 0.0
      %v772 = vsel %vm740, %v545, 0.0
      %v773 = vsel %vm741, %v546, 0.0
      %v774 = vsel %vm742, %v547, 0.0
      %v775 = vsel %vm743, %v548, 0.0
      %v776 = vsel %vm744, %v549, 0.0
      %v777 = vsel %vm745, %v550, 0.0
      %v778 = vsel %vm746, %v551, 0.0
      %v779 = vsel %vm747, %v552, 0.0
      %v780 = vsel %vm748, %v553, 0.0
      %v781 = vsel %vm749, %v554, 0.0
      %v782 = vsel %vm750, %v555, 0.0
      %v783 = vsel %vm751, %v556, 0.0
      %v784 = vadd.f32 %v752, %v753
      %v785 = vadd.f32 %v784, %v754
      %v786 = vadd.f32 %v785, %v755
      %v787 = vadd.f32 %v786, %v756
      %v788 = vadd.f32 %v787, %v757
      %v789 = vadd.f32 %v788, %v758
      %v790 = vadd.f32 %v789, %v759
      %v791 = vadd.f32 %v790, %v760
      %v792 = vadd.f32 %v791, %v761
      %v793 = vadd.f32 %v792, %v762
      %v794 = vadd.f32 %v793, %v763
      %v795 = vadd.f32 %v794, %v764
      %v796 = vadd.f32 %v795, %v765
      %v797 = vadd.f32 %v796, %v766
      %v798 = vadd.f32 %v797, %v767
      %v799 = vadd.f32 %v798, %v768
      %v800 = vadd.f32 %v799, %v769
      %v801 = vadd.f32 %v800, %v770
      %v802 = vadd.f32 %v801, %v771
      %v803 = vadd.f32 %v802, %v772
      %v804 = vadd.f32 %v803, %v773
      %v805 = vadd.f32 %v804, %v774
      %v806 = vadd.f32 %v805, %v775
      %v807 = vadd.f32 %v806, %v776
      %v808 = vadd.f32 %v807, %v777
      %v809 = vadd.f32 %v808, %v778
      %v810 = vadd.f32 %v809, %v779
      %v811 = vadd.f32 %v810, %v780
      %v812 = vadd.f32 %v811, %v781
      %v813 = vadd.f32 %v812, %v782
      %v814 = vadd.f32 %v813, %v783
      %v815 = vrot.slane %v814, 4
      %v816 = vadd.f32 %v814, %v815
      %v817 = vrot.slane %v816, 2
      %v818 = vadd.f32 %v816, %v817
      %v819 = vrot.slane %v818, 1
      %v820 = vadd.f32 %v818, %v819
      %821 = vst [vmem:[%s241] sm:$0x1] %v820
      %v822 = vmul.f32 %v752, %v752
      %v823 = vmul.f32 %v753, %v753
      %v824 = vmul.f32 %v754, %v754
      %v825 = vmul.f32 %v755, %v755
      %v826 = vmul.f32 %v756, %v756
      %v827 = vmul.f32 %v757, %v757
      %v828 = vmul.f32 %v758, %v758
      %v829 = vmul.f32 %v759, %v759
      %v830 = vmul.f32 %v760, %v760
      %v831 = vmul.f32 %v761, %v761
      %v832 = vmul.f32 %v762, %v762
      %v833 = vmul.f32 %v763, %v763
      %v834 = vmul.f32 %v764, %v764
      %v835 = vmul.f32 %v765, %v765
      %v836 = vmul.f32 %v766, %v766
      %v837 = vmul.f32 %v767, %v767
      %v838 = vmul.f32 %v768, %v768
      %v839 = vmul.f32 %v769, %v769
      %v840 = vmul.f32 %v770, %v770
      %v841 = vmul.f32 %v771, %v771
      %v842 = vmul.f32 %v772, %v772
      %v843 = vmul.f32 %v773, %v773
      %v844 = vmul.f32 %v774, %v774
      %v845 = vmul.f32 %v775, %v775
      %v846 = vmul.f32 %v776, %v776
      %v847 = vmul.f32 %v777, %v777
      %v848 = vmul.f32 %v778, %v778
      %v849 = vmul.f32 %v779, %v779
      %v850 = vmul.f32 %v780, %v780
      %v851 = vmul.f32 %v781, %v781
      %v852 = vmul.f32 %v782, %v782
      %v853 = vmul.f32 %v783, %v783
      %v854 = vadd.f32 %v822, %v823
      %v855 = vadd.f32 %v854, %v824
      %v856 = vadd.f32 %v855, %v825
      %v857 = vadd.f32 %v856, %v826
      %v858 = vadd.f32 %v857, %v827
      %v859 = vadd.f32 %v858, %v828
      %v860 = vadd.f32 %v859, %v829
      %v861 = vadd.f32 %v860, %v830
      %v862 = vadd.f32 %v861, %v831
      %v863 = vadd.f32 %v862, %v832
      %v864 = vadd.f32 %v863, %v833
      %v865 = vadd.f32 %v864, %v834
      %v866 = vadd.f32 %v865, %v835
      %v867 = vadd.f32 %v866, %v836
      %v868 = vadd.f32 %v867, %v837
      %v869 = vadd.f32 %v868, %v838
      %v870 = vadd.f32 %v869, %v839
      %v871 = vadd.f32 %v870, %v840
      %v872 = vadd.f32 %v871, %v841
      %v873 = vadd.f32 %v872, %v842
      %v874 = vadd.f32 %v873, %v843
      %v875 = vadd.f32 %v874, %v844
      %v876 = vadd.f32 %v875, %v845
      %v877 = vadd.f32 %v876, %v846
      %v878 = vadd.f32 %v877, %v847
      %v879 = vadd.f32 %v878, %v848
      %v880 = vadd.f32 %v879, %v849
      %v881 = vadd.f32 %v880, %v850
      %v882 = vadd.f32 %v881, %v851
      %v883 = vadd.f32 %v882, %v852
      %v884 = vadd.f32 %v883, %v853
      %v885 = vrot.slane %v884, 4
      %v886 = vadd.f32 %v884, %v885
      %v887 = vrot.slane %v886, 2
      %v888 = vadd.f32 %v886, %v887
      %v889 = vrot.slane %v888, 1
      %v890 = vadd.f32 %v888, %v889
      %891 = vst [vmem:[%s244] sm:$0x1] %v890
      %s892 = smul.u32 32, %s17
      %p893 = scmp.lt.s32.totalorder %s892, 127
      %s894 = scalar_select %p893, %s892, 127
      %s895 = smul.addr %s894, 8
      %s896 = scalar_lea.vmem %s3, %s895
      %p897 = scmp.lt.s32.totalorder %s17, 3
      %s898 = scalar_select %p897, %s17, 3
      %s899 = scalar_lea.vmem %s4, %s898
      %p900 = scmp.lt.s32.totalorder %s17, 3
      %s901 = scalar_select %p900, %s17, 3
      %s902 = scalar_lea.vmem %s5, %s901
      // Predicated region
      $region33: #{net_forward.5} parent=31 // pred_check
        %p903 = pneg %p103
      $region34: #{net_forward.5} parent=31 // pred_check_branch
        %905 = sbr.rel (%p903) target = $region36
      $region35: #{net_forward.5} parent=31 // pred_region
        %s906 = smul.u32 32, %s17
      $region36: #{net_forward.5} parent=31 // pred_fallthru
        _
      // Predicated region
      $region37: #{net_forward.5} parent=31 // pred_check
        %p907 = pneg %p129
      $region38: #{net_forward.5} parent=31 // pred_check_branch
        %909 = sbr.rel (%p907) target = $region40
      $region39: #{net_forward.5} parent=31 // pred_region
        _
      $region40: #{net_forward.5} parent=31 // pred_fallthru
        _
      // Predicated region
      $region41: #{net_forward.5} parent=31 // pred_check
        %p910 = pneg %p155
      $region42: #{net_forward.5} parent=31 // pred_check_branch
        %912 = sbr.rel (%p910) target = $region44
      $region43: #{net_forward.5} parent=31 // pred_region
        _
      $region44: #{net_forward.5} parent=31 // pred_fallthru
        _
    $region32: #{net_forward.5} parent=5 // pred_fallthru
      _
    %p913 = scmp.le.s32.totalorder 2, %s12
    // Predicated region
    $region45: #{net_forward.5} parent=5 // pred_check
      %p914 = pneg %p913
    $region46: #{net_forward.5} parent=5 // pred_check_branch
      %916 = sbr.rel (%p914) target = $region48
    $region47: #{net_forward.5} parent=5 // pred_region
      %s917 = ssub.s32 %s12, 2
      // Predicated region
      $region49: #{net_forward.5} parent=47 // pred_check
        %p918 = pneg %p109
      $region50: #{net_forward.5} parent=47 // pred_check_branch
        %920 = sbr.rel (%p918) target = $region52
      $region51: #{net_forward.5} parent=47 // pred_region
        %s921 = smul.u32 32, %s18
        %p922 = scmp.lt.s32.totalorder %s921, 127
        %s923 = scalar_select %p922, %s921, 127
        %s924 = smul.addr %s923, 8
        %s925 = scalar_lea.vmem %s3, %s924
      $region52: #{net_forward.5} parent=47 // pred_fallthru
        _
      // Predicated region
      $region53: #{net_forward.5} parent=47 // pred_check
        %p926 = pneg %p135
      $region54: #{net_forward.5} parent=47 // pred_check_branch
        %928 = sbr.rel (%p926) target = $region56
      $region55: #{net_forward.5} parent=47 // pred_region
        %p929 = scmp.lt.s32.totalorder %s18, 3
        %s930 = scalar_select %p929, %s18, 3
        %s931 = scalar_lea.vmem %s4, %s930
      $region56: #{net_forward.5} parent=47 // pred_fallthru
        _
      // Predicated region
      $region57: #{net_forward.5} parent=47 // pred_check
        %p932 = pneg %p161
      $region58: #{net_forward.5} parent=47 // pred_check_branch
        %934 = sbr.rel (%p932) target = $region60
      $region59: #{net_forward.5} parent=47 // pred_region
        %p935 = scmp.lt.s32.totalorder %s18, 3
        %s936 = scalar_select %p935, %s18, 3
        %s937 = scalar_lea.vmem %s5, %s936
      $region60: #{net_forward.5} parent=47 // pred_fallthru
        _
    $region48: #{net_forward.5} parent=5 // pred_fallthru
      _
  $region6: #{net_forward.5} parent=0 // loop_footer
    %s16 = sadd.s32 1, %s12
  $region7: #{net_forward.5} parent=0 // loop_footer_branch
    %11 = sbr.rel target = $region3
  $region8: #{net_forward.5} parent=0 // loop_exit
    _

// kernel: net_forward.6
$region0: #{net_forward.6}
  #allocation0 [shape = 'u32[]', space=smem, size = 0x4, offset = 0x4, fixed_abs, tag = 'smem constant byte address 0x4 - core index']
  #allocation1 [shape = 'u32[144,128]{1,0:T(1,128)}', space=vmem, size = 0x12000, scoped, tag = 'internal scratch']
  %s0 = inlined_call_operand.vmem [shape: f32[200,896], index: 0, kind: input, shape index: {}]
  %s1 = inlined_call_operand.vmem [shape: f32[896,128], index: 1, kind: input, shape index: {}]
  %s2 = inlined_call_operand.vmem [shape: f32[1,128], index: 2, kind: input, shape index: {}]
  %s3 = inlined_call_operand.vmem [shape: f32[200,128], index: 3, kind: output, shape index: {0}]
  %s4 = inlined_call_operand.vmem [shape: f32[1,1,128], index: 4, kind: output, shape index: {1}]
  %s5 = inlined_call_operand.vmem [shape: f32[1,1,128], index: 5, kind: output, shape index: {2}]
  %6 = xla_tuple %s3, %s4, %s5
  %s7 = sld [smem:[#allocation0]]
  $region38: #{net_forward.6} parent=0
    _
  %s9 = ssub.s32 1, %s7
  %s10 = scalar_select 0, %s9, %s7
  // Predicated region
  $region2: #{net_forward.6} parent=0 // pred_check
    _
  $region3: #{net_forward.6} parent=0 // pred_check_branch
    %12 = sbr.rel (0) target = $region5
  $region4: #{net_forward.6} parent=0 // pred_region
    _
  $region5: #{net_forward.6} parent=0 // pred_fallthru
    _
  // Predicated region
  $region6: #{net_forward.6} parent=0 // pred_check
    _
  $region7: #{net_forward.6} parent=0 // pred_check_branch
    %14 = sbr.rel (0) target = $region9
  $region8: #{net_forward.6} parent=0 // pred_region
    _
  $region9: #{net_forward.6} parent=0 // pred_fallthru
    _
  // Predicated region
  $region10: #{net_forward.6} parent=0 // pred_check
    _
  $region11: #{net_forward.6} parent=0 // pred_check_branch
    %16 = sbr.rel (0) target = $region13
  $region12: #{net_forward.6} parent=0 // pred_region
    _
  $region13: #{net_forward.6} parent=0 // pred_fallthru
    _
  %v17 = vld [vmem:[%s0] sm:$0xff]
  %v18 = vld [vmem:[%s0 + $0x8] sm:$0xff]
  %v19 = vld [vmem:[%s0 + $0x10] sm:$0xff]
  %v20 = vld [vmem:[%s0 + $0x18] sm:$0xff]
  %v21 = vld [vmem:[%s0 + $0x20] sm:$0xff]
  %v22 = vld [vmem:[%s0 + $0x28] sm:$0xff]
  %v23 = vld [vmem:[%s0 + $0x30] sm:$0xff]
  %v24 = vld [vmem:[%s0 + $0x38] sm:$0xff]
  %v25 = vld [vmem:[%s0 + $0x40] sm:$0xff]
  %v26 = vld [vmem:[%s0 + $0x48] sm:$0xff]
  %v27 = vld [vmem:[%s0 + $0x50] sm:$0xff]
  %v28 = vld [vmem:[%s0 + $0x58] sm:$0xff]
  %v29 = vld [vmem:[%s0 + $0x60] sm:$0xff]
  %v30 = vld [vmem:[%s0 + $0x68] sm:$0xff]
  %v31 = vld [vmem:[%s0 + $0x70] sm:$0xff]
  %v32 = vld [vmem:[%s0 + $0x78] sm:$0xff]
  %v33 = vld [vmem:[%s0 + $0x80] sm:$0xff]
  %v34 = vld [vmem:[%s0 + $0x88] sm:$0xff]
  %v35 = vld [vmem:[%s0 + $0x90] sm:$0xff]
  %v36 = vld [vmem:[%s0 + $0x98] sm:$0xff]
  %v37 = vld [vmem:[%s0 + $0xa0] sm:$0xff]
  %v38 = vld [vmem:[%s0 + $0xa8] sm:$0xff]
  %v39 = vld [vmem:[%s0 + $0xb0] sm:$0xff]
  %v40 = vld [vmem:[%s0 + $0xb8] sm:$0xff]
  %v41 = vld [vmem:[%s0 + $0xc0] sm:$0xff]
  %v42 = vld [vmem:[%s0 + $0xc8] sm:$0xff]
  %v43 = vld [vmem:[%s0 + $0xd0] sm:$0xff]
  %v44 = vld [vmem:[%s0 + $0xd8] sm:$0xff]
  %v45 = vld [vmem:[%s0 + $0xe0] sm:$0xff]
  %v46 = vld [vmem:[%s0 + $0xe8] sm:$0xff]
  %v47 = vld [vmem:[%s0 + $0xf0] sm:$0xff]
  %v48 = vld [vmem:[%s0 + $0xf8] sm:$0xff]
  %v49 = vld [vmem:[%s0 + $0x100] sm:$0xff]
  %v50 = vld [vmem:[%s0 + $0x108] sm:$0xff]
  %v51 = vld [vmem:[%s0 + $0x110] sm:$0xff]
  %v52 = vld [vmem:[%s0 + $0x118] sm:$0xff]
  %v53 = vld [vmem:[%s0 + $0x120] sm:$0xff]
  %v54 = vld [vmem:[%s0 + $0x128] sm:$0xff]
  %v55 = vld [vmem:[%s0 + $0x130] sm:$0xff]
  %v56 = vld [vmem:[%s0 + $0x138] sm:$0xff]
  %v57 = vld [vmem:[%s0 + $0x140] sm:$0xff]
  %v58 = vld [vmem:[%s0 + $0x148] sm:$0xff]
  %v59 = vld [vmem:[%s0 + $0x150] sm:$0xff]
  %v60 = vld [vmem:[%s0 + $0x158] sm:$0xff]
  %v61 = vld [vmem:[%s0 + $0x160] sm:$0xff]
  %v62 = vld [vmem:[%s0 + $0x168] sm:$0xff]
  %v63 = vld [vmem:[%s0 + $0x170] sm:$0xff]
  %v64 = vld [vmem:[%s0 + $0x178] sm:$0xff]
  %v65 = vld [vmem:[%s0 + $0x180] sm:$0xff]
  %v66 = vld [vmem:[%s0 + $0x188] sm:$0xff]
  %v67 = vld [vmem:[%s0 + $0x190] sm:$0xff]
  %v68 = vld [vmem:[%s0 + $0x198] sm:$0xff]
  %v69 = vld [vmem:[%s0 + $0x1a0] sm:$0xff]
  %v70 = vld [vmem:[%s0 + $0x1a8] sm:$0xff]
  %v71 = vld [vmem:[%s0 + $0x1b0] sm:$0xff]
  %v72 = vld [vmem:[%s0 + $0x1b8] sm:$0xff]
  %v73 = vld [vmem:[%s0 + $0x1c0] sm:$0xff]
  %v74 = vld [vmem:[%s0 + $0x1c8] sm:$0xff]
  %v75 = vld [vmem:[%s0 + $0x1d0] sm:$0xff]
  %v76 = vld [vmem:[%s0 + $0x1d8] sm:$0xff]
  %v77 = vld [vmem:[%s0 + $0x1e0] sm:$0xff]
  %v78 = vld [vmem:[%s0 + $0x1e8] sm:$0xff]
  %v79 = vld [vmem:[%s0 + $0x1f0] sm:$0xff]
  %v80 = vld [vmem:[%s0 + $0x1f8] sm:$0xff]
  %v81 = vld [vmem:[%s0 + $0x200] sm:$0xff]
  %v82 = vld [vmem:[%s0 + $0x208] sm:$0xff]
  %v83 = vld [vmem:[%s0 + $0x210] sm:$0xff]
  %v84 = vld [vmem:[%s0 + $0x218] sm:$0xff]
  %v85 = vld [vmem:[%s0 + $0x220] sm:$0xff]
  %v86 = vld [vmem:[%s0 + $0x228] sm:$0xff]
  %v87 = vld [vmem:[%s0 + $0x230] sm:$0xff]
  %v88 = vld [vmem:[%s0 + $0x238] sm:$0xff]
  %v89 = vld [vmem:[%s0 + $0x240] sm:$0xff]
  %v90 = vld [vmem:[%s0 + $0x248] sm:$0xff]
  %v91 = vld [vmem:[%s0 + $0x250] sm:$0xff]
  %v92 = vld [vmem:[%s0 + $0x258] sm:$0xff]
  %v93 = vld [vmem:[%s0 + $0x260] sm:$0xff]
  %v94 = vld [vmem:[%s0 + $0x268] sm:$0xff]
  %v95 = vld [vmem:[%s0 + $0x270] sm:$0xff]
  %v96 = vld [vmem:[%s0 + $0x278] sm:$0xff]
  %v97 = vld [vmem:[%s0 + $0x280] sm:$0xff]
  %v98 = vld [vmem:[%s0 + $0x288] sm:$0xff]
  %v99 = vld [vmem:[%s0 + $0x290] sm:$0xff]
  %v100 = vld [vmem:[%s0 + $0x298] sm:$0xff]
  %v101 = vld [vmem:[%s0 + $0x2a0] sm:$0xff]
  %v102 = vld [vmem:[%s0 + $0x2a8] sm:$0xff]
  %v103 = vld [vmem:[%s0 + $0x2b0] sm:$0xff]
  %v104 = vld [vmem:[%s0 + $0x2b8] sm:$0xff]
  %v105 = vld [vmem:[%s0 + $0x2c0] sm:$0xff]
  %v106 = vld [vmem:[%s0 + $0x2c8] sm:$0xff]
  %v107 = vld [vmem:[%s0 + $0x2d0] sm:$0xff]
  %v108 = vld [vmem:[%s0 + $0x2d8] sm:$0xff]
  %v109 = vld [vmem:[%s0 + $0x2e0] sm:$0xff]
  %v110 = vld [vmem:[%s0 + $0x2e8] sm:$0xff]
  %v111 = vld [vmem:[%s0 + $0x2f0] sm:$0xff]
  %v112 = vld [vmem:[%s0 + $0x2f8] sm:$0xff]
  %v113 = vld [vmem:[%s0 + $0x300] sm:$0xff]
  %v114 = vld [vmem:[%s0 + $0x308] sm:$0xff]
  %v115 = vld [vmem:[%s0 + $0x310] sm:$0xff]
  %v116 = vld [vmem:[%s0 + $0x318] sm:$0xff]
  %v117 = vld [vmem:[%s0 + $0x320] sm:$0xff]
  %v118 = vld [vmem:[%s0 + $0x328] sm:$0xff]
  %v119 = vld [vmem:[%s0 + $0x330] sm:$0xff]
  %v120 = vld [vmem:[%s0 + $0x338] sm:$0xff]
  %v121 = vld [vmem:[%s0 + $0x340] sm:$0xff]
  %v122 = vld [vmem:[%s0 + $0x348] sm:$0xff]
  %v123 = vld [vmem:[%s0 + $0x350] sm:$0xff]
  %v124 = vld [vmem:[%s0 + $0x358] sm:$0xff]
  %v125 = vld [vmem:[%s0 + $0x360] sm:$0xff]
  %v126 = vld [vmem:[%s0 + $0x368] sm:$0xff]
  %v127 = vld [vmem:[%s0 + $0x370] sm:$0xff]
  %v128 = vld [vmem:[%s0 + $0x378] sm:$0xff]
  %v129 = vld [vmem:[%s0 + $0x380] sm:$0xff]
  %v130 = vld [vmem:[%s0 + $0x388] sm:$0xff]
  %v131 = vld [vmem:[%s0 + $0x390] sm:$0xff]
  %v132 = vld [vmem:[%s0 + $0x398] sm:$0xff]
  %v133 = vld [vmem:[%s0 + $0x3a0] sm:$0xff]
  %v134 = vld [vmem:[%s0 + $0x3a8] sm:$0xff]
  %v135 = vld [vmem:[%s0 + $0x3b0] sm:$0xff]
  %v136 = vld [vmem:[%s0 + $0x3b8] sm:$0xff]
  %v137 = vld [vmem:[%s0 + $0x3c0] sm:$0xff]
  %v138 = vld [vmem:[%s0 + $0x3c8] sm:$0xff]
  %v139 = vld [vmem:[%s0 + $0x3d0] sm:$0xff]
  %v140 = vld [vmem:[%s0 + $0x3d8] sm:$0xff]
  %v141 = vld [vmem:[%s0 + $0x3e0] sm:$0xff]
  %v142 = vld [vmem:[%s0 + $0x3e8] sm:$0xff]
  %v143 = vld [vmem:[%s0 + $0x3f0] sm:$0xff]
  %v144 = vld [vmem:[%s0 + $0x3f8] sm:$0xff]
  %v145 = vld [vmem:[%s0 + $0x400] sm:$0xff]
  %v146 = vld [vmem:[%s0 + $0x408] sm:$0xff]
  %v147 = vld [vmem:[%s0 + $0x410] sm:$0xff]
  %v148 = vld [vmem:[%s0 + $0x418] sm:$0xff]
  %v149 = vld [vmem:[%s0 + $0x420] sm:$0xff]
  %v150 = vld [vmem:[%s0 + $0x428] sm:$0xff]
  %v151 = vld [vmem:[%s0 + $0x430] sm:$0xff]
  %v152 = vld [vmem:[%s0 + $0x438] sm:$0xff]
  %v153 = vld [vmem:[%s0 + $0x440] sm:$0xff]
  %v154 = vld [vmem:[%s0 + $0x448] sm:$0xff]
  %v155 = vld [vmem:[%s0 + $0x450] sm:$0xff]
  %v156 = vld [vmem:[%s0 + $0x458] sm:$0xff]
  %v157 = vld [vmem:[%s0 + $0x460] sm:$0xff]
  %v158 = vld [vmem:[%s0 + $0x468] sm:$0xff]
  %v159 = vld [vmem:[%s0 + $0x470] sm:$0xff]
  %v160 = vld [vmem:[%s0 + $0x478] sm:$0xff]
  %v161 = vld [vmem:[%s0 + $0x480] sm:$0xff]
  %v162 = vld [vmem:[%s0 + $0x488] sm:$0xff]
  %v163 = vld [vmem:[%s0 + $0x490] sm:$0xff]
  %v164 = vld [vmem:[%s0 + $0x498] sm:$0xff]
  %v165 = vld [vmem:[%s0 + $0x4a0] sm:$0xff]
  %v166 = vld [vmem:[%s0 + $0x4a8] sm:$0xff]
  %v167 = vld [vmem:[%s0 + $0x4b0] sm:$0xff]
  %v168 = vld [vmem:[%s0 + $0x4b8] sm:$0xff]
  %v169 = vld [vmem:[%s0 + $0x4c0] sm:$0xff]
  %v170 = vld [vmem:[%s0 + $0x4c8] sm:$0xff]
  %v171 = vld [vmem:[%s0 + $0x4d0] sm:$0xff]
  %v172 = vld [vmem:[%s0 + $0x4d8] sm:$0xff]
  %v173 = vld [vmem:[%s0 + $0x4e0] sm:$0xff]
  %v174 = vld [vmem:[%s0 + $0x4e8] sm:$0xff]
  %v175 = vld [vmem:[%s0 + $0x4f0] sm:$0xff]
  %v176 = vld [vmem:[%s0 + $0x4f8] sm:$0xff]
  %v177 = vld [vmem:[%s0 + $0x500] sm:$0xff]
  %v178 = vld [vmem:[%s0 + $0x508] sm:$0xff]
  %v179 = vld [vmem:[%s0 + $0x510] sm:$0xff]
  %v180 = vld [vmem:[%s0 + $0x518] sm:$0xff]
  %v181 = vld [vmem:[%s0 + $0x520] sm:$0xff]
  %v182 = vld [vmem:[%s0 + $0x528] sm:$0xff]
  %v183 = vld [vmem:[%s0 + $0x530] sm:$0xff]
  %v184 = vld [vmem:[%s0 + $0x538] sm:$0xff]
  %v185 = vld [vmem:[%s0 + $0x540] sm:$0xff]
  %v186 = vld [vmem:[%s0 + $0x548] sm:$0xff]
  %v187 = vld [vmem:[%s0 + $0x550] sm:$0xff]
  %v188 = vld [vmem:[%s0 + $0x558] sm:$0xff]
  %v189 = vld [vmem:[%s0 + $0x560] sm:$0xff]
  %v190 = vld [vmem:[%s0 + $0x568] sm:$0xff]
  %v191 = vld [vmem:[%s0 + $0x570] sm:$0xff]
  %v192 = vld [vmem:[%s1] sm:$0xff]
  %v193 = vld [vmem:[%s1 + $0x8] sm:$0xff]
  %v194 = vld [vmem:[%s1 + $0x10] sm:$0xff]
  %v195 = vld [vmem:[%s1 + $0x18] sm:$0xff]
  %v196 = vld [vmem:[%s1 + $0x20] sm:$0xff]
  %v197 = vld [vmem:[%s1 + $0x28] sm:$0xff]
  %v198 = vld [vmem:[%s1 + $0x30] sm:$0xff]
  %v199 = vld [vmem:[%s1 + $0x38] sm:$0xff]
  %v200 = vld [vmem:[%s1 + $0x40] sm:$0xff]
  %v201 = vld [vmem:[%s1 + $0x48] sm:$0xff]
  %v202 = vld [vmem:[%s1 + $0x50] sm:$0xff]
  %v203 = vld [vmem:[%s1 + $0x58] sm:$0xff]
  %v204 = vld [vmem:[%s1 + $0x60] sm:$0xff]
  %v205 = vld [vmem:[%s1 + $0x68] sm:$0xff]
  %v206 = vld [vmem:[%s1 + $0x70] sm:$0xff]
  %v207 = vld [vmem:[%s1 + $0x78] sm:$0xff]
  %v208 = vld [vmem:[%s1 + $0x80] sm:$0xff]
  %v209 = vld [vmem:[%s1 + $0x88] sm:$0xff]
  %v210 = vld [vmem:[%s1 + $0x90] sm:$0xff]
  %v211 = vld [vmem:[%s1 + $0x98] sm:$0xff]
  %v212 = vld [vmem:[%s1 + $0xa0] sm:$0xff]
  %v213 = vld [vmem:[%s1 + $0xa8] sm:$0xff]
  %v214 = vld [vmem:[%s1 + $0xb0] sm:$0xff]
  %v215 = vld [vmem:[%s1 + $0xb8] sm:$0xff]
  %v216 = vld [vmem:[%s1 + $0xc0] sm:$0xff]
  %v217 = vld [vmem:[%s1 + $0xc8] sm:$0xff]
  %v218 = vld [vmem:[%s1 + $0xd0] sm:$0xff]
  %v219 = vld [vmem:[%s1 + $0xd8] sm:$0xff]
  %v220 = vld [vmem:[%s1 + $0xe0] sm:$0xff]
  %v221 = vld [vmem:[%s1 + $0xe8] sm:$0xff]
  %v222 = vld [vmem:[%s1 + $0xf0] sm:$0xff]
  %v223 = vld [vmem:[%s1 + $0xf8] sm:$0xff]
  %v224 = vld [vmem:[%s1 + $0x100] sm:$0xff]
  %v225 = vld [vmem:[%s1 + $0x108] sm:$0xff]
  %v226 = vld [vmem:[%s1 + $0x110] sm:$0xff]
  %v227 = vld [vmem:[%s1 + $0x118] sm:$0xff]
  %v228 = vld [vmem:[%s1 + $0x120] sm:$0xff]
  %v229 = vld [vmem:[%s1 + $0x128] sm:$0xff]
  %v230 = vld [vmem:[%s1 + $0x130] sm:$0xff]
  %v231 = vld [vmem:[%s1 + $0x138] sm:$0xff]
  %v232 = vld [vmem:[%s1 + $0x140] sm:$0xff]
  %v233 = vld [vmem:[%s1 + $0x148] sm:$0xff]
  %v234 = vld [vmem:[%s1 + $0x150] sm:$0xff]
  %v235 = vld [vmem:[%s1 + $0x158] sm:$0xff]
  %v236 = vld [vmem:[%s1 + $0x160] sm:$0xff]
  %v237 = vld [vmem:[%s1 + $0x168] sm:$0xff]
  %v238 = vld [vmem:[%s1 + $0x170] sm:$0xff]
  %v239 = vld [vmem:[%s1 + $0x178] sm:$0xff]
  %v240 = vld [vmem:[%s1 + $0x180] sm:$0xff]
  %v241 = vld [vmem:[%s1 + $0x188] sm:$0xff]
  %v242 = vld [vmem:[%s1 + $0x190] sm:$0xff]
  %v243 = vld [vmem:[%s1 + $0x198] sm:$0xff]
  %v244 = vld [vmem:[%s1 + $0x1a0] sm:$0xff]
  %v245 = vld [vmem:[%s1 + $0x1a8] sm:$0xff]
  %v246 = vld [vmem:[%s1 + $0x1b0] sm:$0xff]
  %v247 = vld [vmem:[%s1 + $0x1b8] sm:$0xff]
  %v248 = vld [vmem:[%s1 + $0x1c0] sm:$0xff]
  %v249 = vld [vmem:[%s1 + $0x1c8] sm:$0xff]
  %v250 = vld [vmem:[%s1 + $0x1d0] sm:$0xff]
  %v251 = vld [vmem:[%s1 + $0x1d8] sm:$0xff]
  %v252 = vld [vmem:[%s1 + $0x1e0] sm:$0xff]
  %v253 = vld [vmem:[%s1 + $0x1e8] sm:$0xff]
  %v254 = vld [vmem:[%s1 + $0x1f0] sm:$0xff]
  %v255 = vld [vmem:[%s1 + $0x1f8] sm:$0xff]
  %v256 = vld [vmem:[%s1 + $0x200] sm:$0xff]
  %v257 = vld [vmem:[%s1 + $0x208] sm:$0xff]
  %v258 = vld [vmem:[%s1 + $0x210] sm:$0xff]
  %v259 = vld [vmem:[%s1 + $0x218] sm:$0xff]
  %v260 = vld [vmem:[%s1 + $0x220] sm:$0xff]
  %v261 = vld [vmem:[%s1 + $0x228] sm:$0xff]
  %v262 = vld [vmem:[%s1 + $0x230] sm:$0xff]
  %v263 = vld [vmem:[%s1 + $0x238] sm:$0xff]
  %v264 = vld [vmem:[%s1 + $0x240] sm:$0xff]
  %v265 = vld [vmem:[%s1 + $0x248] sm:$0xff]
  %v266 = vld [vmem:[%s1 + $0x250] sm:$0xff]
  %v267 = vld [vmem:[%s1 + $0x258] sm:$0xff]
  %v268 = vld [vmem:[%s1 + $0x260] sm:$0xff]
  %v269 = vld [vmem:[%s1 + $0x268] sm:$0xff]
  %v270 = vld [vmem:[%s1 + $0x270] sm:$0xff]
  %v271 = vld [vmem:[%s1 + $0x278] sm:$0xff]
  %v272 = vld [vmem:[%s1 + $0x280] sm:$0xff]
  %v273 = vld [vmem:[%s1 + $0x288] sm:$0xff]
  %v274 = vld [vmem:[%s1 + $0x290] sm:$0xff]
  %v275 = vld [vmem:[%s1 + $0x298] sm:$0xff]
  %v276 = vld [vmem:[%s1 + $0x2a0] sm:$0xff]
  %v277 = vld [vmem:[%s1 + $0x2a8] sm:$0xff]
  %v278 = vld [vmem:[%s1 + $0x2b0] sm:$0xff]
  %v279 = vld [vmem:[%s1 + $0x2b8] sm:$0xff]
  %v280 = vld [vmem:[%s1 + $0x2c0] sm:$0xff]
  %v281 = vld [vmem:[%s1 + $0x2c8] sm:$0xff]
  %v282 = vld [vmem:[%s1 + $0x2d0] sm:$0xff]
  %v283 = vld [vmem:[%s1 + $0x2d8] sm:$0xff]
  %v284 = vld [vmem:[%s1 + $0x2e0] sm:$0xff]
  %v285 = vld [vmem:[%s1 + $0x2e8] sm:$0xff]
  %v286 = vld [vmem:[%s1 + $0x2f0] sm:$0xff]
  %v287 = vld [vmem:[%s1 + $0x2f8] sm:$0xff]
  %v288 = vld [vmem:[%s1 + $0x300] sm:$0xff]
  %v289 = vld [vmem:[%s1 + $0x308] sm:$0xff]
  %v290 = vld [vmem:[%s1 + $0x310] sm:$0xff]
  %v291 = vld [vmem:[%s1 + $0x318] sm:$0xff]
  %v292 = vld [vmem:[%s1 + $0x320] sm:$0xff]
  %v293 = vld [vmem:[%s1 + $0x328] sm:$0xff]
  %v294 = vld [vmem:[%s1 + $0x330] sm:$0xff]
  %v295 = vld [vmem:[%s1 + $0x338] sm:$0xff]
  %v296 = vld [vmem:[%s1 + $0x340] sm:$0xff]
  %v297 = vld [vmem:[%s1 + $0x348] sm:$0xff]
  %v298 = vld [vmem:[%s1 + $0x350] sm:$0xff]
  %v299 = vld [vmem:[%s1 + $0x358] sm:$0xff]
  %v300 = vld [vmem:[%s1 + $0x360] sm:$0xff]
  %v301 = vld [vmem:[%s1 + $0x368] sm:$0xff]
  %v302 = vld [vmem:[%s1 + $0x370] sm:$0xff]
  %v303 = vld [vmem:[%s1 + $0x378] sm:$0xff]
  %v304 = vld [vmem:[%s2] sm:$0x1]
  %v306 = vlaneseq
  %v307 = vshrl.u32 %v306, 7
  %v308 = vsub.s32 0, %v307
  %v309 = vrot.slane %v304, %v308
  %311 = vmatprep.subr.mxu0 0.0
  %312 = vmatpush1.msra.mxu0 %v207
  %313 = vmatprep.subr.mxu0 0.0
  %314 = vmatpush1.msra.mxu0 %v206
  %315 = vmatprep.subr.mxu0 0.0
  %316 = vmatpush1.msra.mxu0 %v205
  %317 = vmatprep.subr.mxu0 0.0
  %318 = vmatpush1.msra.mxu0 %v204
  %319 = vmatprep.subr.mxu0 0.0
  %320 = vmatpush1.msra.mxu0 %v203
  %321 = vmatprep.subr.mxu0 0.0
  %322 = vmatpush1.msra.mxu0 %v202
  %323 = vmatprep.subr.mxu0 0.0
  %324 = vmatpush1.msra.mxu0 %v201
  %325 = vmatprep.subr.mxu0 0.0
  %326 = vmatpush1.msra.mxu0 %v200
  %327 = vmatprep.subr.mxu0 0.0
  %328 = vmatpush1.msra.mxu0 %v199
  %329 = vmatprep.subr.mxu0 0.0
  %330 = vmatpush1.msra.mxu0 %v198
  %331 = vmatprep.subr.mxu0 0.0
  %332 = vmatpush1.msra.mxu0 %v197
  %333 = vmatprep.subr.mxu0 0.0
  %334 = vmatpush1.msra.mxu0 %v196
  %335 = vmatprep.subr.mxu0 0.0
  %336 = vmatpush1.msra.mxu0 %v195
  %337 = vmatprep.subr.mxu0 0.0
  %338 = vmatpush1.msra.mxu0 %v194
  %339 = vmatprep.subr.mxu0 0.0
  %340 = vmatpush1.msra.mxu0 %v193
  %341 = vmatprep.subr.mxu0 0.0
  %342 = vmatpush1.msra.mxu0 %v192
  %343 = vmatprep.subr.mxu0 0.0
  %344 = vmatpush2.msra.mxu0 %v223
  %345 = vmatprep.subr.mxu0 0.0
  %346 = vmatpush2.msra.mxu0 %v222
  %347 = vmatprep.subr.mxu0 0.0
  %348 = vmatpush2.msra.mxu0 %v221
  %349 = vmatprep.subr.mxu0 0.0
  %350 = vmatpush2.msra.mxu0 %v220
  %351 = vmatprep.subr.mxu0 0.0
  %352 = vmatpush2.msra.mxu0 %v219
  %353 = vmatprep.subr.mxu0 0.0
  %354 = vmatpush2.msra.mxu0 %v218
  %355 = vmatprep.subr.mxu0 0.0
  %356 = vmatpush2.msra.mxu0 %v217
  %357 = vmatprep.subr.mxu0 0.0
  %358 = vmatpush2.msra.mxu0 %v216
  %359 = vmatprep.subr.mxu0 0.0
  %360 = vmatpush2.msra.mxu0 %v215
  %361 = vmatprep.subr.mxu0 0.0
  %362 = vmatpush2.msra.mxu0 %v214
  %363 = vmatprep.subr.mxu0 0.0
  %364 = vmatpush2.msra.mxu0 %v213
  %365 = vmatprep.subr.mxu0 0.0
  %366 = vmatpush2.msra.mxu0 %v212
  %367 = vmatprep.subr.mxu0 0.0
  %368 = vmatpush2.msra.mxu0 %v211
  %369 = vmatprep.subr.mxu0 0.0
  %370 = vmatpush2.msra.mxu0 %v210
  %371 = vmatprep.subr.mxu0 0.0
  %372 = vmatpush2.msra.mxu0 %v209
  %373 = vmatprep.subr.mxu0 0.0
  %374 = vmatpush2.msra.mxu0 %v208
  %375 = vmatprep.mubr.f32.mxu0 %v18
  %376 = vmatmul.mubr.f32.gmra.mxu0 %v17
  %v377 = vpop.f32.mrf.mxu0
  %v378 = vadd.f32 %v309, %v377
  %v379 = vpop.f32.mrf.mxu0
  %380 = vmatprep.mubr.f32.mxu0 %v25
  %381 = vmatmul.mubr.f32.gmra.mxu0 %v24
  %v382 = vpop.f32.mrf.mxu0
  %v383 = vadd.f32 %v309, %v382
  %v384 = vpop.f32.mrf.mxu0
  %385 = vmatprep.mubr.f32.mxu0 %v32
  %386 = vmatmul.mubr.f32.gmra.mxu0 %v31
  %v387 = vpop.f32.mrf.mxu0
  %v388 = vadd.f32 %v309, %v387
  %v389 = vpop.f32.mrf.mxu0
  %390 = vmatprep.mubr.f32.mxu0 %v39
  %391 = vmatmul.mubr.f32.gmra.mxu0 %v38
  %v392 = vpop.f32.mrf.mxu0
  %v393 = vadd.f32 %v309, %v392
  %v394 = vpop.f32.mrf.mxu0
  %395 = vmatprep.mubr.f32.mxu0 %v46
  %396 = vmatmul.mubr.f32.gmra.mxu0 %v45
  %v397 = vpop.f32.mrf.mxu0
  %v398 = vadd.f32 %v309, %v397
  %v399 = vpop.f32.mrf.mxu0
  %400 = vmatprep.mubr.f32.mxu0 %v53
  %401 = vmatmul.mubr.f32.gmra.mxu0 %v52
  %v402 = vpop.f32.mrf.mxu0
  %v403 = vadd.f32 %v309, %v402
  %v404 = vpop.f32.mrf.mxu0
  %405 = vmatprep.mubr.f32.mxu0 %v60
  %406 = vmatmul.mubr.f32.gmra.mxu0 %v59
  %v407 = vpop.f32.mrf.mxu0
  %v408 = vadd.f32 %v309, %v407
  %v409 = vpop.f32.mrf.mxu0
  %410 = vmatprep.mubr.f32.mxu0 %v67
  %411 = vmatmul.mubr.f32.gmra.mxu0 %v66
  %v412 = vpop.f32.mrf.mxu0
  %v413 = vadd.f32 %v309, %v412
  %v414 = vpop.f32.mrf.mxu0
  %415 = vmatprep.mubr.f32.mxu0 %v74
  %416 = vmatmul.mubr.f32.gmra.mxu0 %v73
  %v417 = vpop.f32.mrf.mxu0
  %v418 = vadd.f32 %v309, %v417
  %v419 = vpop.f32.mrf.mxu0
  %420 = vmatprep.mubr.f32.mxu0 %v81
  %421 = vmatmul.mubr.f32.gmra.mxu0 %v80
  %v422 = vpop.f32.mrf.mxu0
  %v423 = vadd.f32 %v309, %v422
  %v424 = vpop.f32.mrf.mxu0
  %425 = vmatprep.mubr.f32.mxu0 %v88
  %426 = vmatmul.mubr.f32.gmra.mxu0 %v87
  %v427 = vpop.f32.mrf.mxu0
  %v428 = vadd.f32 %v309, %v427
  %v429 = vpop.f32.mrf.mxu0
  %430 = vmatprep.mubr.f32.mxu0 %v95
  %431 = vmatmul.mubr.f32.gmra.mxu0 %v94
  %v432 = vpop.f32.mrf.mxu0
  %v433 = vadd.f32 %v309, %v432
  %v434 = vpop.f32.mrf.mxu0
  %435 = vmatprep.mubr.f32.mxu0 %v102
  %436 = vmatmul.mubr.f32.gmra.mxu0 %v101
  %v437 = vpop.f32.mrf.mxu0
  %v438 = vadd.f32 %v309, %v437
  %v439 = vpop.f32.mrf.mxu0
  %440 = vmatprep.mubr.f32.mxu0 %v109
  %441 = vmatmul.mubr.f32.gmra.mxu0 %v108
  %v442 = vpop.f32.mrf.mxu0
  %v443 = vadd.f32 %v309, %v442
  %v444 = vpop.f32.mrf.mxu0
  %445 = vmatprep.mubr.f32.mxu0 %v116
  %446 = vmatmul.mubr.f32.gmra.mxu0 %v115
  %v447 = vpop.f32.mrf.mxu0
  %v448 = vadd.f32 %v309, %v447
  %v449 = vpop.f32.mrf.mxu0
  %450 = vmatprep.mubr.f32.mxu0 %v123
  %451 = vmatmul.mubr.f32.gmra.mxu0 %v122
  %v452 = vpop.f32.mrf.mxu0
  %v453 = vadd.f32 %v309, %v452
  %v454 = vpop.f32.mrf.mxu0
  %455 = vmatprep.mubr.f32.mxu0 %v130
  %456 = vmatmul.mubr.f32.gmra.mxu0 %v129
  %v457 = vpop.f32.mrf.mxu0
  %v458 = vadd.f32 %v309, %v457
  %v459 = vpop.f32.mrf.mxu0
  %460 = vmatprep.mubr.f32.mxu0 %v137
  %461 = vmatmul.mubr.f32.gmra.mxu0 %v136
  %v462 = vpop.f32.mrf.mxu0
  %v463 = vadd.f32 %v309, %v462
  %v464 = vpop.f32.mrf.mxu0
  %465 = vmatprep.mubr.f32.mxu0 %v144
  %466 = vmatmul.mubr.f32.gmra.mxu0 %v143
  %v467 = vpop.f32.mrf.mxu0
  %v468 = vadd.f32 %v309, %v467
  %v469 = vpop.f32.mrf.mxu0
  %470 = vmatprep.mubr.f32.mxu0 %v151
  %471 = vmatmul.mubr.f32.gmra.mxu0 %v150
  %v472 = vpop.f32.mrf.mxu0
  %v473 = vadd.f32 %v309, %v472
  %v474 = vpop.f32.mrf.mxu0
  %475 = vmatprep.mubr.f32.mxu0 %v158
  %476 = vmatmul.mubr.f32.gmra.mxu0 %v157
  %v477 = vpop.f32.mrf.mxu0
  %v478 = vadd.f32 %v309, %v477
  %v479 = vpop.f32.mrf.mxu0
  %480 = vmatprep.mubr.f32.mxu0 %v165
  %481 = vmatmul.mubr.f32.gmra.mxu0 %v164
  %v482 = vpop.f32.mrf.mxu0
  %v483 = vadd.f32 %v309, %v482
  %v484 = vpop.f32.mrf.mxu0
  %485 = vmatprep.mubr.f32.mxu0 %v172
  %486 = vmatmul.mubr.f32.gmra.mxu0 %v171
  %v487 = vpop.f32.mrf.mxu0
  %v488 = vadd.f32 %v309, %v487
  %v489 = vpop.f32.mrf.mxu0
  %490 = vmatprep.mubr.f32.mxu0 %v179
  %491 = vmatmul.mubr.f32.gmra.mxu0 %v178
  %v492 = vpop.f32.mrf.mxu0
  %v493 = vadd.f32 %v309, %v492
  %v494 = vpop.f32.mrf.mxu0
  %495 = vmatprep.mubr.f32.mxu0 %v186
  %496 = vmatmul.mubr.f32.gmra.mxu0 %v185
  %v497 = vpop.f32.mrf.mxu0
  %v498 = vadd.f32 %v309, %v497
  %v499 = vpop.f32.mrf.mxu0
  %500 = vdwg.mxu0
  %501 = vmatprep.subr.mxu0 0.0
  %502 = vmatpush1.msra.mxu0 %v239
  %503 = vmatprep.subr.mxu0 0.0
  %504 = vmatpush1.msra.mxu0 %v238
  %505 = vmatprep.subr.mxu0 0.0
  %506 = vmatpush1.msra.mxu0 %v237
  %507 = vmatprep.subr.mxu0 0.0
  %508 = vmatpush1.msra.mxu0 %v236
  %509 = vmatprep.subr.mxu0 0.0
  %510 = vmatpush1.msra.mxu0 %v235
  %511 = vmatprep.subr.mxu0 0.0
  %512 = vmatpush1.msra.mxu0 %v234
  %513 = vmatprep.subr.mxu0 0.0
  %514 = vmatpush1.msra.mxu0 %v233
  %515 = vmatprep.subr.mxu0 0.0
  %516 = vmatpush1.msra.mxu0 %v232
  %517 = vmatprep.subr.mxu0 0.0
  %518 = vmatpush1.msra.mxu0 %v231
  %519 = vmatprep.subr.mxu0 0.0
  %520 = vmatpush1.msra.mxu0 %v230
  %521 = vmatprep.subr.mxu0 0.0
  %522 = vmatpush1.msra.mxu0 %v229
  %523 = vmatprep.subr.mxu0 0.0
  %524 = vmatpush1.msra.mxu0 %v228
  %525 = vmatprep.subr.mxu0 0.0
  %526 = vmatpush1.msra.mxu0 %v227
  %527 = vmatprep.subr.mxu0 0.0
  %528 = vmatpush1.msra.mxu0 %v226
  %529 = vmatprep.subr.mxu0 0.0
  %530 = vmatpush1.msra.mxu0 %v225
  %531 = vmatprep.subr.mxu0 0.0
  %532 = vmatpush1.msra.mxu0 %v224
  %533 = vmatprep.subr.mxu0 0.0
  %534 = vmatpush2.msra.mxu0 %v255
  %535 = vmatprep.subr.mxu0 0.0
  %536 = vmatpush2.msra.mxu0 %v254
  %537 = vmatprep.subr.mxu0 0.0
  %538 = vmatpush2.msra.mxu0 %v253
  %539 = vmatprep.subr.mxu0 0.0
  %540 = vmatpush2.msra.mxu0 %v252
  %541 = vmatprep.subr.mxu0 0.0
  %542 = vmatpush2.msra.mxu0 %v251
  %543 = vmatprep.subr.mxu0 0.0
  %544 = vmatpush2.msra.mxu0 %v250
  %545 = vmatprep.subr.mxu0 0.0
  %546 = vmatpush2.msra.mxu0 %v249
  %547 = vmatprep.subr.mxu0 0.0
  %548 = vmatpush2.msra.mxu0 %v248
  %549 = vmatprep.subr.mxu0 0.0
  %550 = vmatpush2.msra.mxu0 %v247
  %551 = vmatprep.subr.mxu0 0.0
  %552 = vmatpush2.msra.mxu0 %v246
  %553 = vmatprep.subr.mxu0 0.0
  %554 = vmatpush2.msra.mxu0 %v245
  %555 = vmatprep.subr.mxu0 0.0
  %556 = vmatpush2.msra.mxu0 %v244
  %557 = vmatprep.subr.mxu0 0.0
  %558 = vmatpush2.msra.mxu0 %v243
  %559 = vmatprep.subr.mxu0 0.0
  %560 = vmatpush2.msra.mxu0 %v242
  %561 = vmatprep.subr.mxu0 0.0
  %562 = vmatpush2.msra.mxu0 %v241
  %563 = vmatprep.subr.mxu0 0.0
  %564 = vmatpush2.msra.mxu0 %v240
  %565 = vmatprep.mubr.f32.mxu0 %v20
  %566 = vmatmul.mubr.f32.gmra.mxu0 %v19
  %v567 = vpop.f32.mrf.mxu0
  %v568 = vadd.f32 %v378, %v567
  %v569 = vpop.f32.mrf.mxu0
  %570 = vmatprep.mubr.f32.mxu0 %v27
  %571 = vmatmul.mubr.f32.gmra.mxu0 %v26
  %v572 = vpop.f32.mrf.mxu0
  %v573 = vadd.f32 %v383, %v572
  %v574 = vpop.f32.mrf.mxu0
  %575 = vmatprep.mubr.f32.mxu0 %v34
  %576 = vmatmul.mubr.f32.gmra.mxu0 %v33
  %v577 = vpop.f32.mrf.mxu0
  %v578 = vadd.f32 %v388, %v577
  %v579 = vpop.f32.mrf.mxu0
  %580 = vmatprep.mubr.f32.mxu0 %v41
  %581 = vmatmul.mubr.f32.gmra.mxu0 %v40
  %v582 = vpop.f32.mrf.mxu0
  %v583 = vadd.f32 %v393, %v582
  %v584 = vpop.f32.mrf.mxu0
  %585 = vmatprep.mubr.f32.mxu0 %v48
  %586 = vmatmul.mubr.f32.gmra.mxu0 %v47
  %v587 = vpop.f32.mrf.mxu0
  %v588 = vadd.f32 %v398, %v587
  %v589 = vpop.f32.mrf.mxu0
  %590 = vmatprep.mubr.f32.mxu0 %v55
  %591 = vmatmul.mubr.f32.gmra.mxu0 %v54
  %v592 = vpop.f32.mrf.mxu0
  %v593 = vadd.f32 %v403, %v592
  %v594 = vpop.f32.mrf.mxu0
  %595 = vmatprep.mubr.f32.mxu0 %v62
  %596 = vmatmul.mubr.f32.gmra.mxu0 %v61
  %v597 = vpop.f32.mrf.mxu0
  %v598 = vadd.f32 %v408, %v597
  %v599 = vpop.f32.mrf.mxu0
  %600 = vmatprep.mubr.f32.mxu0 %v69
  %601 = vmatmul.mubr.f32.gmra.mxu0 %v68
  %v602 = vpop.f32.mrf.mxu0
  %v603 = vadd.f32 %v413, %v602
  %v604 = vpop.f32.mrf.mxu0
  %605 = vmatprep.mubr.f32.mxu0 %v76
  %606 = vmatmul.mubr.f32.gmra.mxu0 %v75
  %v607 = vpop.f32.mrf.mxu0
  %v608 = vadd.f32 %v418, %v607
  %v609 = vpop.f32.mrf.mxu0
  %610 = vmatprep.mubr.f32.mxu0 %v83
  %611 = vmatmul.mubr.f32.gmra.mxu0 %v82
  %v612 = vpop.f32.mrf.mxu0
  %v613 = vadd.f32 %v423, %v612
  %v614 = vpop.f32.mrf.mxu0
  %615 = vmatprep.mubr.f32.mxu0 %v90
  %616 = vmatmul.mubr.f32.gmra.mxu0 %v89
  %v617 = vpop.f32.mrf.mxu0
  %v618 = vadd.f32 %v428, %v617
  %v619 = vpop.f32.mrf.mxu0
  %620 = vmatprep.mubr.f32.mxu0 %v97
  %621 = vmatmul.mubr.f32.gmra.mxu0 %v96
  %v622 = vpop.f32.mrf.mxu0
  %v623 = vadd.f32 %v433, %v622
  %v624 = vpop.f32.mrf.mxu0
  %625 = vmatprep.mubr.f32.mxu0 %v104
  %626 = vmatmul.mubr.f32.gmra.mxu0 %v103
  %v627 = vpop.f32.mrf.mxu0
  %v628 = vadd.f32 %v438, %v627
  %v629 = vpop.f32.mrf.mxu0
  %630 = vmatprep.mubr.f32.mxu0 %v111
  %631 = vmatmul.mubr.f32.gmra.mxu0 %v110
  %v632 = vpop.f32.mrf.mxu0
  %v633 = vadd.f32 %v443, %v632
  %v634 = vpop.f32.mrf.mxu0
  %635 = vmatprep.mubr.f32.mxu0 %v118
  %636 = vmatmul.mubr.f32.gmra.mxu0 %v117
  %v637 = vpop.f32.mrf.mxu0
  %v638 = vadd.f32 %v448, %v637
  %v639 = vpop.f32.mrf.mxu0
  %640 = vmatprep.mubr.f32.mxu0 %v125
  %641 = vmatmul.mubr.f32.gmra.mxu0 %v124
  %v642 = vpop.f32.mrf.mxu0
  %v643 = vadd.f32 %v453, %v642
  %v644 = vpop.f32.mrf.mxu0
  %645 = vmatprep.mubr.f32.mxu0 %v132
  %646 = vmatmul.mubr.f32.gmra.mxu0 %v131
  %v647 = vpop.f32.mrf.mxu0
  %v648 = vadd.f32 %v458, %v647
  %v649 = vpop.f32.mrf.mxu0
  %650 = vmatprep.mubr.f32.mxu0 %v139
  %651 = vmatmul.mubr.f32.gmra.mxu0 %v138
  %v652 = vpop.f32.mrf.mxu0
  %v653 = vadd.f32 %v463, %v652
  %v654 = vpop.f32.mrf.mxu0
  %655 = vmatprep.mubr.f32.mxu0 %v146
  %656 = vmatmul.mubr.f32.gmra.mxu0 %v145
  %v657 = vpop.f32.mrf.mxu0
  %v658 = vadd.f32 %v468, %v657
  %v659 = vpop.f32.mrf.mxu0
  %660 = vmatprep.mubr.f32.mxu0 %v153
  %661 = vmatmul.mubr.f32.gmra.mxu0 %v152
  %v662 = vpop.f32.mrf.mxu0
  %v663 = vadd.f32 %v473, %v662
  %v664 = vpop.f32.mrf.mxu0
  %665 = vmatprep.mubr.f32.mxu0 %v160
  %666 = vmatmul.mubr.f32.gmra.mxu0 %v159
  %v667 = vpop.f32.mrf.mxu0
  %v668 = vadd.f32 %v478, %v667
  %v669 = vpop.f32.mrf.mxu0
  %670 = vmatprep.mubr.f32.mxu0 %v167
  %671 = vmatmul.mubr.f32.gmra.mxu0 %v166
  %v672 = vpop.f32.mrf.mxu0
  %v673 = vadd.f32 %v483, %v672
  %v674 = vpop.f32.mrf.mxu0
  %675 = vmatprep.mubr.f32.mxu0 %v174
  %676 = vmatmul.mubr.f32.gmra.mxu0 %v173
  %v677 = vpop.f32.mrf.mxu0
  %v678 = vadd.f32 %v488, %v677
  %v679 = vpop.f32.mrf.mxu0
  %680 = vmatprep.mubr.f32.mxu0 %v181
  %681 = vmatmul.mubr.f32.gmra.mxu0 %v180
  %v682 = vpop.f32.mrf.mxu0
  %v683 = vadd.f32 %v493, %v682
  %v684 = vpop.f32.mrf.mxu0
  %685 = vmatprep.mubr.f32.mxu0 %v188
  %686 = vmatmul.mubr.f32.gmra.mxu0 %v187
  %v687 = vpop.f32.mrf.mxu0
  %v688 = vadd.f32 %v498, %v687
  %v689 = vpop.f32.mrf.mxu0
  %690 = vdwg.mxu0
  %691 = vmatprep.subr.mxu0 0.0
  %692 = vmatpush1.msra.mxu0 %v271
  %693 = vmatprep.subr.mxu0 0.0
  %694 = vmatpush1.msra.mxu0 %v270
  %695 = vmatprep.subr.mxu0 0.0
  %696 = vmatpush1.msra.mxu0 %v269
  %697 = vmatprep.subr.mxu0 0.0
  %698 = vmatpush1.msra.mxu0 %v268
  %699 = vmatprep.subr.mxu0 0.0
  %700 = vmatpush1.msra.mxu0 %v267
  %701 = vmatprep.subr.mxu0 0.0
  %702 = vmatpush1.msra.mxu0 %v266
  %703 = vmatprep.subr.mxu0 0.0
  %704 = vmatpush1.msra.mxu0 %v265
  %705 = vmatprep.subr.mxu0 0.0
  %706 = vmatpush1.msra.mxu0 %v264
  %707 = vmatprep.subr.mxu0 0.0
  %708 = vmatpush1.msra.mxu0 %v263
  %709 = vmatprep.subr.mxu0 0.0
  %710 = vmatpush1.msra.mxu0 %v262
  %711 = vmatprep.subr.mxu0 0.0
  %712 = vmatpush1.msra.mxu0 %v261
  %713 = vmatprep.subr.mxu0 0.0
  %714 = vmatpush1.msra.mxu0 %v260
  %715 = vmatprep.subr.mxu0 0.0
  %716 = vmatpush1.msra.mxu0 %v259
  %717 = vmatprep.subr.mxu0 0.0
  %718 = vmatpush1.msra.mxu0 %v258
  %719 = vmatprep.subr.mxu0 0.0
  %720 = vmatpush1.msra.mxu0 %v257
  %721 = vmatprep.subr.mxu0 0.0
  %722 = vmatpush1.msra.mxu0 %v256
  %723 = vmatprep.subr.mxu0 0.0
  %724 = vmatpush2.msra.mxu0 %v287
  %725 = vmatprep.subr.mxu0 0.0
  %726 = vmatpush2.msra.mxu0 %v286
  %727 = vmatprep.subr.mxu0 0.0
  %728 = vmatpush2.msra.mxu0 %v285
  %729 = vmatprep.subr.mxu0 0.0
  %730 = vmatpush2.msra.mxu0 %v284
  %731 = vmatprep.subr.mxu0 0.0
  %732 = vmatpush2.msra.mxu0 %v283
  %733 = vmatprep.subr.mxu0 0.0
  %734 = vmatpush2.msra.mxu0 %v282
  %735 = vmatprep.subr.mxu0 0.0
  %736 = vmatpush2.msra.mxu0 %v281
  %737 = vmatprep.subr.mxu0 0.0
  %738 = vmatpush2.msra.mxu0 %v280
  %739 = vmatprep.subr.mxu0 0.0
  %740 = vmatpush2.msra.mxu0 %v279
  %741 = vmatprep.subr.mxu0 0.0
  %742 = vmatpush2.msra.mxu0 %v278
  %743 = vmatprep.subr.mxu0 0.0
  %744 = vmatpush2.msra.mxu0 %v277
  %745 = vmatprep.subr.mxu0 0.0
  %746 = vmatpush2.msra.mxu0 %v276
  %747 = vmatprep.subr.mxu0 0.0
  %748 = vmatpush2.msra.mxu0 %v275
  %749 = vmatprep.subr.mxu0 0.0
  %750 = vmatpush2.msra.mxu0 %v274
  %751 = vmatprep.subr.mxu0 0.0
  %752 = vmatpush2.msra.mxu0 %v273
  %753 = vmatprep.subr.mxu0 0.0
  %754 = vmatpush2.msra.mxu0 %v272
  %755 = vmatprep.mubr.f32.mxu0 %v22
  %756 = vmatmul.mubr.f32.gmra.mxu0 %v21
  %v757 = vpop.f32.mrf.mxu0
  %v758 = vadd.f32 %v568, %v757
  %v759 = vpop.f32.mrf.mxu0
  %760 = vmatprep.mubr.f32.mxu0 %v29
  %761 = vmatmul.mubr.f32.gmra.mxu0 %v28
  %v762 = vpop.f32.mrf.mxu0
  %v763 = vadd.f32 %v573, %v762
  %v764 = vpop.f32.mrf.mxu0
  %765 = vmatprep.mubr.f32.mxu0 %v36
  %766 = vmatmul.mubr.f32.gmra.mxu0 %v35
  %v767 = vpop.f32.mrf.mxu0
  %v768 = vadd.f32 %v578, %v767
  %v769 = vpop.f32.mrf.mxu0
  %770 = vmatprep.mubr.f32.mxu0 %v43
  %771 = vmatmul.mubr.f32.gmra.mxu0 %v42
  %v772 = vpop.f32.mrf.mxu0
  %v773 = vadd.f32 %v583, %v772
  %v774 = vpop.f32.mrf.mxu0
  %775 = vmatprep.mubr.f32.mxu0 %v50
  %776 = vmatmul.mubr.f32.gmra.mxu0 %v49
  %v777 = vpop.f32.mrf.mxu0
  %v778 = vadd.f32 %v588, %v777
  %v779 = vpop.f32.mrf.mxu0
  %780 = vmatprep.mubr.f32.mxu0 %v57
  %781 = vmatmul.mubr.f32.gmra.mxu0 %v56
  %v782 = vpop.f32.mrf.mxu0
  %v783 = vadd.f32 %v593, %v782
  %v784 = vpop.f32.mrf.mxu0
  %785 = vmatprep.mubr.f32.mxu0 %v64
  %786 = vmatmul.mubr.f32.gmra.mxu0 %v63
  %v787 = vpop.f32.mrf.mxu0
  %v788 = vadd.f32 %v598, %v787
  %v789 = vpop.f32.mrf.mxu0
  %790 = vmatprep.mubr.f32.mxu0 %v71
  %791 = vmatmul.mubr.f32.gmra.mxu0 %v70
  %v792 = vpop.f32.mrf.mxu0
  %v793 = vadd.f32 %v603, %v792
  %v794 = vpop.f32.mrf.mxu0
  %795 = vmatprep.mubr.f32.mxu0 %v78
  %796 = vmatmul.mubr.f32.gmra.mxu0 %v77
  %v797 = vpop.f32.mrf.mxu0
  %v798 = vadd.f32 %v608, %v797
  %v799 = vpop.f32.mrf.mxu0
  %800 = vmatprep.mubr.f32.mxu0 %v85
  %801 = vmatmul.mubr.f32.gmra.mxu0 %v84
  %v802 = vpop.f32.mrf.mxu0
  %v803 = vadd.f32 %v613, %v802
  %v804 = vpop.f32.mrf.mxu0
  %805 = vmatprep.mubr.f32.mxu0 %v92
  %806 = vmatmul.mubr.f32.gmra.mxu0 %v91
  %v807 = vpop.f32.mrf.mxu0
  %v808 = vadd.f32 %v618, %v807
  %v809 = vpop.f32.mrf.mxu0
  %810 = vmatprep.mubr.f32.mxu0 %v99
  %811 = vmatmul.mubr.f32.gmra.mxu0 %v98
  %v812 = vpop.f32.mrf.mxu0
  %v813 = vadd.f32 %v623, %v812
  %v814 = vpop.f32.mrf.mxu0
  %815 = vmatprep.mubr.f32.mxu0 %v106
  %816 = vmatmul.mubr.f32.gmra.mxu0 %v105
  %v817 = vpop.f32.mrf.mxu0
  %v818 = vadd.f32 %v628, %v817
  %v819 = vpop.f32.mrf.mxu0
  %820 = vmatprep.mubr.f32.mxu0 %v113
  %821 = vmatmul.mubr.f32.gmra.mxu0 %v112
  %v822 = vpop.f32.mrf.mxu0
  %v823 = vadd.f32 %v633, %v822
  %v824 = vpop.f32.mrf.mxu0
  %825 = vmatprep.mubr.f32.mxu0 %v120
  %826 = vmatmul.mubr.f32.gmra.mxu0 %v119
  %v827 = vpop.f32.mrf.mxu0
  %v828 = vadd.f32 %v638, %v827
  %v829 = vpop.f32.mrf.mxu0
  %830 = vmatprep.mubr.f32.mxu0 %v127
  %831 = vmatmul.mubr.f32.gmra.mxu0 %v126
  %v832 = vpop.f32.mrf.mxu0
  %v833 = vadd.f32 %v643, %v832
  %v834 = vpop.f32.mrf.mxu0
  %835 = vmatprep.mubr.f32.mxu0 %v134
  %836 = vmatmul.mubr.f32.gmra.mxu0 %v133
  %v837 = vpop.f32.mrf.mxu0
  %v838 = vadd.f32 %v648, %v837
  %v839 = vpop.f32.mrf.mxu0
  %840 = vmatprep.mubr.f32.mxu0 %v141
  %841 = vmatmul.mubr.f32.gmra.mxu0 %v140
  %v842 = vpop.f32.mrf.mxu0
  %v843 = vadd.f32 %v653, %v842
  %v844 = vpop.f32.mrf.mxu0
  %845 = vmatprep.mubr.f32.mxu0 %v148
  %846 = vmatmul.mubr.f32.gmra.mxu0 %v147
  %v847 = vpop.f32.mrf.mxu0
  %v848 = vadd.f32 %v658, %v847
  %v849 = vpop.f32.mrf.mxu0
  %850 = vmatprep.mubr.f32.mxu0 %v155
  %851 = vmatmul.mubr.f32.gmra.mxu0 %v154
  %v852 = vpop.f32.mrf.mxu0
  %v853 = vadd.f32 %v663, %v852
  %v854 = vpop.f32.mrf.mxu0
  %855 = vmatprep.mubr.f32.mxu0 %v162
  %856 = vmatmul.mubr.f32.gmra.mxu0 %v161
  %v857 = vpop.f32.mrf.mxu0
  %v858 = vadd.f32 %v668, %v857
  %v859 = vpop.f32.mrf.mxu0
  %860 = vmatprep.mubr.f32.mxu0 %v169
  %861 = vmatmul.mubr.f32.gmra.mxu0 %v168
  %v862 = vpop.f32.mrf.mxu0
  %v863 = vadd.f32 %v673, %v862
  %v864 = vpop.f32.mrf.mxu0
  %865 = vmatprep.mubr.f32.mxu0 %v176
  %866 = vmatmul.mubr.f32.gmra.mxu0 %v175
  %v867 = vpop.f32.mrf.mxu0
  %v868 = vadd.f32 %v678, %v867
  %v869 = vpop.f32.mrf.mxu0
  %870 = vmatprep.mubr.f32.mxu0 %v183
  %871 = vmatmul.mubr.f32.gmra.mxu0 %v182
  %v872 = vpop.f32.mrf.mxu0
  %v873 = vadd.f32 %v683, %v872
  %v874 = vpop.f32.mrf.mxu0
  %875 = vmatprep.mubr.f32.mxu0 %v190
  %876 = vmatmul.mubr.f32.gmra.mxu0 %v189
  %v877 = vpop.f32.mrf.mxu0
  %v878 = vadd.f32 %v688, %v877
  %v879 = vpop.f32.mrf.mxu0
  %880 = vdwg.mxu0
  %881 = vmatprep.subr.mxu0 0.0
  %882 = vmatpush1.msra.mxu0 %v303
  %883 = vmatprep.subr.mxu0 0.0
  %884 = vmatpush1.msra.mxu0 %v302
  %885 = vmatprep.subr.mxu0 0.0
  %886 = vmatpush1.msra.mxu0 %v301
  %887 = vmatprep.subr.mxu0 0.0
  %888 = vmatpush1.msra.mxu0 %v300
  %889 = vmatprep.subr.mxu0 0.0
  %890 = vmatpush1.msra.mxu0 %v299
  %891 = vmatprep.subr.mxu0 0.0
  %892 = vmatpush1.msra.mxu0 %v298
  %893 = vmatprep.subr.mxu0 0.0
  %894 = vmatpush1.msra.mxu0 %v297
  %895 = vmatprep.subr.mxu0 0.0
  %896 = vmatpush1.msra.mxu0 %v296
  %897 = vmatprep.subr.mxu0 0.0
  %898 = vmatpush1.msra.mxu0 %v295
  %899 = vmatprep.subr.mxu0 0.0
  %900 = vmatpush1.msra.mxu0 %v294
  %901 = vmatprep.subr.mxu0 0.0
  %902 = vmatpush1.msra.mxu0 %v293
  %903 = vmatprep.subr.mxu0 0.0
  %904 = vmatpush1.msra.mxu0 %v292
  %905 = vmatprep.subr.mxu0 0.0
  %906 = vmatpush1.msra.mxu0 %v291
  %907 = vmatprep.subr.mxu0 0.0
  %908 = vmatpush1.msra.mxu0 %v290
  %909 = vmatprep.subr.mxu0 0.0
  %910 = vmatpush1.msra.mxu0 %v289
  %911 = vmatprep.subr.mxu0 0.0
  %912 = vmatpush1.msra.mxu0 %v288
  %913 = vmatprep.subr.mxu0 0.0
  %914 = vmatpush2.msra.mxu0 0.0
  %915 = vmatprep.subr.mxu0 0.0
  %916 = vmatpush2.msra.mxu0 0.0
  %917 = vmatprep.subr.mxu0 0.0
  %918 = vmatpush2.msra.mxu0 0.0
  %919 = vmatprep.subr.mxu0 0.0
  %920 = vmatpush2.msra.mxu0 0.0
  %921 = vmatprep.subr.mxu0 0.0
  %922 = vmatpush2.msra.mxu0 0.0
  %923 = vmatprep.subr.mxu0 0.0
  %924 = vmatpush2.msra.mxu0 0.0
  %925 = vmatprep.subr.mxu0 0.0
  %926 = vmatpush2.msra.mxu0 0.0
  %927 = vmatprep.subr.mxu0 0.0
  %928 = vmatpush2.msra.mxu0 0.0
  %929 = vmatprep.subr.mxu0 0.0
  %930 = vmatpush2.msra.mxu0 0.0
  %931 = vmatprep.subr.mxu0 0.0
  %932 = vmatpush2.msra.mxu0 0.0
  %933 = vmatprep.subr.mxu0 0.0
  %934 = vmatpush2.msra.mxu0 0.0
  %935 = vmatprep.subr.mxu0 0.0
  %936 = vmatpush2.msra.mxu0 0.0
  %937 = vmatprep.subr.mxu0 0.0
  %938 = vmatpush2.msra.mxu0 0.0
  %939 = vmatprep.subr.mxu0 0.0
  %940 = vmatpush2.msra.mxu0 0.0
  %941 = vmatprep.subr.mxu0 0.0
  %942 = vmatpush2.msra.mxu0 0.0
  %943 = vmatprep.subr.mxu0 0.0
  %944 = vmatpush2.msra.mxu0 0.0
  %945 = vmatprep.mubr.f32.mxu0 0.0
  %946 = vmatmul.mubr.f32.gmra.mxu0 %v23
  %v947 = vpop.f32.mrf.mxu0
  %v948 = vadd.f32 %v758, %v947
  %v949 = vpop.f32.mrf.mxu0
  %950 = vmatprep.mubr.f32.mxu0 0.0
  %951 = vmatmul.mubr.f32.gmra.mxu0 %v30
  %v952 = vpop.f32.mrf.mxu0
  %v953 = vadd.f32 %v763, %v952
  %v954 = vpop.f32.mrf.mxu0
  %955 = vmatprep.mubr.f32.mxu0 0.0
  %956 = vmatmul.mubr.f32.gmra.mxu0 %v37
  %v957 = vpop.f32.mrf.mxu0
  %v958 = vadd.f32 %v768, %v957
  %v959 = vpop.f32.mrf.mxu0
  %960 = vmatprep.mubr.f32.mxu0 0.0
  %961 = vmatmul.mubr.f32.gmra.mxu0 %v44
  %v962 = vpop.f32.mrf.mxu0
  %v963 = vadd.f32 %v773, %v962
  %v964 = vpop.f32.mrf.mxu0
  %965 = vmatprep.mubr.f32.mxu0 0.0
  %966 = vmatmul.mubr.f32.gmra.mxu0 %v51
  %v967 = vpop.f32.mrf.mxu0
  %v968 = vadd.f32 %v778, %v967
  %v969 = vpop.f32.mrf.mxu0
  %970 = vmatprep.mubr.f32.mxu0 0.0
  %971 = vmatmul.mubr.f32.gmra.mxu0 %v58
  %v972 = vpop.f32.mrf.mxu0
  %v973 = vadd.f32 %v783, %v972
  %v974 = vpop.f32.mrf.mxu0
  %975 = vmatprep.mubr.f32.mxu0 0.0
  %976 = vmatmul.mubr.f32.gmra.mxu0 %v65
  %v977 = vpop.f32.mrf.mxu0
  %v978 = vadd.f32 %v788, %v977
  %v979 = vpop.f32.mrf.mxu0
  %980 = vmatprep.mubr.f32.mxu0 0.0
  %981 = vmatmul.mubr.f32.gmra.mxu0 %v72
  %v982 = vpop.f32.mrf.mxu0
  %v983 = vadd.f32 %v793, %v982
  %v984 = vpop.f32.mrf.mxu0
  %985 = vmatprep.mubr.f32.mxu0 0.0
  %986 = vmatmul.mubr.f32.gmra.mxu0 %v79
  %v987 = vpop.f32.mrf.mxu0
  %v988 = vadd.f32 %v798, %v987
  %v989 = vpop.f32.mrf.mxu0
  %990 = vmatprep.mubr.f32.mxu0 0.0
  %991 = vmatmul.mubr.f32.gmra.mxu0 %v86
  %v992 = vpop.f32.mrf.mxu0
  %v993 = vadd.f32 %v803, %v992
  %v994 = vpop.f32.mrf.mxu0
  %995 = vmatprep.mubr.f32.mxu0 0.0
  %996 = vmatmul.mubr.f32.gmra.mxu0 %v93
  %v997 = vpop.f32.mrf.mxu0
  %v998 = vadd.f32 %v808, %v997
  %v999 = vpop.f32.mrf.mxu0
  %1000 = vmatprep.mubr.f32.mxu0 0.0
  %1001 = vmatmul.mubr.f32.gmra.mxu0 %v100
  %v1002 = vpop.f32.mrf.mxu0
  %v1003 = vadd.f32 %v813, %v1002
  %v1004 = vpop.f32.mrf.mxu0
  %1005 = vmatprep.mubr.f32.mxu0 0.0
  %1006 = vmatmul.mubr.f32.gmra.mxu0 %v107
  %v1007 = vpop.f32.mrf.mxu0
  %v1008 = vadd.f32 %v818, %v1007
  %v1009 = vpop.f32.mrf.mxu0
  %1010 = vmatprep.mubr.f32.mxu0 0.0
  %1011 = vmatmul.mubr.f32.gmra.mxu0 %v114
  %v1012 = vpop.f32.mrf.mxu0
  %v1013 = vadd.f32 %v823, %v1012
  %v1014 = vpop.f32.mrf.mxu0
  %1015 = vmatprep.mubr.f32.mxu0 0.0
  %1016 = vmatmul.mubr.f32.gmra.mxu0 %v121
  %v1017 = vpop.f32.mrf.mxu0
  %v1018 = vadd.f32 %v828, %v1017
  %v1019 = vpop.f32.mrf.mxu0
  %1020 = vmatprep.mubr.f32.mxu0 0.0
  %1021 = vmatmul.mubr.f32.gmra.mxu0 %v128
  %v1022 = vpop.f32.mrf.mxu0
  %v1023 = vadd.f32 %v833, %v1022
  %v1024 = vpop.f32.mrf.mxu0
  %1025 = vmatprep.mubr.f32.mxu0 0.0
  %1026 = vmatmul.mubr.f32.gmra.mxu0 %v135
  %v1027 = vpop.f32.mrf.mxu0
  %v1028 = vadd.f32 %v838, %v1027
  %v1029 = vpop.f32.mrf.mxu0
  %1030 = vmatprep.mubr.f32.mxu0 0.0
  %1031 = vmatmul.mubr.f32.gmra.mxu0 %v142
  %v1032 = vpop.f32.mrf.mxu0
  %v1033 = vadd.f32 %v843, %v1032
  %v1034 = vpop.f32.mrf.mxu0
  %1035 = vmatprep.mubr.f32.mxu0 0.0
  %1036 = vmatmul.mubr.f32.gmra.mxu0 %v149
  %v1037 = vpop.f32.mrf.mxu0
  %v1038 = vadd.f32 %v848, %v1037
  %v1039 = vpop.f32.mrf.mxu0
  %1040 = vmatprep.mubr.f32.mxu0 0.0
  %1041 = vmatmul.mubr.f32.gmra.mxu0 %v156
  %v1042 = vpop.f32.mrf.mxu0
  %v1043 = vadd.f32 %v853, %v1042
  %v1044 = vpop.f32.mrf.mxu0
  %1045 = vmatprep.mubr.f32.mxu0 0.0
  %1046 = vmatmul.mubr.f32.gmra.mxu0 %v163
  %v1047 = vpop.f32.mrf.mxu0
  %v1048 = vadd.f32 %v858, %v1047
  %v1049 = vpop.f32.mrf.mxu0
  %1050 = vmatprep.mubr.f32.mxu0 0.0
  %1051 = vmatmul.mubr.f32.gmra.mxu0 %v170
  %v1052 = vpop.f32.mrf.mxu0
  %v1053 = vadd.f32 %v863, %v1052
  %v1054 = vpop.f32.mrf.mxu0
  %1055 = vmatprep.mubr.f32.mxu0 0.0
  %1056 = vmatmul.mubr.f32.gmra.mxu0 %v177
  %v1057 = vpop.f32.mrf.mxu0
  %v1058 = vadd.f32 %v868, %v1057
  %v1059 = vpop.f32.mrf.mxu0
  %1060 = vmatprep.mubr.f32.mxu0 0.0
  %1061 = vmatmul.mubr.f32.gmra.mxu0 %v184
  %v1062 = vpop.f32.mrf.mxu0
  %v1063 = vadd.f32 %v873, %v1062
  %v1064 = vpop.f32.mrf.mxu0
  %1065 = vmatprep.mubr.f32.mxu0 0.0
  %1066 = vmatmul.mubr.f32.gmra.mxu0 %v191
  %v1067 = vpop.f32.mrf.mxu0
  %v1068 = vadd.f32 %v878, %v1067
  %v1069 = vpop.f32.mrf.mxu0
  %1070 = vdwg.mxu0
  %v1071 = vmax.f32 %v948, 0.0
  %v1072 = vmax.f32 %v953, 0.0
  %v1073 = vmax.f32 %v958, 0.0
  %v1074 = vmax.f32 %v963, 0.0
  %v1075 = vmax.f32 %v968, 0.0
  %v1076 = vmax.f32 %v973, 0.0
  %v1077 = vmax.f32 %v978, 0.0
  %v1078 = vmax.f32 %v983, 0.0
  %v1079 = vmax.f32 %v988, 0.0
  %v1080 = vmax.f32 %v993, 0.0
  %v1081 = vmax.f32 %v998, 0.0
  %v1082 = vmax.f32 %v1003, 0.0
  %v1083 = vmax.f32 %v1008, 0.0
  %v1084 = vmax.f32 %v1013, 0.0
  %v1085 = vmax.f32 %v1018, 0.0
  %v1086 = vmax.f32 %v1023, 0.0
  %v1087 = vmax.f32 %v1028, 0.0
  %v1088 = vmax.f32 %v1033, 0.0
  %v1089 = vmax.f32 %v1038, 0.0
  %v1090 = vmax.f32 %v1043, 0.0
  %v1091 = vmax.f32 %v1048, 0.0
  %v1092 = vmax.f32 %v1053, 0.0
  %v1093 = vmax.f32 %v1058, 0.0
  %v1094 = vmax.f32 %v1063, 0.0
  %v1095 = vmax.f32 %v1068, 0.0
  %1096 = vst [vmem:[%s3] sm:$0xff] %v1071
  %1097 = vst [vmem:[%s3 + $0x8] sm:$0xff] %v1072
  %1098 = vst [vmem:[%s3 + $0x10] sm:$0xff] %v1073
  %1099 = vst [vmem:[%s3 + $0x18] sm:$0xff] %v1074
  %1100 = vst [vmem:[%s3 + $0x20] sm:$0xff] %v1075
  %1101 = vst [vmem:[%s3 + $0x28] sm:$0xff] %v1076
  %1102 = vst [vmem:[%s3 + $0x30] sm:$0xff] %v1077
  %1103 = vst [vmem:[%s3 + $0x38] sm:$0xff] %v1078
  %1104 = vst [vmem:[%s3 + $0x40] sm:$0xff] %v1079
  %1105 = vst [vmem:[%s3 + $0x48] sm:$0xff] %v1080
  %1106 = vst [vmem:[%s3 + $0x50] sm:$0xff] %v1081
  %1107 = vst [vmem:[%s3 + $0x58] sm:$0xff] %v1082
  %1108 = vst [vmem:[%s3 + $0x60] sm:$0xff] %v1083
  %1109 = vst [vmem:[%s3 + $0x68] sm:$0xff] %v1084
  %1110 = vst [vmem:[%s3 + $0x70] sm:$0xff] %v1085
  %1111 = vst [vmem:[%s3 + $0x78] sm:$0xff] %v1086
  %1112 = vst [vmem:[%s3 + $0x80] sm:$0xff] %v1087
  %1113 = vst [vmem:[%s3 + $0x88] sm:$0xff] %v1088
  %1114 = vst [vmem:[%s3 + $0x90] sm:$0xff] %v1089
  %1115 = vst [vmem:[%s3 + $0x98] sm:$0xff] %v1090
  %1116 = vst [vmem:[%s3 + $0xa0] sm:$0xff] %v1091
  %1117 = vst [vmem:[%s3 + $0xa8] sm:$0xff] %v1092
  %1118 = vst [vmem:[%s3 + $0xb0] sm:$0xff] %v1093
  %1119 = vst [vmem:[%s3 + $0xb8] sm:$0xff] %v1094
  %1120 = vst [vmem:[%s3 + $0xc0] sm:$0xff] %v1095
  %s1121 = smul.u32 0, 200
  %v1122 = vlaneseq
  %v1123 = vshrl.u32 %v1122, 7
  %v1124 = vadd.s32 %v1123, 8
  %v1125 = vadd.s32 %v1123, 16
  %v1126 = vadd.s32 %v1123, 24
  %v1127 = vadd.s32 %v1123, 32
  %v1128 = vadd.s32 %v1123, 40
  %v1129 = vadd.s32 %v1123, 48
  %v1130 = vadd.s32 %v1123, 56
  %v1131 = vadd.s32 %v1123, 64
  %v1132 = vadd.s32 %v1123, 72
  %v1133 = vadd.s32 %v1123, 80
  %v1134 = vadd.s32 %v1123, 88
  %v1135 = vadd.s32 %v1123, 96
  %v1136 = vadd.s32 %v1123, 104
  %v1137 = vadd.s32 %v1123, 112
  %v1138 = vadd.s32 %v1123, 120
  %v1139 = vadd.s32 %v1123, 128
  %v1140 = vadd.s32 %v1123, 136
  %v1141 = vadd.s32 %v1123, 144
  %v1142 = vadd.s32 %v1123, 152
  %v1143 = vadd.s32 %v1123, 160
  %v1144 = vadd.s32 %v1123, 168
  %v1145 = vadd.s32 %v1123, 176
  %v1146 = vadd.s32 %v1123, 184
  %v1147 = vadd.s32 %v1123, 192
  %v1148 = vstv %s1121
  %v1149 = vadd.s32 %v1148, %v1123
  %v1150 = vadd.s32 %v1148, %v1124
  %v1151 = vadd.s32 %v1148, %v1125
  %v1152 = vadd.s32 %v1148, %v1126
  %v1153 = vadd.s32 %v1148, %v1127
  %v1154 = vadd.s32 %v1148, %v1128
  %v1155 = vadd.s32 %v1148, %v1129
  %v1156 = vadd.s32 %v1148, %v1130
  %v1157 = vadd.s32 %v1148, %v1131
  %v1158 = vadd.s32 %v1148, %v1132
  %v1159 = vadd.s32 %v1148, %v1133
  %v1160 = vadd.s32 %v1148, %v1134
  %v1161 = vadd.s32 %v1148, %v1135
  %v1162 = vadd.s32 %v1148, %v1136
  %v1163 = vadd.s32 %v1148, %v1137
  %v1164 = vadd.s32 %v1148, %v1138
  %v1165 = vadd.s32 %v1148, %v1139
  %v1166 = vadd.s32 %v1148, %v1140
  %v1167 = vadd.s32 %v1148, %v1141
  %v1168 = vadd.s32 %v1148, %v1142
  %v1169 = vadd.s32 %v1148, %v1143
  %v1170 = vadd.s32 %v1148, %v1144
  %v1171 = vadd.s32 %v1148, %v1145
  %v1172 = vadd.s32 %v1148, %v1146
  %v1173 = vadd.s32 %v1148, %v1147
  %vm1174 = vcmp.lt.s32.totalorder %v1149, 196
  %vm1175 = vcmp.lt.s32.totalorder %v1150, 196
  %vm1176 = vcmp.lt.s32.totalorder %v1151, 196
  %vm1177 = vcmp.lt.s32.totalorder %v1152, 196
  %vm1178 = vcmp.lt.s32.totalorder %v1153, 196
  %vm1179 = vcmp.lt.s32.totalorder %v1154, 196
  %vm1180 = vcmp.lt.s32.totalorder %v1155, 196
  %vm1181 = vcmp.lt.s32.totalorder %v1156, 196
  %vm1182 = vcmp.lt.s32.totalorder %v1157, 196
  %vm1183 = vcmp.lt.s32.totalorder %v1158, 196
  %vm1184 = vcmp.lt.s32.totalorder %v1159, 196
  %vm1185 = vcmp.lt.s32.totalorder %v1160, 196
  %vm1186 = vcmp.lt.s32.totalorder %v1161, 196
  %vm1187 = vcmp.lt.s32.totalorder %v1162, 196
  %vm1188 = vcmp.lt.s32.totalorder %v1163, 196
  %vm1189 = vcmp.lt.s32.totalorder %v1164, 196
  %vm1190 = vcmp.lt.s32.totalorder %v1165, 196
  %vm1191 = vcmp.lt.s32.totalorder %v1166, 196
  %vm1192 = vcmp.lt.s32.totalorder %v1167, 196
  %vm1193 = vcmp.lt.s32.totalorder %v1168, 196
  %vm1194 = vcmp.lt.s32.totalorder %v1169, 196
  %vm1195 = vcmp.lt.s32.totalorder %v1170, 196
  %vm1196 = vcmp.lt.s32.totalorder %v1171, 196
  %vm1197 = vcmp.lt.s32.totalorder %v1172, 196
  %vm1198 = vcmp.lt.s32.totalorder %v1173, 196
  %v1199 = vsel %vm1174, 1, 0
  %v1200 = vsel %vm1175, 1, 0
  %v1201 = vsel %vm1176, 1, 0
  %v1202 = vsel %vm1177, 1, 0
  %v1203 = vsel %vm1178, 1, 0
  %v1204 = vsel %vm1179, 1, 0
  %v1205 = vsel %vm1180, 1, 0
  %v1206 = vsel %vm1181, 1, 0
  %v1207 = vsel %vm1182, 1, 0
  %v1208 = vsel %vm1183, 1, 0
  %v1209 = vsel %vm1184, 1, 0
  %v1210 = vsel %vm1185, 1, 0
  %v1211 = vsel %vm1186, 1, 0
  %v1212 = vsel %vm1187, 1, 0
  %v1213 = vsel %vm1188, 1, 0
  %v1214 = vsel %vm1189, 1, 0
  %v1215 = vsel %vm1190, 1, 0
  %v1216 = vsel %vm1191, 1, 0
  %v1217 = vsel %vm1192, 1, 0
  %v1218 = vsel %vm1193, 1, 0
  %v1219 = vsel %vm1194, 1, 0
  %v1220 = vsel %vm1195, 1, 0
  %v1221 = vsel %vm1196, 1, 0
  %v1222 = vsel %vm1197, 1, 0
  %v1223 = vsel %vm1198, 1, 0
  %vm1224 = vcmp.eq.s32.totalorder %v1199, 1
  %vm1225 = vcmp.eq.s32.totalorder %v1200, 1
  %vm1226 = vcmp.eq.s32.totalorder %v1201, 1
  %vm1227 = vcmp.eq.s32.totalorder %v1202, 1
  %vm1228 = vcmp.eq.s32.totalorder %v1203, 1
  %vm1229 = vcmp.eq.s32.totalorder %v1204, 1
  %vm1230 = vcmp.eq.s32.totalorder %v1205, 1
  %vm1231 = vcmp.eq.s32.totalorder %v1206, 1
  %vm1232 = vcmp.eq.s32.totalorder %v1207, 1
  %vm1233 = vcmp.eq.s32.totalorder %v1208, 1
  %vm1234 = vcmp.eq.s32.totalorder %v1209, 1
  %vm1235 = vcmp.eq.s32.totalorder %v1210, 1
  %vm1236 = vcmp.eq.s32.totalorder %v1211, 1
  %vm1237 = vcmp.eq.s32.totalorder %v1212, 1
  %vm1238 = vcmp.eq.s32.totalorder %v1213, 1
  %vm1239 = vcmp.eq.s32.totalorder %v1214, 1
  %vm1240 = vcmp.eq.s32.totalorder %v1215, 1
  %vm1241 = vcmp.eq.s32.totalorder %v1216, 1
  %vm1242 = vcmp.eq.s32.totalorder %v1217, 1
  %vm1243 = vcmp.eq.s32.totalorder %v1218, 1
  %vm1244 = vcmp.eq.s32.totalorder %v1219, 1
  %vm1245 = vcmp.eq.s32.totalorder %v1220, 1
  %vm1246 = vcmp.eq.s32.totalorder %v1221, 1
  %vm1247 = vcmp.eq.s32.totalorder %v1222, 1
  %vm1248 = vcmp.eq.s32.totalorder %v1223, 1
  %v1249 = vsel %vm1224, %v1071, 0.0
  %v1250 = vsel %vm1225, %v1072, 0.0
  %v1251 = vsel %vm1226, %v1073, 0.0
  %v1252 = vsel %vm1227, %v1074, 0.0
  %v1253 = vsel %vm1228, %v1075, 0.0
  %v1254 = vsel %vm1229, %v1076, 0.0
  %v1255 = vsel %vm1230, %v1077, 0.0
  %v1256 = vsel %vm1231, %v1078, 0.0
  %v1257 = vsel %vm1232, %v1079, 0.0
  %v1258 = vsel %vm1233, %v1080, 0.0
  %v1259 = vsel %vm1234, %v1081, 0.0
  %v1260 = vsel %vm1235, %v1082, 0.0
  %v1261 = vsel %vm1236, %v1083, 0.0
  %v1262 = vsel %vm1237, %v1084, 0.0
  %v1263 = vsel %vm1238, %v1085, 0.0
  %v1264 = vsel %vm1239, %v1086, 0.0
  %v1265 = vsel %vm1240, %v1087, 0.0
  %v1266 = vsel %vm1241, %v1088, 0.0
  %v1267 = vsel %vm1242, %v1089, 0.0
  %v1268 = vsel %vm1243, %v1090, 0.0
  %v1269 = vsel %vm1244, %v1091, 0.0
  %v1270 = vsel %vm1245, %v1092, 0.0
  %v1271 = vsel %vm1246, %v1093, 0.0
  %v1272 = vsel %vm1247, %v1094, 0.0
  %v1273 = vsel %vm1248, %v1095, 0.0
  %v1274 = vadd.f32 %v1249, %v1250
  %v1275 = vadd.f32 %v1274, %v1251
  %v1276 = vadd.f32 %v1275, %v1252
  %v1277 = vadd.f32 %v1276, %v1253
  %v1278 = vadd.f32 %v1277, %v1254
  %v1279 = vadd.f32 %v1278, %v1255
  %v1280 = vadd.f32 %v1279, %v1256
  %v1281 = vadd.f32 %v1280, %v1257
  %v1282 = vadd.f32 %v1281, %v1258
  %v1283 = vadd.f32 %v1282, %v1259
  %v1284 = vadd.f32 %v1283, %v1260
  %v1285 = vadd.f32 %v1284, %v1261
  %v1286 = vadd.f32 %v1285, %v1262
  %v1287 = vadd.f32 %v1286, %v1263
  %v1288 = vadd.f32 %v1287, %v1264
  %v1289 = vadd.f32 %v1288, %v1265
  %v1290 = vadd.f32 %v1289, %v1266
  %v1291 = vadd.f32 %v1290, %v1267
  %v1292 = vadd.f32 %v1291, %v1268
  %v1293 = vadd.f32 %v1292, %v1269
  %v1294 = vadd.f32 %v1293, %v1270
  %v1295 = vadd.f32 %v1294, %v1271
  %v1296 = vadd.f32 %v1295, %v1272
  %v1297 = vadd.f32 %v1296, %v1273
  %v1298 = vrot.slane %v1297, 4
  %v1299 = vadd.f32 %v1297, %v1298
  %v1300 = vrot.slane %v1299, 2
  %v1301 = vadd.f32 %v1299, %v1300
  %v1302 = vrot.slane %v1301, 1
  %v1303 = vadd.f32 %v1301, %v1302
  %1304 = vst [vmem:[%s4] sm:$0x1] %v1303
  %v1305 = vmul.f32 %v1249, %v1249
  %v1306 = vmul.f32 %v1250, %v1250
  %v1307 = vmul.f32 %v1251, %v1251
  %v1308 = vmul.f32 %v1252, %v1252
  %v1309 = vmul.f32 %v1253, %v1253
  %v1310 = vmul.f32 %v1254, %v1254
  %v1311 = vmul.f32 %v1255, %v1255
  %v1312 = vmul.f32 %v1256, %v1256
  %v1313 = vmul.f32 %v1257, %v1257
  %v1314 = vmul.f32 %v1258, %v1258
  %v1315 = vmul.f32 %v1259, %v1259
  %v1316 = vmul.f32 %v1260, %v1260
  %v1317 = vmul.f32 %v1261, %v1261
  %v1318 = vmul.f32 %v1262, %v1262
  %v1319 = vmul.f32 %v1263, %v1263
  %v1320 = vmul.f32 %v1264, %v1264
  %v1321 = vmul.f32 %v1265, %v1265
  %v1322 = vmul.f32 %v1266, %v1266
  %v1323 = vmul.f32 %v1267, %v1267
  %v1324 = vmul.f32 %v1268, %v1268
  %v1325 = vmul.f32 %v1269, %v1269
  %v1326 = vmul.f32 %v1270, %v1270
  %v1327 = vmul.f32 %v1271, %v1271
  %v1328 = vmul.f32 %v1272, %v1272
  %v1329 = vmul.f32 %v1273, %v1273
  %v1330 = vadd.f32 %v1305, %v1306
  %v1331 = vadd.f32 %v1330, %v1307
  %v1332 = vadd.f32 %v1331, %v1308
  %v1333 = vadd.f32 %v1332, %v1309
  %v1334 = vadd.f32 %v1333, %v1310
  %v1335 = vadd.f32 %v1334, %v1311
  %v1336 = vadd.f32 %v1335, %v1312
  %v1337 = vadd.f32 %v1336, %v1313
  %v1338 = vadd.f32 %v1337, %v1314
  %v1339 = vadd.f32 %v1338, %v1315
  %v1340 = vadd.f32 %v1339, %v1316
  %v1341 = vadd.f32 %v1340, %v1317
  %v1342 = vadd.f32 %v1341, %v1318
  %v1343 = vadd.f32 %v1342, %v1319
  %v1344 = vadd.f32 %v1343, %v1320
  %v1345 = vadd.f32 %v1344, %v1321
  %v1346 = vadd.f32 %v1345, %v1322
  %v1347 = vadd.f32 %v1346, %v1323
  %v1348 = vadd.f32 %v1347, %v1324
  %v1349 = vadd.f32 %v1348, %v1325
  %v1350 = vadd.f32 %v1349, %v1326
  %v1351 = vadd.f32 %v1350, %v1327
  %v1352 = vadd.f32 %v1351, %v1328
  %v1353 = vadd.f32 %v1352, %v1329
  %v1354 = vrot.slane %v1353, 4
  %v1355 = vadd.f32 %v1353, %v1354
  %v1356 = vrot.slane %v1355, 2
  %v1357 = vadd.f32 %v1355, %v1356
  %v1358 = vrot.slane %v1357, 1
  %v1359 = vadd.f32 %v1357, %v1358
  %1360 = vst [vmem:[%s5] sm:$0x1] %v1359
  // Predicated region
  $region14: #{net_forward.6} parent=0 // pred_check
    _
  $region15: #{net_forward.6} parent=0 // pred_check_branch
    %1362 = sbr.rel (0) target = $region17
  $region16: #{net_forward.6} parent=0 // pred_region
    _
  $region17: #{net_forward.6} parent=0 // pred_fallthru
    _
  // Predicated region
  $region18: #{net_forward.6} parent=0 // pred_check
    _
  $region19: #{net_forward.6} parent=0 // pred_check_branch
    %1364 = sbr.rel (0) target = $region21
  $region20: #{net_forward.6} parent=0 // pred_region
    _
  $region21: #{net_forward.6} parent=0 // pred_fallthru
    _
  // Predicated region
  $region22: #{net_forward.6} parent=0 // pred_check
    _
  $region23: #{net_forward.6} parent=0 // pred_check_branch
    %1366 = sbr.rel (0) target = $region25
  $region24: #{net_forward.6} parent=0 // pred_region
    _
  $region25: #{net_forward.6} parent=0 // pred_fallthru
    _
  // Predicated region
  $region26: #{net_forward.6} parent=0 // pred_check
    _
  $region27: #{net_forward.6} parent=0 // pred_check_branch
    %1368 = sbr.rel (0) target = $region29
  $region28: #{net_forward.6} parent=0 // pred_region
    _
  $region29: #{net_forward.6} parent=0 // pred_fallthru
    _
  // Predicated region
  $region30: #{net_forward.6} parent=0 // pred_check
    _
  $region31: #{net_forward.6} parent=0 // pred_check_branch
    %1370 = sbr.rel (0) target = $region33
  $region32: #{net_forward.6} parent=0 // pred_region
    _
  $region33: #{net_forward.6} parent=0 // pred_fallthru
    _
  // Predicated region
  $region34: #{net_forward.6} parent=0 // pred_check
    _
  $region35: #{net_forward.6} parent=0 // pred_check_branch
    %1372 = sbr.rel (0) target = $region37
  $region36: #{net_forward.6} parent=0 // pred_region
    _
  $region37: #{net_forward.6} parent=0 // pred_fallthru
    _

// kernel: net_forward.7
$region0: #{net_forward.7}
  #allocation0 [shape = 'u32[]', space=smem, size = 0x4, offset = 0x4, fixed_abs, tag = 'smem constant byte address 0x4 - core index']
  #allocation1 [shape = 'u32[144,128]{1,0:T(1,128)}', space=vmem, size = 0x12000, scoped, tag = 'internal scratch']
  %s0 = inlined_call_operand.vmem [shape: f32[64,640], index: 0, kind: input, shape index: {}]
  %s1 = inlined_call_operand.vmem [shape: f32[640,128], index: 1, kind: input, shape index: {}]
  %s2 = inlined_call_operand.vmem [shape: f32[1,128], index: 2, kind: input, shape index: {}]
  %s3 = inlined_call_operand.vmem [shape: f32[64,128], index: 3, kind: output, shape index: {0}]
  %s4 = inlined_call_operand.vmem [shape: f32[1,1,128], index: 4, kind: output, shape index: {1}]
  %s5 = inlined_call_operand.vmem [shape: f32[1,1,128], index: 5, kind: output, shape index: {2}]
  %6 = xla_tuple %s3, %s4, %s5
  %s7 = sld [smem:[#allocation0]]
  $region38: #{net_forward.7} parent=0
    _
  %s9 = ssub.s32 1, %s7
  %s10 = scalar_select 0, %s9, %s7
  // Predicated region
  $region2: #{net_forward.7} parent=0 // pred_check
    _
  $region3: #{net_forward.7} parent=0 // pred_check_branch
    %12 = sbr.rel (0) target = $region5
  $region4: #{net_forward.7} parent=0 // pred_region
    _
  $region5: #{net_forward.7} parent=0 // pred_fallthru
    _
  // Predicated region
  $region6: #{net_forward.7} parent=0 // pred_check
    _
  $region7: #{net_forward.7} parent=0 // pred_check_branch
    %14 = sbr.rel (0) target = $region9
  $region8: #{net_forward.7} parent=0 // pred_region
    _
  $region9: #{net_forward.7} parent=0 // pred_fallthru
    _
  // Predicated region
  $region10: #{net_forward.7} parent=0 // pred_check
    _
  $region11: #{net_forward.7} parent=0 // pred_check_branch
    %16 = sbr.rel (0) target = $region13
  $region12: #{net_forward.7} parent=0 // pred_region
    _
  $region13: #{net_forward.7} parent=0 // pred_fallthru
    _
  %v17 = vld [vmem:[%s0] sm:$0xff]
  %v18 = vld [vmem:[%s0 + $0x8] sm:$0xff]
  %v19 = vld [vmem:[%s0 + $0x10] sm:$0xff]
  %v20 = vld [vmem:[%s0 + $0x18] sm:$0xff]
  %v21 = vld [vmem:[%s0 + $0x20] sm:$0xff]
  %v22 = vld [vmem:[%s0 + $0x28] sm:$0xff]
  %v23 = vld [vmem:[%s0 + $0x30] sm:$0xff]
  %v24 = vld [vmem:[%s0 + $0x38] sm:$0xff]
  %v25 = vld [vmem:[%s0 + $0x40] sm:$0xff]
  %v26 = vld [vmem:[%s0 + $0x48] sm:$0xff]
  %v27 = vld [vmem:[%s0 + $0x50] sm:$0xff]
  %v28 = vld [vmem:[%s0 + $0x58] sm:$0xff]
  %v29 = vld [vmem:[%s0 + $0x60] sm:$0xff]
  %v30 = vld [vmem:[%s0 + $0x68] sm:$0xff]
  %v31 = vld [vmem:[%s0 + $0x70] sm:$0xff]
  %v32 = vld [vmem:[%s0 + $0x78] sm:$0xff]
  %v33 = vld [vmem:[%s0 + $0x80] sm:$0xff]
  %v34 = vld [vmem:[%s0 + $0x88] sm:$0xff]
  %v35 = vld [vmem:[%s0 + $0x90] sm:$0xff]
  %v36 = vld [vmem:[%s0 + $0x98] sm:$0xff]
  %v37 = vld [vmem:[%s0 + $0xa0] sm:$0xff]
  %v38 = vld [vmem:[%s0 + $0xa8] sm:$0xff]
  %v39 = vld [vmem:[%s0 + $0xb0] sm:$0xff]
  %v40 = vld [vmem:[%s0 + $0xb8] sm:$0xff]
  %v41 = vld [vmem:[%s0 + $0xc0] sm:$0xff]
  %v42 = vld [vmem:[%s0 + $0xc8] sm:$0xff]
  %v43 = vld [vmem:[%s0 + $0xd0] sm:$0xff]
  %v44 = vld [vmem:[%s0 + $0xd8] sm:$0xff]
  %v45 = vld [vmem:[%s0 + $0xe0] sm:$0xff]
  %v46 = vld [vmem:[%s0 + $0xe8] sm:$0xff]
  %v47 = vld [vmem:[%s0 + $0xf0] sm:$0xff]
  %v48 = vld [vmem:[%s0 + $0xf8] sm:$0xff]
  %v49 = vld [vmem:[%s0 + $0x100] sm:$0xff]
  %v50 = vld [vmem:[%s0 + $0x108] sm:$0xff]
  %v51 = vld [vmem:[%s0 + $0x110] sm:$0xff]
  %v52 = vld [vmem:[%s0 + $0x118] sm:$0xff]
  %v53 = vld [vmem:[%s0 + $0x120] sm:$0xff]
  %v54 = vld [vmem:[%s0 + $0x128] sm:$0xff]
  %v55 = vld [vmem:[%s0 + $0x130] sm:$0xff]
  %v56 = vld [vmem:[%s0 + $0x138] sm:$0xff]
  %v57 = vld [vmem:[%s1] sm:$0xff]
  %v58 = vld [vmem:[%s1 + $0x8] sm:$0xff]
  %v59 = vld [vmem:[%s1 + $0x10] sm:$0xff]
  %v60 = vld [vmem:[%s1 + $0x18] sm:$0xff]
  %v61 = vld [vmem:[%s1 + $0x20] sm:$0xff]
  %v62 = vld [vmem:[%s1 + $0x28] sm:$0xff]
  %v63 = vld [vmem:[%s1 + $0x30] sm:$0xff]
  %v64 = vld [vmem:[%s1 + $0x38] sm:$0xff]
  %v65 = vld [vmem:[%s1 + $0x40] sm:$0xff]
  %v66 = vld [vmem:[%s1 + $0x48] sm:$0xff]
  %v67 = vld [vmem:[%s1 + $0x50] sm:$0xff]
  %v68 = vld [vmem:[%s1 + $0x58] sm:$0xff]
  %v69 = vld [vmem:[%s1 + $0x60] sm:$0xff]
  %v70 = vld [vmem:[%s1 + $0x68] sm:$0xff]
  %v71 = vld [vmem:[%s1 + $0x70] sm:$0xff]
  %v72 = vld [vmem:[%s1 + $0x78] sm:$0xff]
  %v73 = vld [vmem:[%s1 + $0x80] sm:$0xff]
  %v74 = vld [vmem:[%s1 + $0x88] sm:$0xff]
  %v75 = vld [vmem:[%s1 + $0x90] sm:$0xff]
  %v76 = vld [vmem:[%s1 + $0x98] sm:$0xff]
  %v77 = vld [vmem:[%s1 + $0xa0] sm:$0xff]
  %v78 = vld [vmem:[%s1 + $0xa8] sm:$0xff]
  %v79 = vld [vmem:[%s1 + $0xb0] sm:$0xff]
  %v80 = vld [vmem:[%s1 + $0xb8] sm:$0xff]
  %v81 = vld [vmem:[%s1 + $0xc0] sm:$0xff]
  %v82 = vld [vmem:[%s1 + $0xc8] sm:$0xff]
  %v83 = vld [vmem:[%s1 + $0xd0] sm:$0xff]
  %v84 = vld [vmem:[%s1 + $0xd8] sm:$0xff]
  %v85 = vld [vmem:[%s1 + $0xe0] sm:$0xff]
  %v86 = vld [vmem:[%s1 + $0xe8] sm:$0xff]
  %v87 = vld [vmem:[%s1 + $0xf0] sm:$0xff]
  %v88 = vld [vmem:[%s1 + $0xf8] sm:$0xff]
  %v89 = vld [vmem:[%s1 + $0x100] sm:$0xff]
  %v90 = vld [vmem:[%s1 + $0x108] sm:$0xff]
  %v91 = vld [vmem:[%s1 + $0x110] sm:$0xff]
  %v92 = vld [vmem:[%s1 + $0x118] sm:$0xff]
  %v93 = vld [vmem:[%s1 + $0x120] sm:$0xff]
  %v94 = vld [vmem:[%s1 + $0x128] sm:$0xff]
  %v95 = vld [vmem:[%s1 + $0x130] sm:$0xff]
  %v96 = vld [vmem:[%s1 + $0x138] sm:$0xff]
  %v97 = vld [vmem:[%s1 + $0x140] sm:$0xff]
  %v98 = vld [vmem:[%s1 + $0x148] sm:$0xff]
  %v99 = vld [vmem:[%s1 + $0x150] sm:$0xff]
  %v100 = vld [vmem:[%s1 + $0x158] sm:$0xff]
  %v101 = vld [vmem:[%s1 + $0x160] sm:$0xff]
  %v102 = vld [vmem:[%s1 + $0x168] sm:$0xff]
  %v103 = vld [vmem:[%s1 + $0x170] sm:$0xff]
  %v104 = vld [vmem:[%s1 + $0x178] sm:$0xff]
  %v105 = vld [vmem:[%s1 + $0x180] sm:$0xff]
  %v106 = vld [vmem:[%s1 + $0x188] sm:$0xff]
  %v107 = vld [vmem:[%s1 + $0x190] sm:$0xff]
  %v108 = vld [vmem:[%s1 + $0x198] sm:$0xff]
  %v109 = vld [vmem:[%s1 + $0x1a0] sm:$0xff]
  %v110 = vld [vmem:[%s1 + $0x1a8] sm:$0xff]
  %v111 = vld [vmem:[%s1 + $0x1b0] sm:$0xff]
  %v112 = vld [vmem:[%s1 + $0x1b8] sm:$0xff]
  %v113 = vld [vmem:[%s1 + $0x1c0] sm:$0xff]
  %v114 = vld [vmem:[%s1 + $0x1c8] sm:$0xff]
  %v115 = vld [vmem:[%s1 + $0x1d0] sm:$0xff]
  %v116 = vld [vmem:[%s1 + $0x1d8] sm:$0xff]
  %v117 = vld [vmem:[%s1 + $0x1e0] sm:$0xff]
  %v118 = vld [vmem:[%s1 + $0x1e8] sm:$0xff]
  %v119 = vld [vmem:[%s1 + $0x1f0] sm:$0xff]
  %v120 = vld [vmem:[%s1 + $0x1f8] sm:$0xff]
  %v121 = vld [vmem:[%s1 + $0x200] sm:$0xff]
  %v122 = vld [vmem:[%s1 + $0x208] sm:$0xff]
  %v123 = vld [vmem:[%s1 + $0x210] sm:$0xff]
  %v124 = vld [vmem:[%s1 + $0x218] sm:$0xff]
  %v125 = vld [vmem:[%s1 + $0x220] sm:$0xff]
  %v126 = vld [vmem:[%s1 + $0x228] sm:$0xff]
  %v127 = vld [vmem:[%s1 + $0x230] sm:$0xff]
  %v128 = vld [vmem:[%s1 + $0x238] sm:$0xff]
  %v129 = vld [vmem:[%s1 + $0x240] sm:$0xff]
  %v130 = vld [vmem:[%s1 + $0x248] sm:$0xff]
  %v131 = vld [vmem:[%s1 + $0x250] sm:$0xff]
  %v132 = vld [vmem:[%s1 + $0x258] sm:$0xff]
  %v133 = vld [vmem:[%s1 + $0x260] sm:$0xff]
  %v134 = vld [vmem:[%s1 + $0x268] sm:$0xff]
  %v135 = vld [vmem:[%s1 + $0x270] sm:$0xff]
  %v136 = vld [vmem:[%s1 + $0x278] sm:$0xff]
  %v137 = vld [vmem:[%s2] sm:$0x1]
  %v139 = vlaneseq
  %v140 = vshrl.u32 %v139, 7
  %v141 = vsub.s32 0, %v140
  %v142 = vrot.slane %v137, %v141
  %144 = vmatprep.subr.mxu0 0.0
  %145 = vmatpush1.msra.mxu0 %v72
  %146 = vmatprep.subr.mxu0 0.0
  %147 = vmatpush1.msra.mxu0 %v71
  %148 = vmatprep.subr.mxu0 0.0
  %149 = vmatpush1.msra.mxu0 %v70
  %150 = vmatprep.subr.mxu0 0.0
  %151 = vmatpush1.msra.mxu0 %v69
  %152 = vmatprep.subr.mxu0 0.0
  %153 = vmatpush1.msra.mxu0 %v68
  %154 = vmatprep.subr.mxu0 0.0
  %155 = vmatpush1.msra.mxu0 %v67
  %156 = vmatprep.subr.mxu0 0.0
  %157 = vmatpush1.msra.mxu0 %v66
  %158 = vmatprep.subr.mxu0 0.0
  %159 = vmatpush1.msra.mxu0 %v65
  %160 = vmatprep.subr.mxu0 0.0
  %161 = vmatpush1.msra.mxu0 %v64
  %162 = vmatprep.subr.mxu0 0.0
  %163 = vmatpush1.msra.mxu0 %v63
  %164 = vmatprep.subr.mxu0 0.0
  %165 = vmatpush1.msra.mxu0 %v62
  %166 = vmatprep.subr.mxu0 0.0
  %167 = vmatpush1.msra.mxu0 %v61
  %168 = vmatprep.subr.mxu0 0.0
  %169 = vmatpush1.msra.mxu0 %v60
  %170 = vmatprep.subr.mxu0 0.0
  %171 = vmatpush1.msra.mxu0 %v59
  %172 = vmatprep.subr.mxu0 0.0
  %173 = vmatpush1.msra.mxu0 %v58
  %174 = vmatprep.subr.mxu0 0.0
  %175 = vmatpush1.msra.mxu0 %v57
  %176 = vmatprep.subr.mxu0 0.0
  %177 = vmatpush2.msra.mxu0 %v88
  %178 = vmatprep.subr.mxu0 0.0
  %179 = vmatpush2.msra.mxu0 %v87
  %180 = vmatprep.subr.mxu0 0.0
  %181 = vmatpush2.msra.mxu0 %v86
  %182 = vmatprep.subr.mxu0 0.0
  %183 = vmatpush2.msra.mxu0 %v85
  %184 = vmatprep.subr.mxu0 0.0
  %185 = vmatpush2.msra.mxu0 %v84
  %186 = vmatprep.subr.mxu0 0.0
  %187 = vmatpush2.msra.mxu0 %v83
  %188 = vmatprep.subr.mxu0 0.0
  %189 = vmatpush2.msra.mxu0 %v82
  %190 = vmatprep.subr.mxu0 0.0
  %191 = vmatpush2.msra.mxu0 %v81
  %192 = vmatprep.subr.mxu0 0.0
  %193 = vmatpush2.msra.mxu0 %v80
  %194 = vmatprep.subr.mxu0 0.0
  %195 = vmatpush2.msra.mxu0 %v79
  %196 = vmatprep.subr.mxu0 0.0
  %197 = vmatpush2.msra.mxu0 %v78
  %198 = vmatprep.subr.mxu0 0.0
  %199 = vmatpush2.msra.mxu0 %v77
  %200 = vmatprep.subr.mxu0 0.0
  %201 = vmatpush2.msra.mxu0 %v76
  %202 = vmatprep.subr.mxu0 0.0
  %203 = vmatpush2.msra.mxu0 %v75
  %204 = vmatprep.subr.mxu0 0.0
  %205 = vmatpush2.msra.mxu0 %v74
  %206 = vmatprep.subr.mxu0 0.0
  %207 = vmatpush2.msra.mxu0 %v73
  %208 = vmatprep.mubr.f32.mxu0 %v18
  %209 = vmatmul.mubr.f32.gmra.mxu0 %v17
  %v210 = vpop.f32.mrf.mxu0
  %v211 = vadd.f32 %v142, %v210
  %v212 = vpop.f32.mrf.mxu0
  %213 = vmatprep.mubr.f32.mxu0 %v23
  %214 = vmatmul.mubr.f32.gmra.mxu0 %v22
  %v215 = vpop.f32.mrf.mxu0
  %v216 = vadd.f32 %v142, %v215
  %v217 = vpop.f32.mrf.mxu0
  %218 = vmatprep.mubr.f32.mxu0 %v28
  %219 = vmatmul.mubr.f32.gmra.mxu0 %v27
  %v220 = vpop.f32.mrf.mxu0
  %v221 = vadd.f32 %v142, %v220
  %v222 = vpop.f32.mrf.mxu0
  %223 = vmatprep.mubr.f32.mxu0 %v33
  %224 = vmatmul.mubr.f32.gmra.mxu0 %v32
  %v225 = vpop.f32.mrf.mxu0
  %v226 = vadd.f32 %v142, %v225
  %v227 = vpop.f32.mrf.mxu0
  %228 = vmatprep.mubr.f32.mxu0 %v38
  %229 = vmatmul.mubr.f32.gmra.mxu0 %v37
  %v230 = vpop.f32.mrf.mxu0
  %v231 = vadd.f32 %v142, %v230
  %v232 = vpop.f32.mrf.mxu0
  %233 = vmatprep.mubr.f32.mxu0 %v43
  %234 = vmatmul.mubr.f32.gmra.mxu0 %v42
  %v235 = vpop.f32.mrf.mxu0
  %v236 = vadd.f32 %v142, %v235
  %v237 = vpop.f32.mrf.mxu0
  %238 = vmatprep.mubr.f32.mxu0 %v48
  %239 = vmatmul.mubr.f32.gmra.mxu0 %v47
  %v240 = vpop.f32.mrf.mxu0
  %v241 = vadd.f32 %v142, %v240
  %v242 = vpop.f32.mrf.mxu0
  %243 = vmatprep.mubr.f32.mxu0 %v53
  %244 = vmatmul.mubr.f32.gmra.mxu0 %v52
  %v245 = vpop.f32.mrf.mxu0
  %v246 = vadd.f32 %v142, %v245
  %v247 = vpop.f32.mrf.mxu0
  %248 = vdwg.mxu0
  %249 = vmatprep.subr.mxu0 0.0
  %250 = vmatpush1.msra.mxu0 %v104
  %251 = vmatprep.subr.mxu0 0.0
  %252 = vmatpush1.msra.mxu0 %v103
  %253 = vmatprep.subr.mxu0 0.0
  %254 = vmatpush1.msra.mxu0 %v102
  %255 = vmatprep.subr.mxu0 0.0
  %256 = vmatpush1.msra.mxu0 %v101
  %257 = vmatprep.subr.mxu0 0.0
  %258 = vmatpush1.msra.mxu0 %v100
  %259 = vmatprep.subr.mxu0 0.0
  %260 = vmatpush1.msra.mxu0 %v99
  %261 = vmatprep.subr.mxu0 0.0
  %262 = vmatpush1.msra.mxu0 %v98
  %263 = vmatprep.subr.mxu0 0.0
  %264 = vmatpush1.msra.mxu0 %v97
  %265 = vmatprep.subr.mxu0 0.0
  %266 = vmatpush1.msra.mxu0 %v96
  %267 = vmatprep.subr.mxu0 0.0
  %268 = vmatpush1.msra.mxu0 %v95
  %269 = vmatprep.subr.mxu0 0.0
  %270 = vmatpush1.msra.mxu0 %v94
  %271 = vmatprep.subr.mxu0 0.0
  %272 = vmatpush1.msra.mxu0 %v93
  %273 = vmatprep.subr.mxu0 0.0
  %274 = vmatpush1.msra.mxu0 %v92
  %275 = vmatprep.subr.mxu0 0.0
  %276 = vmatpush1.msra.mxu0 %v91
  %277 = vmatprep.subr.mxu0 0.0
  %278 = vmatpush1.msra.mxu0 %v90
  %279 = vmatprep.subr.mxu0 0.0
  %280 = vmatpush1.msra.mxu0 %v89
  %281 = vmatprep.subr.mxu0 0.0
  %282 = vmatpush2.msra.mxu0 %v120
  %283 = vmatprep.subr.mxu0 0.0
  %284 = vmatpush2.msra.mxu0 %v119
  %285 = vmatprep.subr.mxu0 0.0
  %286 = vmatpush2.msra.mxu0 %v118
  %287 = vmatprep.subr.mxu0 0.0
  %288 = vmatpush2.msra.mxu0 %v117
  %289 = vmatprep.subr.mxu0 0.0
  %290 = vmatpush2.msra.mxu0 %v116
  %291 = vmatprep.subr.mxu0 0.0
  %292 = vmatpush2.msra.mxu0 %v115
  %293 = vmatprep.subr.mxu0 0.0
  %294 = vmatpush2.msra.mxu0 %v114
  %295 = vmatprep.subr.mxu0 0.0
  %296 = vmatpush2.msra.mxu0 %v113
  %297 = vmatprep.subr.mxu0 0.0
  %298 = vmatpush2.msra.mxu0 %v112
  %299 = vmatprep.subr.mxu0 0.0
  %300 = vmatpush2.msra.mxu0 %v111
  %301 = vmatprep.subr.mxu0 0.0
  %302 = vmatpush2.msra.mxu0 %v110
  %303 = vmatprep.subr.mxu0 0.0
  %304 = vmatpush2.msra.mxu0 %v109
  %305 = vmatprep.subr.mxu0 0.0
  %306 = vmatpush2.msra.mxu0 %v108
  %307 = vmatprep.subr.mxu0 0.0
  %308 = vmatpush2.msra.mxu0 %v107
  %309 = vmatprep.subr.mxu0 0.0
  %310 = vmatpush2.msra.mxu0 %v106
  %311 = vmatprep.subr.mxu0 0.0
  %312 = vmatpush2.msra.mxu0 %v105
  %313 = vmatprep.mubr.f32.mxu0 %v20
  %314 = vmatmul.mubr.f32.gmra.mxu0 %v19
  %v315 = vpop.f32.mrf.mxu0
  %v316 = vadd.f32 %v211, %v315
  %v317 = vpop.f32.mrf.mxu0
  %318 = vmatprep.mubr.f32.mxu0 %v25
  %319 = vmatmul.mubr.f32.gmra.mxu0 %v24
  %v320 = vpop.f32.mrf.mxu0
  %v321 = vadd.f32 %v216, %v320
  %v322 = vpop.f32.mrf.mxu0
  %323 = vmatprep.mubr.f32.mxu0 %v30
  %324 = vmatmul.mubr.f32.gmra.mxu0 %v29
  %v325 = vpop.f32.mrf.mxu0
  %v326 = vadd.f32 %v221, %v325
  %v327 = vpop.f32.mrf.mxu0
  %328 = vmatprep.mubr.f32.mxu0 %v35
  %329 = vmatmul.mubr.f32.gmra.mxu0 %v34
  %v330 = vpop.f32.mrf.mxu0
  %v331 = vadd.f32 %v226, %v330
  %v332 = vpop.f32.mrf.mxu0
  %333 = vmatprep.mubr.f32.mxu0 %v40
  %334 = vmatmul.mubr.f32.gmra.mxu0 %v39
  %v335 = vpop.f32.mrf.mxu0
  %v336 = vadd.f32 %v231, %v335
  %v337 = vpop.f32.mrf.mxu0
  %338 = vmatprep.mubr.f32.mxu0 %v45
  %339 = vmatmul.mubr.f32.gmra.mxu0 %v44
  %v340 = vpop.f32.mrf.mxu0
  %v341 = vadd.f32 %v236, %v340
  %v342 = vpop.f32.mrf.mxu0
  %343 = vmatprep.mubr.f32.mxu0 %v50
  %344 = vmatmul.mubr.f32.gmra.mxu0 %v49
  %v345 = vpop.f32.mrf.mxu0
  %v346 = vadd.f32 %v241, %v345
  %v347 = vpop.f32.mrf.mxu0
  %348 = vmatprep.mubr.f32.mxu0 %v55
  %349 = vmatmul.mubr.f32.gmra.mxu0 %v54
  %v350 = vpop.f32.mrf.mxu0
  %v351 = vadd.f32 %v246, %v350
  %v352 = vpop.f32.mrf.mxu0
  %353 = vdwg.mxu0
  %354 = vmatprep.subr.mxu0 0.0
  %355 = vmatpush1.msra.mxu0 %v136
  %356 = vmatprep.subr.mxu0 0.0
  %357 = vmatpush1.msra.mxu0 %v135
  %358 = vmatprep.subr.mxu0 0.0
  %359 = vmatpush1.msra.mxu0 %v134
  %360 = vmatprep.subr.mxu0 0.0
  %361 = vmatpush1.msra.mxu0 %v133
  %362 = vmatprep.subr.mxu0 0.0
  %363 = vmatpush1.msra.mxu0 %v132
  %364 = vmatprep.subr.mxu0 0.0
  %365 = vmatpush1.msra.mxu0 %v131
  %366 = vmatprep.subr.mxu0 0.0
  %367 = vmatpush1.msra.mxu0 %v130
  %368 = vmatprep.subr.mxu0 0.0
  %369 = vmatpush1.msra.mxu0 %v129
  %370 = vmatprep.subr.mxu0 0.0
  %371 = vmatpush1.msra.mxu0 %v128
  %372 = vmatprep.subr.mxu0 0.0
  %373 = vmatpush1.msra.mxu0 %v127
  %374 = vmatprep.subr.mxu0 0.0
  %375 = vmatpush1.msra.mxu0 %v126
  %376 = vmatprep.subr.mxu0 0.0
  %377 = vmatpush1.msra.mxu0 %v125
  %378 = vmatprep.subr.mxu0 0.0
  %379 = vmatpush1.msra.mxu0 %v124
  %380 = vmatprep.subr.mxu0 0.0
  %381 = vmatpush1.msra.mxu0 %v123
  %382 = vmatprep.subr.mxu0 0.0
  %383 = vmatpush1.msra.mxu0 %v122
  %384 = vmatprep.subr.mxu0 0.0
  %385 = vmatpush1.msra.mxu0 %v121
  %386 = vmatprep.subr.mxu0 0.0
  %387 = vmatpush2.msra.mxu0 0.0
  %388 = vmatprep.subr.mxu0 0.0
  %389 = vmatpush2.msra.mxu0 0.0
  %390 = vmatprep.subr.mxu0 0.0
  %391 = vmatpush2.msra.mxu0 0.0
  %392 = vmatprep.subr.mxu0 0.0
  %393 = vmatpush2.msra.mxu0 0.0
  %394 = vmatprep.subr.mxu0 0.0
  %395 = vmatpush2.msra.mxu0 0.0
  %396 = vmatprep.subr.mxu0 0.0
  %397 = vmatpush2.msra.mxu0 0.0
  %398 = vmatprep.subr.mxu0 0.0
  %399 = vmatpush2.msra.mxu0 0.0
  %400 = vmatprep.subr.mxu0 0.0
  %401 = vmatpush2.msra.mxu0 0.0
  %402 = vmatprep.subr.mxu0 0.0
  %403 = vmatpush2.msra.mxu0 0.0
  %404 = vmatprep.subr.mxu0 0.0
  %405 = vmatpush2.msra.mxu0 0.0
  %406 = vmatprep.subr.mxu0 0.0
  %407 = vmatpush2.msra.mxu0 0.0
  %408 = vmatprep.subr.mxu0 0.0
  %409 = vmatpush2.msra.mxu0 0.0
  %410 = vmatprep.subr.mxu0 0.0
  %411 = vmatpush2.msra.mxu0 0.0
  %412 = vmatprep.subr.mxu0 0.0
  %413 = vmatpush2.msra.mxu0 0.0
  %414 = vmatprep.subr.mxu0 0.0
  %415 = vmatpush2.msra.mxu0 0.0
  %416 = vmatprep.subr.mxu0 0.0
  %417 = vmatpush2.msra.mxu0 0.0
  %418 = vmatprep.mubr.f32.mxu0 0.0
  %419 = vmatmul.mubr.f32.gmra.mxu0 %v21
  %v420 = vpop.f32.mrf.mxu0
  %v421 = vadd.f32 %v316, %v420
  %v422 = vpop.f32.mrf.mxu0
  %423 = vmatprep.mubr.f32.mxu0 0.0
  %424 = vmatmul.mubr.f32.gmra.mxu0 %v26
  %v425 = vpop.f32.mrf.mxu0
  %v426 = vadd.f32 %v321, %v425
  %v427 = vpop.f32.mrf.mxu0
  %428 = vmatprep.mubr.f32.mxu0 0.0
  %429 = vmatmul.mubr.f32.gmra.mxu0 %v31
  %v430 = vpop.f32.mrf.mxu0
  %v431 = vadd.f32 %v326, %v430
  %v432 = vpop.f32.mrf.mxu0
  %433 = vmatprep.mubr.f32.mxu0 0.0
  %434 = vmatmul.mubr.f32.gmra.mxu0 %v36
  %v435 = vpop.f32.mrf.mxu0
  %v436 = vadd.f32 %v331, %v435
  %v437 = vpop.f32.mrf.mxu0
  %438 = vmatprep.mubr.f32.mxu0 0.0
  %439 = vmatmul.mubr.f32.gmra.mxu0 %v41
  %v440 = vpop.f32.mrf.mxu0
  %v441 = vadd.f32 %v336, %v440
  %v442 = vpop.f32.mrf.mxu0
  %443 = vmatprep.mubr.f32.mxu0 0.0
  %444 = vmatmul.mubr.f32.gmra.mxu0 %v46
  %v445 = vpop.f32.mrf.mxu0
  %v446 = vadd.f32 %v341, %v445
  %v447 = vpop.f32.mrf.mxu0
  %448 = vmatprep.mubr.f32.mxu0 0.0
  %449 = vmatmul.mubr.f32.gmra.mxu0 %v51
  %v450 = vpop.f32.mrf.mxu0
  %v451 = vadd.f32 %v346, %v450
  %v452 = vpop.f32.mrf.mxu0
  %453 = vmatprep.mubr.f32.mxu0 0.0
  %454 = vmatmul.mubr.f32.gmra.mxu0 %v56
  %v455 = vpop.f32.mrf.mxu0
  %v456 = vadd.f32 %v351, %v455
  %v457 = vpop.f32.mrf.mxu0
  %458 = vdwg.mxu0
  %v459 = vmax.f32 %v421, 0.0
  %v460 = vmax.f32 %v426, 0.0
  %v461 = vmax.f32 %v431, 0.0
  %v462 = vmax.f32 %v436, 0.0
  %v463 = vmax.f32 %v441, 0.0
  %v464 = vmax.f32 %v446, 0.0
  %v465 = vmax.f32 %v451, 0.0
  %v466 = vmax.f32 %v456, 0.0
  %467 = vst [vmem:[%s3] sm:$0xff] %v459
  %468 = vst [vmem:[%s3 + $0x8] sm:$0xff] %v460
  %469 = vst [vmem:[%s3 + $0x10] sm:$0xff] %v461
  %470 = vst [vmem:[%s3 + $0x18] sm:$0xff] %v462
  %471 = vst [vmem:[%s3 + $0x20] sm:$0xff] %v463
  %472 = vst [vmem:[%s3 + $0x28] sm:$0xff] %v464
  %473 = vst [vmem:[%s3 + $0x30] sm:$0xff] %v465
  %474 = vst [vmem:[%s3 + $0x38] sm:$0xff] %v466
  %s475 = smul.u32 0, 64
  %v476 = vlaneseq
  %v477 = vshrl.u32 %v476, 7
  %v478 = vadd.s32 %v477, 8
  %v479 = vadd.s32 %v477, 16
  %v480 = vadd.s32 %v477, 24
  %v481 = vadd.s32 %v477, 32
  %v482 = vadd.s32 %v477, 40
  %v483 = vadd.s32 %v477, 48
  %v484 = vadd.s32 %v477, 56
  %v485 = vstv %s475
  %v486 = vadd.s32 %v485, %v477
  %v487 = vadd.s32 %v485, %v478
  %v488 = vadd.s32 %v485, %v479
  %v489 = vadd.s32 %v485, %v480
  %v490 = vadd.s32 %v485, %v481
  %v491 = vadd.s32 %v485, %v482
  %v492 = vadd.s32 %v485, %v483
  %v493 = vadd.s32 %v485, %v484
  %vm494 = vcmp.lt.s32.totalorder %v486, 60
  %vm495 = vcmp.lt.s32.totalorder %v487, 60
  %vm496 = vcmp.lt.s32.totalorder %v488, 60
  %vm497 = vcmp.lt.s32.totalorder %v489, 60
  %vm498 = vcmp.lt.s32.totalorder %v490, 60
  %vm499 = vcmp.lt.s32.totalorder %v491, 60
  %vm500 = vcmp.lt.s32.totalorder %v492, 60
  %vm501 = vcmp.lt.s32.totalorder %v493, 60
  %v502 = vsel %vm494, 1, 0
  %v503 = vsel %vm495, 1, 0
  %v504 = vsel %vm496, 1, 0
  %v505 = vsel %vm497, 1, 0
  %v506 = vsel %vm498, 1, 0
  %v507 = vsel %vm499, 1, 0
  %v508 = vsel %vm500, 1, 0
  %v509 = vsel %vm501, 1, 0
  %vm510 = vcmp.eq.s32.totalorder %v502, 1
  %vm511 = vcmp.eq.s32.totalorder %v503, 1
  %vm512 = vcmp.eq.s32.totalorder %v504, 1
  %vm513 = vcmp.eq.s32.totalorder %v505, 1
  %vm514 = vcmp.eq.s32.totalorder %v506, 1
  %vm515 = vcmp.eq.s32.totalorder %v507, 1
  %vm516 = vcmp.eq.s32.totalorder %v508, 1
  %vm517 = vcmp.eq.s32.totalorder %v509, 1
  %v518 = vsel %vm510, %v459, 0.0
  %v519 = vsel %vm511, %v460, 0.0
  %v520 = vsel %vm512, %v461, 0.0
  %v521 = vsel %vm513, %v462, 0.0
  %v522 = vsel %vm514, %v463, 0.0
  %v523 = vsel %vm515, %v464, 0.0
  %v524 = vsel %vm516, %v465, 0.0
  %v525 = vsel %vm517, %v466, 0.0
  %v526 = vadd.f32 %v518, %v519
  %v527 = vadd.f32 %v526, %v520
  %v528 = vadd.f32 %v527, %v521
  %v529 = vadd.f32 %v528, %v522
  %v530 = vadd.f32 %v529, %v523
  %v531 = vadd.f32 %v530, %v524
  %v532 = vadd.f32 %v531, %v525
  %v533 = vrot.slane %v532, 4
  %v534 = vadd.f32 %v532, %v533
  %v535 = vrot.slane %v534, 2
  %v536 = vadd.f32 %v534, %v535
  %v537 = vrot.slane %v536, 1
  %v538 = vadd.f32 %v536, %v537
  %539 = vst [vmem:[%s4] sm:$0x1] %v538
  %v540 = vmul.f32 %v518, %v518
  %v541 = vmul.f32 %v519, %v519
  %v542 = vmul.f32 %v520, %v520
  %v543 = vmul.f32 %v521, %v521
  %v544 = vmul.f32 %v522, %v522
  %v545 = vmul.f32 %v523, %v523
  %v546 = vmul.f32 %v524, %v524
  %v547 = vmul.f32 %v525, %v525
  %v548 = vadd.f32 %v540, %v541
  %v549 = vadd.f32 %v548, %v542
  %v550 = vadd.f32 %v549, %v543
  %v551 = vadd.f32 %v550, %v544
  %v552 = vadd.f32 %v551, %v545
  %v553 = vadd.f32 %v552, %v546
  %v554 = vadd.f32 %v553, %v547
  %v555 = vrot.slane %v554, 4
  %v556 = vadd.f32 %v554, %v555
  %v557 = vrot.slane %v556, 2
  %v558 = vadd.f32 %v556, %v557
  %v559 = vrot.slane %v558, 1
  %v560 = vadd.f32 %v558, %v559
  %561 = vst [vmem:[%s5] sm:$0x1] %v560
  // Predicated region
  $region14: #{net_forward.7} parent=0 // pred_check
    _
  $region15: #{net_forward.7} parent=0 // pred_check_branch
    %563 = sbr.rel (0) target = $region17
  $region16: #{net_forward.7} parent=0 // pred_region
    _
  $region17: #{net_forward.7} parent=0 // pred_fallthru
    _
  // Predicated region
  $region18: #{net_forward.7} parent=0 // pred_check
    _
  $region19: #{net_forward.7} parent=0 // pred_check_branch
    %565 = sbr.rel (0) target = $region21
  $region20: #{net_forward.7} parent=0 // pred_region
    _
  $region21: #{net_forward.7} parent=0 // pred_fallthru
    _
  // Predicated region
  $region22: #{net_forward.7} parent=0 // pred_check
    _
  $region23: #{net_forward.7} parent=0 // pred_check_branch
    %567 = sbr.rel (0) target = $region25
  $region24: #{net_forward.7} parent=0 // pred_region
    _
  $region25: #{net_forward.7} parent=0 // pred_fallthru
    _
  // Predicated region
  $region26: #{net_forward.7} parent=0 // pred_check
    _
  $region27: #{net_forward.7} parent=0 // pred_check_branch
    %569 = sbr.rel (0) target = $region29
  $region28: #{net_forward.7} parent=0 // pred_region
    _
  $region29: #{net_forward.7} parent=0 // pred_fallthru
    _
  // Predicated region
  $region30: #{net_forward.7} parent=0 // pred_check
    _
  $region31: #{net_forward.7} parent=0 // pred_check_branch
    %571 = sbr.rel (0) target = $region33
  $region32: #{net_forward.7} parent=0 // pred_region
    _
  $region33: #{net_forward.7} parent=0 // pred_fallthru
    _
  // Predicated region
  $region34: #{net_forward.7} parent=0 // pred_check
    _
  $region35: #{net_forward.7} parent=0 // pred_check_branch
    %573 = sbr.rel (0) target = $region37
  $region36: #{net_forward.7} parent=0 // pred_region
    _
  $region37: #{net_forward.7} parent=0 // pred_fallthru
    _

// kernel: net_forward.8
$region0: #{net_forward.8}
  #allocation0 [shape = 'u32[]', space=smem, size = 0x4, offset = 0x4, fixed_abs, tag = 'smem constant byte address 0x4 - core index']
  #allocation1 [shape = 'u32[144,128]{1,0:T(1,128)}', space=vmem, size = 0x12000, scoped, tag = 'internal scratch']
  %s0 = inlined_call_operand.vmem [shape: f32[32,384], index: 0, kind: input, shape index: {}]
  %s1 = inlined_call_operand.vmem [shape: f32[384,128], index: 1, kind: input, shape index: {}]
  %s2 = inlined_call_operand.vmem [shape: f32[1,128], index: 2, kind: input, shape index: {}]
  %s3 = inlined_call_operand.vmem [shape: f32[32,128], index: 3, kind: output, shape index: {0}]
  %s4 = inlined_call_operand.vmem [shape: f32[1,1,128], index: 4, kind: output, shape index: {1}]
  %s5 = inlined_call_operand.vmem [shape: f32[1,1,128], index: 5, kind: output, shape index: {2}]
  %6 = xla_tuple %s3, %s4, %s5
  %s7 = sld [smem:[#allocation0]]
  $region38: #{net_forward.8} parent=0
    _
  %s9 = ssub.s32 1, %s7
  %s10 = scalar_select 0, %s9, %s7
  // Predicated region
  $region2: #{net_forward.8} parent=0 // pred_check
    _
  $region3: #{net_forward.8} parent=0 // pred_check_branch
    %12 = sbr.rel (0) target = $region5
  $region4: #{net_forward.8} parent=0 // pred_region
    _
  $region5: #{net_forward.8} parent=0 // pred_fallthru
    _
  // Predicated region
  $region6: #{net_forward.8} parent=0 // pred_check
    _
  $region7: #{net_forward.8} parent=0 // pred_check_branch
    %14 = sbr.rel (0) target = $region9
  $region8: #{net_forward.8} parent=0 // pred_region
    _
  $region9: #{net_forward.8} parent=0 // pred_fallthru
    _
  // Predicated region
  $region10: #{net_forward.8} parent=0 // pred_check
    _
  $region11: #{net_forward.8} parent=0 // pred_check_branch
    %16 = sbr.rel (0) target = $region13
  $region12: #{net_forward.8} parent=0 // pred_region
    _
  $region13: #{net_forward.8} parent=0 // pred_fallthru
    _
  %v17 = vld [vmem:[%s0] sm:$0xff]
  %v18 = vld [vmem:[%s0 + $0x8] sm:$0xff]
  %v19 = vld [vmem:[%s0 + $0x10] sm:$0xff]
  %v20 = vld [vmem:[%s0 + $0x18] sm:$0xff]
  %v21 = vld [vmem:[%s0 + $0x20] sm:$0xff]
  %v22 = vld [vmem:[%s0 + $0x28] sm:$0xff]
  %v23 = vld [vmem:[%s0 + $0x30] sm:$0xff]
  %v24 = vld [vmem:[%s0 + $0x38] sm:$0xff]
  %v25 = vld [vmem:[%s0 + $0x40] sm:$0xff]
  %v26 = vld [vmem:[%s0 + $0x48] sm:$0xff]
  %v27 = vld [vmem:[%s0 + $0x50] sm:$0xff]
  %v28 = vld [vmem:[%s0 + $0x58] sm:$0xff]
  %v29 = vld [vmem:[%s1] sm:$0xff]
  %v30 = vld [vmem:[%s1 + $0x8] sm:$0xff]
  %v31 = vld [vmem:[%s1 + $0x10] sm:$0xff]
  %v32 = vld [vmem:[%s1 + $0x18] sm:$0xff]
  %v33 = vld [vmem:[%s1 + $0x20] sm:$0xff]
  %v34 = vld [vmem:[%s1 + $0x28] sm:$0xff]
  %v35 = vld [vmem:[%s1 + $0x30] sm:$0xff]
  %v36 = vld [vmem:[%s1 + $0x38] sm:$0xff]
  %v37 = vld [vmem:[%s1 + $0x40] sm:$0xff]
  %v38 = vld [vmem:[%s1 + $0x48] sm:$0xff]
  %v39 = vld [vmem:[%s1 + $0x50] sm:$0xff]
  %v40 = vld [vmem:[%s1 + $0x58] sm:$0xff]
  %v41 = vld [vmem:[%s1 + $0x60] sm:$0xff]
  %v42 = vld [vmem:[%s1 + $0x68] sm:$0xff]
  %v43 = vld [vmem:[%s1 + $0x70] sm:$0xff]
  %v44 = vld [vmem:[%s1 + $0x78] sm:$0xff]
  %v45 = vld [vmem:[%s1 + $0x80] sm:$0xff]
  %v46 = vld [vmem:[%s1 + $0x88] sm:$0xff]
  %v47 = vld [vmem:[%s1 + $0x90] sm:$0xff]
  %v48 = vld [vmem:[%s1 + $0x98] sm:$0xff]
  %v49 = vld [vmem:[%s1 + $0xa0] sm:$0xff]
  %v50 = vld [vmem:[%s1 + $0xa8] sm:$0xff]
  %v51 = vld [vmem:[%s1 + $0xb0] sm:$0xff]
  %v52 = vld [vmem:[%s1 + $0xb8] sm:$0xff]
  %v53 = vld [vmem:[%s1 + $0xc0] sm:$0xff]
  %v54 = vld [vmem:[%s1 + $0xc8] sm:$0xff]
  %v55 = vld [vmem:[%s1 + $0xd0] sm:$0xff]
  %v56 = vld [vmem:[%s1 + $0xd8] sm:$0xff]
  %v57 = vld [vmem:[%s1 + $0xe0] sm:$0xff]
  %v58 = vld [vmem:[%s1 + $0xe8] sm:$0xff]
  %v59 = vld [vmem:[%s1 + $0xf0] sm:$0xff]
  %v60 = vld [vmem:[%s1 + $0xf8] sm:$0xff]
  %v61 = vld [vmem:[%s1 + $0x100] sm:$0xff]
  %v62 = vld [vmem:[%s1 + $0x108] sm:$0xff]
  %v63 = vld [vmem:[%s1 + $0x110] sm:$0xff]
  %v64 = vld [vmem:[%s1 + $0x118] sm:$0xff]
  %v65 = vld [vmem:[%s1 + $0x120] sm:$0xff]
  %v66 = vld [vmem:[%s1 + $0x128] sm:$0xff]
  %v67 = vld [vmem:[%s1 + $0x130] sm:$0xff]
  %v68 = vld [vmem:[%s1 + $0x138] sm:$0xff]
  %v69 = vld [vmem:[%s1 + $0x140] sm:$0xff]
  %v70 = vld [vmem:[%s1 + $0x148] sm:$0xff]
  %v71 = vld [vmem:[%s1 + $0x150] sm:$0xff]
  %v72 = vld [vmem:[%s1 + $0x158] sm:$0xff]
  %v73 = vld [vmem:[%s1 + $0x160] sm:$0xff]
  %v74 = vld [vmem:[%s1 + $0x168] sm:$0xff]
  %v75 = vld [vmem:[%s1 + $0x170] sm:$0xff]
  %v76 = vld [vmem:[%s1 + $0x178] sm:$0xff]
  %v77 = vld [vmem:[%s2] sm:$0x1]
  %v79 = vlaneseq
  %v80 = vshrl.u32 %v79, 7
  %v81 = vsub.s32 0, %v80
  %v82 = vrot.slane %v77, %v81
  %84 = vmatprep.subr.mxu0 0.0
  %85 = vmatpush1.msra.mxu0 %v44
  %86 = vmatprep.subr.mxu0 0.0
  %87 = vmatpush1.msra.mxu0 %v43
  %88 = vmatprep.subr.mxu0 0.0
  %89 = vmatpush1.msra.mxu0 %v42
  %90 = vmatprep.subr.mxu0 0.0
  %91 = vmatpush1.msra.mxu0 %v41
  %92 = vmatprep.subr.mxu0 0.0
  %93 = vmatpush1.msra.mxu0 %v40
  %94 = vmatprep.subr.mxu0 0.0
  %95 = vmatpush1.msra.mxu0 %v39
  %96 = vmatprep.subr.mxu0 0.0
  %97 = vmatpush1.msra.mxu0 %v38
  %98 = vmatprep.subr.mxu0 0.0
  %99 = vmatpush1.msra.mxu0 %v37
  %100 = vmatprep.subr.mxu0 0.0
  %101 = vmatpush1.msra.mxu0 %v36
  %102 = vmatprep.subr.mxu0 0.0
  %103 = vmatpush1.msra.mxu0 %v35
  %104 = vmatprep.subr.mxu0 0.0
  %105 = vmatpush1.msra.mxu0 %v34
  %106 = vmatprep.subr.mxu0 0.0
  %107 = vmatpush1.msra.mxu0 %v33
  %108 = vmatprep.subr.mxu0 0.0
  %109 = vmatpush1.msra.mxu0 %v32
  %110 = vmatprep.subr.mxu0 0.0
  %111 = vmatpush1.msra.mxu0 %v31
  %112 = vmatprep.subr.mxu0 0.0
  %113 = vmatpush1.msra.mxu0 %v30
  %114 = vmatprep.subr.mxu0 0.0
  %115 = vmatpush1.msra.mxu0 %v29
  %116 = vmatprep.subr.mxu0 0.0
  %117 = vmatpush2.msra.mxu0 %v60
  %118 = vmatprep.subr.mxu0 0.0
  %119 = vmatpush2.msra.mxu0 %v59
  %120 = vmatprep.subr.mxu0 0.0
  %121 = vmatpush2.msra.mxu0 %v58
  %122 = vmatprep.subr.mxu0 0.0
  %123 = vmatpush2.msra.mxu0 %v57
  %124 = vmatprep.subr.mxu0 0.0
  %125 = vmatpush2.msra.mxu0 %v56
  %126 = vmatprep.subr.mxu0 0.0
  %127 = vmatpush2.msra.mxu0 %v55
  %128 = vmatprep.subr.mxu0 0.0
  %129 = vmatpush2.msra.mxu0 %v54
  %130 = vmatprep.subr.mxu0 0.0
  %131 = vmatpush2.msra.mxu0 %v53
  %132 = vmatprep.subr.mxu0 0.0
  %133 = vmatpush2.msra.mxu0 %v52
  %134 = vmatprep.subr.mxu0 0.0
  %135 = vmatpush2.msra.mxu0 %v51
  %136 = vmatprep.subr.mxu0 0.0
  %137 = vmatpush2.msra.mxu0 %v50
  %138 = vmatprep.subr.mxu0 0.0
  %139 = vmatpush2.msra.mxu0 %v49
  %140 = vmatprep.subr.mxu0 0.0
  %141 = vmatpush2.msra.mxu0 %v48
  %142 = vmatprep.subr.mxu0 0.0
  %143 = vmatpush2.msra.mxu0 %v47
  %144 = vmatprep.subr.mxu0 0.0
  %145 = vmatpush2.msra.mxu0 %v46
  %146 = vmatprep.subr.mxu0 0.0
  %147 = vmatpush2.msra.mxu0 %v45
  %148 = vmatprep.mubr.f32.mxu0 %v18
  %149 = vmatmul.mubr.f32.gmra.mxu0 %v17
  %v150 = vpop.f32.mrf.mxu0
  %v151 = vadd.f32 %v82, %v150
  %v152 = vpop.f32.mrf.mxu0
  %153 = vmatprep.mubr.f32.mxu0 %v21
  %154 = vmatmul.mubr.f32.gmra.mxu0 %v20
  %v155 = vpop.f32.mrf.mxu0
  %v156 = vadd.f32 %v82, %v155
  %v157 = vpop.f32.mrf.mxu0
  %158 = vmatprep.mubr.f32.mxu0 %v24
  %159 = vmatmul.mubr.f32.gmra.mxu0 %v23
  %v160 = vpop.f32.mrf.mxu0
  %v161 = vadd.f32 %v82, %v160
  %v162 = vpop.f32.mrf.mxu0
  %163 = vmatprep.mubr.f32.mxu0 %v27
  %164 = vmatmul.mubr.f32.gmra.mxu0 %v26
  %v165 = vpop.f32.mrf.mxu0
  %v166 = vadd.f32 %v82, %v165
  %v167 = vpop.f32.mrf.mxu0
  %168 = vdwg.mxu0
  %169 = vmatprep.subr.mxu0 0.0
  %170 = vmatpush1.msra.mxu0 %v76
  %171 = vmatprep.subr.mxu0 0.0
  %172 = vmatpush1.msra.mxu0 %v75
  %173 = vmatprep.subr.mxu0 0.0
  %174 = vmatpush1.msra.mxu0 %v74
  %175 = vmatprep.subr.mxu0 0.0
  %176 = vmatpush1.msra.mxu0 %v73
  %177 = vmatprep.subr.mxu0 0.0
  %178 = vmatpush1.msra.mxu0 %v72
  %179 = vmatprep.subr.mxu0 0.0
  %180 = vmatpush1.msra.mxu0 %v71
  %181 = vmatprep.subr.mxu0 0.0
  %182 = vmatpush1.msra.mxu0 %v70
  %183 = vmatprep.subr.mxu0 0.0
  %184 = vmatpush1.msra.mxu0 %v69
  %185 = vmatprep.subr.mxu0 0.0
  %186 = vmatpush1.msra.mxu0 %v68
  %187 = vmatprep.subr.mxu0 0.0
  %188 = vmatpush1.msra.mxu0 %v67
  %189 = vmatprep.subr.mxu0 0.0
  %190 = vmatpush1.msra.mxu0 %v66
  %191 = vmatprep.subr.mxu0 0.0
  %192 = vmatpush1.msra.mxu0 %v65
  %193 = vmatprep.subr.mxu0 0.0
  %194 = vmatpush1.msra.mxu0 %v64
  %195 = vmatprep.subr.mxu0 0.0
  %196 = vmatpush1.msra.mxu0 %v63
  %197 = vmatprep.subr.mxu0 0.0
  %198 = vmatpush1.msra.mxu0 %v62
  %199 = vmatprep.subr.mxu0 0.0
  %200 = vmatpush1.msra.mxu0 %v61
  %201 = vmatprep.subr.mxu0 0.0
  %202 = vmatpush2.msra.mxu0 0.0
  %203 = vmatprep.subr.mxu0 0.0
  %204 = vmatpush2.msra.mxu0 0.0
  %205 = vmatprep.subr.mxu0 0.0
  %206 = vmatpush2.msra.mxu0 0.0
  %207 = vmatprep.subr.mxu0 0.0
  %208 = vmatpush2.msra.mxu0 0.0
  %209 = vmatprep.subr.mxu0 0.0
  %210 = vmatpush2.msra.mxu0 0.0
  %211 = vmatprep.subr.mxu0 0.0
  %212 = vmatpush2.msra.mxu0 0.0
  %213 = vmatprep.subr.mxu0 0.0
  %214 = vmatpush2.msra.mxu0 0.0
  %215 = vmatprep.subr.mxu0 0.0
  %216 = vmatpush2.msra.mxu0 0.0
  %217 = vmatprep.subr.mxu0 0.0
  %218 = vmatpush2.msra.mxu0 0.0
  %219 = vmatprep.subr.mxu0 0.0
  %220 = vmatpush2.msra.mxu0 0.0
  %221 = vmatprep.subr.mxu0 0.0
  %222 = vmatpush2.msra.mxu0 0.0
  %223 = vmatprep.subr.mxu0 0.0
  %224 = vmatpush2.msra.mxu0 0.0
  %225 = vmatprep.subr.mxu0 0.0
  %226 = vmatpush2.msra.mxu0 0.0
  %227 = vmatprep.subr.mxu0 0.0
  %228 = vmatpush2.msra.mxu0 0.0
  %229 = vmatprep.subr.mxu0 0.0
  %230 = vmatpush2.msra.mxu0 0.0
  %231 = vmatprep.subr.mxu0 0.0
  %232 = vmatpush2.msra.mxu0 0.0
  %233 = vmatprep.mubr.f32.mxu0 0.0
  %234 = vmatmul.mubr.f32.gmra.mxu0 %v19
  %v235 = vpop.f32.mrf.mxu0
  %v236 = vadd.f32 %v151, %v235
  %v237 = vpop.f32.mrf.mxu0
  %238 = vmatprep.mubr.f32.mxu0 0.0
  %239 = vmatmul.mubr.f32.gmra.mxu0 %v22
  %v240 = vpop.f32.mrf.mxu0
  %v241 = vadd.f32 %v156, %v240
  %v242 = vpop.f32.mrf.mxu0
  %243 = vmatprep.mubr.f32.mxu0 0.0
  %244 = vmatmul.mubr.f32.gmra.mxu0 %v25
  %v245 = vpop.f32.mrf.mxu0
  %v246 = vadd.f32 %v161, %v245
  %v247 = vpop.f32.mrf.mxu0
  %248 = vmatprep.mubr.f32.mxu0 0.0
  %249 = vmatmul.mubr.f32.gmra.mxu0 %v28
  %v250 = vpop.f32.mrf.mxu0
  %v251 = vadd.f32 %v166, %v250
  %v252 = vpop.f32.mrf.mxu0
  %253 = vdwg.mxu0
  %v254 = vmax.f32 %v236, 0.0
  %v255 = vmax.f32 %v241, 0.0
  %v256 = vmax.f32 %v246, 0.0
  %v257 = vmax.f32 %v251, 0.0
  %258 = vst [vmem:[%s3] sm:$0xff] %v254
  %259 = vst [vmem:[%s3 + $0x8] sm:$0xff] %v255
  %260 = vst [vmem:[%s3 + $0x10] sm:$0xff] %v256
  %261 = vst [vmem:[%s3 + $0x18] sm:$0xff] %v257
  %s262 = smul.u32 0, 32
  %v263 = vlaneseq
  %v264 = vshrl.u32 %v263, 7
  %v265 = vadd.s32 %v264, 8
  %v266 = vadd.s32 %v264, 16
  %v267 = vadd.s32 %v264, 24
  %v268 = vstv %s262
  %v269 = vadd.s32 %v268, %v264
  %v270 = vadd.s32 %v268, %v265
  %v271 = vadd.s32 %v268, %v266
  %v272 = vadd.s32 %v268, %v267
  %vm273 = vcmp.lt.s32.totalorder %v269, 28
  %vm274 = vcmp.lt.s32.totalorder %v270, 28
  %vm275 = vcmp.lt.s32.totalorder %v271, 28
  %vm276 = vcmp.lt.s32.totalorder %v272, 28
  %v277 = vsel %vm273, 1, 0
  %v278 = vsel %vm274, 1, 0
  %v279 = vsel %vm275, 1, 0
  %v280 = vsel %vm276, 1, 0
  %vm281 = vcmp.eq.s32.totalorder %v277, 1
  %vm282 = vcmp.eq.s32.totalorder %v278, 1
  %vm283 = vcmp.eq.s32.totalorder %v279, 1
  %vm284 = vcmp.eq.s32.totalorder %v280, 1
  %v285 = vsel %vm281, %v254, 0.0
  %v286 = vsel %vm282, %v255, 0.0
  %v287 = vsel %vm283, %v256, 0.0
  %v288 = vsel %vm284, %v257, 0.0
  %v289 = vadd.f32 %v285, %v286
  %v290 = vadd.f32 %v289, %v287
  %v291 = vadd.f32 %v290, %v288
  %v292 = vrot.slane %v291, 4
  %v293 = vadd.f32 %v291, %v292
  %v294 = vrot.slane %v293, 2
  %v295 = vadd.f32 %v293, %v294
  %v296 = vrot.slane %v295, 1
  %v297 = vadd.f32 %v295, %v296
  %298 = vst [vmem:[%s4] sm:$0x1] %v297
  %v299 = vmul.f32 %v285, %v285
  %v300 = vmul.f32 %v286, %v286
  %v301 = vmul.f32 %v287, %v287
  %v302 = vmul.f32 %v288, %v288
  %v303 = vadd.f32 %v299, %v300
  %v304 = vadd.f32 %v303, %v301
  %v305 = vadd.f32 %v304, %v302
  %v306 = vrot.slane %v305, 4
  %v307 = vadd.f32 %v305, %v306
  %v308 = vrot.slane %v307, 2
  %v309 = vadd.f32 %v307, %v308
  %v310 = vrot.slane %v309, 1
  %v311 = vadd.f32 %v309, %v310
  %312 = vst [vmem:[%s5] sm:$0x1] %v311
  // Predicated region
  $region14: #{net_forward.8} parent=0 // pred_check
    _
  $region15: #{net_forward.8} parent=0 // pred_check_branch
    %314 = sbr.rel (0) target = $region17
  $region16: #{net_forward.8} parent=0 // pred_region
    _
  $region17: #{net_forward.8} parent=0 // pred_fallthru
    _
  // Predicated region
  $region18: #{net_forward.8} parent=0 // pred_check
    _
  $region19: #{net_forward.8} parent=0 // pred_check_branch
    %316 = sbr.rel (0) target = $region21
  $region20: #{net_forward.8} parent=0 // pred_region
    _
  $region21: #{net_forward.8} parent=0 // pred_fallthru
    _
  // Predicated region
  $region22: #{net_forward.8} parent=0 // pred_check
    _
  $region23: #{net_forward.8} parent=0 // pred_check_branch
    %318 = sbr.rel (0) target = $region25
  $region24: #{net_forward.8} parent=0 // pred_region
    _
  $region25: #{net_forward.8} parent=0 // pred_fallthru
    _
  // Predicated region
  $region26: #{net_forward.8} parent=0 // pred_check
    _
  $region27: #{net_forward.8} parent=0 // pred_check_branch
    %320 = sbr.rel (0) target = $region29
  $region28: #{net_forward.8} parent=0 // pred_region
    _
  $region29: #{net_forward.8} parent=0 // pred_fallthru
    _
  // Predicated region
  $region30: #{net_forward.8} parent=0 // pred_check
    _
  $region31: #{net_forward.8} parent=0 // pred_check_branch
    %322 = sbr.rel (0) target = $region33
  $region32: #{net_forward.8} parent=0 // pred_region
    _
  $region33: #{net_forward.8} parent=0 // pred_fallthru
    _
  // Predicated region
  $region34: #{net_forward.8} parent=0 // pred_check
    _
  $region35: #{net_forward.8} parent=0 // pred_check_branch
    %324 = sbr.rel (0) target = $region37
  $region36: #{net_forward.8} parent=0 // pred_region
    _
  $region37: #{net_forward.8} parent=0 // pred_fallthru
    _

// kernel: net_forward.9
$region0: #{net_forward.9}
  #allocation0 [shape = 'u32[]', space=smem, size = 0x4, offset = 0x4, fixed_abs, tag = 'smem constant byte address 0x4 - core index']
  #allocation1 [shape = 'u32[144,128]{1,0:T(1,128)}', space=vmem, size = 0x12000, scoped, tag = 'internal scratch']
  %s0 = inlined_call_operand.vmem [shape: f32[16,384], index: 0, kind: input, shape index: {}]
  %s1 = inlined_call_operand.vmem [shape: f32[384,128], index: 1, kind: input, shape index: {}]
  %s2 = inlined_call_operand.vmem [shape: f32[1,128], index: 2, kind: input, shape index: {}]
  %s3 = inlined_call_operand.vmem [shape: f32[16,128], index: 3, kind: output, shape index: {0}]
  %s4 = inlined_call_operand.hbm [shape: f32[1,1,128], index: 4, kind: output, shape index: {1}]
  %s5 = inlined_call_operand.hbm [shape: f32[1,1,128], index: 5, kind: output, shape index: {2}]
  %6 = xla_tuple %s3, %s4, %s5
  %s7 = sld [smem:[#allocation0]]
  $region38: #{net_forward.9} parent=0
    _
  %s9 = ssub.s32 1, %s7
  %s10 = scalar_select 0, %s9, %s7
  $region1: #{net_forward.9} parent=0
    #allocation2 [shape = 'u8[512]{0}', space=vmem, size = 0x400, scoped, tag = 'output window, operand 1, single buffered']
    #allocation3 [shape = 's32[1]{0}', space=sflag, size = 0x4, scoped, tag = 'scoped memory for net_forward.9']
    #allocation4 [shape = 'u8[512]{0}', space=vmem, size = 0x400, scoped, tag = 'output window, operand 2, single buffered']
    #allocation5 [shape = 's32[1]{0}', space=sflag, size = 0x4, scoped, tag = 'scoped memory for net_forward.9']
    %11 = vsyncpa [#allocation3], 0
    %12 = vsyncpa [#allocation5], 0
    // Predicated region
    $region2: #{net_forward.9} parent=1 // pred_check
      _
    $region3: #{net_forward.9} parent=1 // pred_check_branch
      %14 = sbr.rel (0) target = $region5
    $region4: #{net_forward.9} parent=1 // pred_region
      _
    $region5: #{net_forward.9} parent=1 // pred_fallthru
      _
    // Predicated region
    $region6: #{net_forward.9} parent=1 // pred_check
      _
    $region7: #{net_forward.9} parent=1 // pred_check_branch
      %16 = sbr.rel (0) target = $region9
    $region8: #{net_forward.9} parent=1 // pred_region
      _
    $region9: #{net_forward.9} parent=1 // pred_fallthru
      _
    // Predicated region
    $region10: #{net_forward.9} parent=1 // pred_check
      _
    $region11: #{net_forward.9} parent=1 // pred_check_branch
      %18 = sbr.rel (0) target = $region13
    $region12: #{net_forward.9} parent=1 // pred_region
      _
    $region13: #{net_forward.9} parent=1 // pred_fallthru
      _
    %v19 = vld [vmem:[%s0] sm:$0xff]
    %v20 = vld [vmem:[%s0 + $0x8] sm:$0xff]
    %v21 = vld [vmem:[%s0 + $0x10] sm:$0xff]
    %v22 = vld [vmem:[%s0 + $0x18] sm:$0xff]
    %v23 = vld [vmem:[%s0 + $0x20] sm:$0xff]
    %v24 = vld [vmem:[%s0 + $0x28] sm:$0xff]
    %v25 = vld [vmem:[%s1] sm:$0xff]
    %v26 = vld [vmem:[%s1 + $0x8] sm:$0xff]
    %v27 = vld [vmem:[%s1 + $0x10] sm:$0xff]
    %v28 = vld [vmem:[%s1 + $0x18] sm:$0xff]
    %v29 = vld [vmem:[%s1 + $0x20] sm:$0xff]
    %v30 = vld [vmem:[%s1 + $0x28] sm:$0xff]
    %v31 = vld [vmem:[%s1 + $0x30] sm:$0xff]
    %v32 = vld [vmem:[%s1 + $0x38] sm:$0xff]
    %v33 = vld [vmem:[%s1 + $0x40] sm:$0xff]
    %v34 = vld [vmem:[%s1 + $0x48] sm:$0xff]
    %v35 = vld [vmem:[%s1 + $0x50] sm:$0xff]
    %v36 = vld [vmem:[%s1 + $0x58] sm:$0xff]
    %v37 = vld [vmem:[%s1 + $0x60] sm:$0xff]
    %v38 = vld [vmem:[%s1 + $0x68] sm:$0xff]
    %v39 = vld [vmem:[%s1 + $0x70] sm:$0xff]
    %v40 = vld [vmem:[%s1 + $0x78] sm:$0xff]
    %v41 = vld [vmem:[%s1 + $0x80] sm:$0xff]
    %v42 = vld [vmem:[%s1 + $0x88] sm:$0xff]
    %v43 = vld [vmem:[%s1 + $0x90] sm:$0xff]
    %v44 = vld [vmem:[%s1 + $0x98] sm:$0xff]
    %v45 = vld [vmem:[%s1 + $0xa0] sm:$0xff]
    %v46 = vld [vmem:[%s1 + $0xa8] sm:$0xff]
    %v47 = vld [vmem:[%s1 + $0xb0] sm:$0xff]
    %v48 = vld [vmem:[%s1 + $0xb8] sm:$0xff]
    %v49 = vld [vmem:[%s1 + $0xc0] sm:$0xff]
    %v50 = vld [vmem:[%s1 + $0xc8] sm:$0xff]
    %v51 = vld [vmem:[%s1 + $0xd0] sm:$0xff]
    %v52 = vld [vmem:[%s1 + $0xd8] sm:$0xff]
    %v53 = vld [vmem:[%s1 + $0xe0] sm:$0xff]
    %v54 = vld [vmem:[%s1 + $0xe8] sm:$0xff]
    %v55 = vld [vmem:[%s1 + $0xf0] sm:$0xff]
    %v56 = vld [vmem:[%s1 + $0xf8] sm:$0xff]
    %v57 = vld [vmem:[%s1 + $0x100] sm:$0xff]
    %v58 = vld [vmem:[%s1 + $0x108] sm:$0xff]
    %v59 = vld [vmem:[%s1 + $0x110] sm:$0xff]
    %v60 = vld [vmem:[%s1 + $0x118] sm:$0xff]
    %v61 = vld [vmem:[%s1 + $0x120] sm:$0xff]
    %v62 = vld [vmem:[%s1 + $0x128] sm:$0xff]
    %v63 = vld [vmem:[%s1 + $0x130] sm:$0xff]
    %v64 = vld [vmem:[%s1 + $0x138] sm:$0xff]
    %v65 = vld [vmem:[%s1 + $0x140] sm:$0xff]
    %v66 = vld [vmem:[%s1 + $0x148] sm:$0xff]
    %v67 = vld [vmem:[%s1 + $0x150] sm:$0xff]
    %v68 = vld [vmem:[%s1 + $0x158] sm:$0xff]
    %v69 = vld [vmem:[%s1 + $0x160] sm:$0xff]
    %v70 = vld [vmem:[%s1 + $0x168] sm:$0xff]
    %v71 = vld [vmem:[%s1 + $0x170] sm:$0xff]
    %v72 = vld [vmem:[%s1 + $0x178] sm:$0xff]
    %v73 = vld [vmem:[%s2] sm:$0x1]
    %v75 = vlaneseq
    %v76 = vshrl.u32 %v75, 7
    %v77 = vsub.s32 0, %v76
    %v78 = vrot.slane %v73, %v77
    %80 = vmatprep.subr.mxu0 0.0
    %81 = vmatpush1.msra.mxu0 %v40
    %82 = vmatprep.subr.mxu0 0.0
    %83 = vmatpush1.msra.mxu0 %v39
    %84 = vmatprep.subr.mxu0 0.0
    %85 = vmatpush1.msra.mxu0 %v38
    %86 = vmatprep.subr.mxu0 0.0
    %87 = vmatpush1.msra.mxu0 %v37
    %88 = vmatprep.subr.mxu0 0.0
    %89 = vmatpush1.msra.mxu0 %v36
    %90 = vmatprep.subr.mxu0 0.0
    %91 = vmatpush1.msra.mxu0 %v35
    %92 = vmatprep.subr.mxu0 0.0
    %93 = vmatpush1.msra.mxu0 %v34
    %94 = vmatprep.subr.mxu0 0.0
    %95 = vmatpush1.msra.mxu0 %v33
    %96 = vmatprep.subr.mxu0 0.0
    %97 = vmatpush1.msra.mxu0 %v32
    %98 = vmatprep.subr.mxu0 0.0
    %99 = vmatpush1.msra.mxu0 %v31
    %100 = vmatprep.subr.mxu0 0.0
    %101 = vmatpush1.msra.mxu0 %v30
    %102 = vmatprep.subr.mxu0 0.0
    %103 = vmatpush1.msra.mxu0 %v29
    %104 = vmatprep.subr.mxu0 0.0
    %105 = vmatpush1.msra.mxu0 %v28
    %106 = vmatprep.subr.mxu0 0.0
    %107 = vmatpush1.msra.mxu0 %v27
    %108 = vmatprep.subr.mxu0 0.0
    %109 = vmatpush1.msra.mxu0 %v26
    %110 = vmatprep.subr.mxu0 0.0
    %111 = vmatpush1.msra.mxu0 %v25
    %112 = vmatprep.subr.mxu0 0.0
    %113 = vmatpush2.msra.mxu0 %v56
    %114 = vmatprep.subr.mxu0 0.0
    %115 = vmatpush2.msra.mxu0 %v55
    %116 = vmatprep.subr.mxu0 0.0
    %117 = vmatpush2.msra.mxu0 %v54
    %118 = vmatprep.subr.mxu0 0.0
    %119 = vmatpush2.msra.mxu0 %v53
    %120 = vmatprep.subr.mxu0 0.0
    %121 = vmatpush2.msra.mxu0 %v52
    %122 = vmatprep.subr.mxu0 0.0
    %123 = vmatpush2.msra.mxu0 %v51
    %124 = vmatprep.subr.mxu0 0.0
    %125 = vmatpush2.msra.mxu0 %v50
    %126 = vmatprep.subr.mxu0 0.0
    %127 = vmatpush2.msra.mxu0 %v49
    %128 = vmatprep.subr.mxu0 0.0
    %129 = vmatpush2.msra.mxu0 %v48
    %130 = vmatprep.subr.mxu0 0.0
    %131 = vmatpush2.msra.mxu0 %v47
    %132 = vmatprep.subr.mxu0 0.0
    %133 = vmatpush2.msra.mxu0 %v46
    %134 = vmatprep.subr.mxu0 0.0
    %135 = vmatpush2.msra.mxu0 %v45
    %136 = vmatprep.subr.mxu0 0.0
    %137 = vmatpush2.msra.mxu0 %v44
    %138 = vmatprep.subr.mxu0 0.0
    %139 = vmatpush2.msra.mxu0 %v43
    %140 = vmatprep.subr.mxu0 0.0
    %141 = vmatpush2.msra.mxu0 %v42
    %142 = vmatprep.subr.mxu0 0.0
    %143 = vmatpush2.msra.mxu0 %v41
    %144 = vmatprep.mubr.f32.mxu0 %v20
    %145 = vmatmul.mubr.f32.gmra.mxu0 %v19
    %v146 = vpop.f32.mrf.mxu0
    %v147 = vadd.f32 %v78, %v146
    %v148 = vpop.f32.mrf.mxu0
    %149 = vmatprep.mubr.f32.mxu0 %v23
    %150 = vmatmul.mubr.f32.gmra.mxu0 %v22
    %v151 = vpop.f32.mrf.mxu0
    %v152 = vadd.f32 %v78, %v151
    %v153 = vpop.f32.mrf.mxu0
    %154 = vdwg.mxu0
    %155 = vmatprep.subr.mxu0 0.0
    %156 = vmatpush1.msra.mxu0 %v72
    %157 = vmatprep.subr.mxu0 0.0
    %158 = vmatpush1.msra.mxu0 %v71
    %159 = vmatprep.subr.mxu0 0.0
    %160 = vmatpush1.msra.mxu0 %v70
    %161 = vmatprep.subr.mxu0 0.0
    %162 = vmatpush1.msra.mxu0 %v69
    %163 = vmatprep.subr.mxu0 0.0
    %164 = vmatpush1.msra.mxu0 %v68
    %165 = vmatprep.subr.mxu0 0.0
    %166 = vmatpush1.msra.mxu0 %v67
    %167 = vmatprep.subr.mxu0 0.0
    %168 = vmatpush1.msra.mxu0 %v66
    %169 = vmatprep.subr.mxu0 0.0
    %170 = vmatpush1.msra.mxu0 %v65
    %171 = vmatprep.subr.mxu0 0.0
    %172 = vmatpush1.msra.mxu0 %v64
    %173 = vmatprep.subr.mxu0 0.0
    %174 = vmatpush1.msra.mxu0 %v63
    %175 = vmatprep.subr.mxu0 0.0
    %176 = vmatpush1.msra.mxu0 %v62
    %177 = vmatprep.subr.mxu0 0.0
    %178 = vmatpush1.msra.mxu0 %v61
    %179 = vmatprep.subr.mxu0 0.0
    %180 = vmatpush1.msra.mxu0 %v60
    %181 = vmatprep.subr.mxu0 0.0
    %182 = vmatpush1.msra.mxu0 %v59
    %183 = vmatprep.subr.mxu0 0.0
    %184 = vmatpush1.msra.mxu0 %v58
    %185 = vmatprep.subr.mxu0 0.0
    %186 = vmatpush1.msra.mxu0 %v57
    %187 = vmatprep.subr.mxu0 0.0
    %188 = vmatpush2.msra.mxu0 0.0
    %189 = vmatprep.subr.mxu0 0.0
    %190 = vmatpush2.msra.mxu0 0.0
    %191 = vmatprep.subr.mxu0 0.0
    %192 = vmatpush2.msra.mxu0 0.0
    %193 = vmatprep.subr.mxu0 0.0
    %194 = vmatpush2.msra.mxu0 0.0
    %195 = vmatprep.subr.mxu0 0.0
    %196 = vmatpush2.msra.mxu0 0.0
    %197 = vmatprep.subr.mxu0 0.0
    %198 = vmatpush2.msra.mxu0 0.0
    %199 = vmatprep.subr.mxu0 0.0
    %200 = vmatpush2.msra.mxu0 0.0
    %201 = vmatprep.subr.mxu0 0.0
    %202 = vmatpush2.msra.mxu0 0.0
    %203 = vmatprep.subr.mxu0 0.0
    %204 = vmatpush2.msra.mxu0 0.0
    %205 = vmatprep.subr.mxu0 0.0
    %206 = vmatpush2.msra.mxu0 0.0
    %207 = vmatprep.subr.mxu0 0.0
    %208 = vmatpush2.msra.mxu0 0.0
    %209 = vmatprep.subr.mxu0 0.0
    %210 = vmatpush2.msra.mxu0 0.0
    %211 = vmatprep.subr.mxu0 0.0
    %212 = vmatpush2.msra.mxu0 0.0
    %213 = vmatprep.subr.mxu0 0.0
    %214 = vmatpush2.msra.mxu0 0.0
    %215 = vmatprep.subr.mxu0 0.0
    %216 = vmatpush2.msra.mxu0 0.0
    %217 = vmatprep.subr.mxu0 0.0
    %218 = vmatpush2.msra.mxu0 0.0
    %219 = vmatprep.mubr.f32.mxu0 0.0
    %220 = vmatmul.mubr.f32.gmra.mxu0 %v21
    %v221 = vpop.f32.mrf.mxu0
    %v222 = vadd.f32 %v147, %v221
    %v223 = vpop.f32.mrf.mxu0
    %224 = vmatprep.mubr.f32.mxu0 0.0
    %225 = vmatmul.mubr.f32.gmra.mxu0 %v24
    %v226 = vpop.f32.mrf.mxu0
    %v227 = vadd.f32 %v152, %v226
    %v228 = vpop.f32.mrf.mxu0
    %229 = vdwg.mxu0
    %v230 = vmax.f32 %v222, 0.0
    %v231 = vmax.f32 %v227, 0.0
    %232 = vst [vmem:[%s3] sm:$0xff] %v230
    %233 = vst [vmem:[%s3 + $0x8] sm:$0xff] %v231
    %s234 = smul.u32 0, 16
    %v235 = vlaneseq
    %v236 = vshrl.u32 %v235, 7
    %v237 = vadd.s32 %v236, 8
    %v238 = vstv %s234
    %v239 = vadd.s32 %v238, %v236
    %v240 = vadd.s32 %v238, %v237
    %vm241 = vcmp.lt.s32.totalorder %v239, 12
    %vm242 = vcmp.lt.s32.totalorder %v240, 12
    %v243 = vsel %vm241, 1, 0
    %v244 = vsel %vm242, 1, 0
    %vm245 = vcmp.eq.s32.totalorder %v243, 1
    %vm246 = vcmp.eq.s32.totalorder %v244, 1
    %v247 = vsel %vm245, %v230, 0.0
    %v248 = vsel %vm246, %v231, 0.0
    %v249 = vadd.f32 %v247, %v248
    %v250 = vrot.slane %v249, 4
    %v251 = vadd.f32 %v249, %v250
    %v252 = vrot.slane %v251, 2
    %v253 = vadd.f32 %v251, %v252
    %v254 = vrot.slane %v253, 1
    %v255 = vadd.f32 %v253, %v254
    %256 = vst [vmem:[#allocation2] sm:$0x1] %v255
    %v257 = vmul.f32 %v247, %v247
    %v258 = vmul.f32 %v248, %v248
    %v259 = vadd.f32 %v257, %v258
    %v260 = vrot.slane %v259, 4
    %v261 = vadd.f32 %v259, %v260
    %v262 = vrot.slane %v261, 2
    %v263 = vadd.f32 %v261, %v262
    %v264 = vrot.slane %v263, 1
    %v265 = vadd.f32 %v263, %v264
    %266 = vst [vmem:[#allocation4] sm:$0x1] %v265
    // Predicated region
    $region14: #{net_forward.9} parent=1 // pred_check
      _
    $region15: #{net_forward.9} parent=1 // pred_check_branch
      %268 = sbr.rel (0) target = $region17
    $region16: #{net_forward.9} parent=1 // pred_region
      _
    $region17: #{net_forward.9} parent=1 // pred_fallthru
      _
    // Predicated region
    $region18: #{net_forward.9} parent=1 // pred_check
      _
    $region19: #{net_forward.9} parent=1 // pred_check_branch
      %270 = sbr.rel (0) target = $region21
    $region20: #{net_forward.9} parent=1 // pred_region
      %s272 = ssub.s32 16, 16
      %273 = vsyncadd [#allocation3], %s272
      %s275 = sshll.u32 [#allocation2], 4
      %s276 = int_to_ptr.vmem [resolvable:$true] %s275
      %278 = dma.vmem_to_hbm [thread:$0]  %s276, 16, %s4, [#allocation3]
    $region21: #{net_forward.9} parent=1 // pred_fallthru
      _
    // Predicated region
    $region22: #{net_forward.9} parent=1 // pred_check
      _
    $region23: #{net_forward.9} parent=1 // pred_check_branch
      %280 = sbr.rel (0) target = $region25
    $region24: #{net_forward.9} parent=1 // pred_region
      %s282 = ssub.s32 16, 16
      %283 = vsyncadd [#allocation5], %s282
      %s285 = sshll.u32 [#allocation4], 4
      %s286 = int_to_ptr.vmem [resolvable:$true] %s285
      %288 = dma.vmem_to_hbm [thread:$0]  %s286, 16, %s5, [#allocation5]
    $region25: #{net_forward.9} parent=1 // pred_fallthru
      _
    // Predicated region
    $region26: #{net_forward.9} parent=1 // pred_check
      _
    $region27: #{net_forward.9} parent=1 // pred_check_branch
      %290 = sbr.rel (0) target = $region29
    $region28: #{net_forward.9} parent=1 // pred_region
      _
    $region29: #{net_forward.9} parent=1 // pred_fallthru
      _
    // Predicated region
    $region30: #{net_forward.9} parent=1 // pred_check
      _
    $region31: #{net_forward.9} parent=1 // pred_check_branch
      %292 = sbr.rel (0) target = $region33
    $region32: #{net_forward.9} parent=1 // pred_region
      %293 = dma.done [#allocation3], 16
    $region33: #{net_forward.9} parent=1 // pred_fallthru
      _
    // Predicated region
    $region34: #{net_forward.9} parent=1 // pred_check
      _
    $region35: #{net_forward.9} parent=1 // pred_check_branch
      %295 = sbr.rel (0) target = $region37
    $region36: #{net_forward.9} parent=1 // pred_region
      %296 = dma.done [#allocation5], 16
    $region37: #{net_forward.9} parent=1 // pred_fallthru
      _
    %297 = vsyncpa [#allocation3], 1
    %298 = vsyncpa [#allocation5], 1

</llo_original>
